<compile_context>
chip_gen: v7x
topology: tpu7x:2x2x1
jax: 0.10.0
libtpu: 0.0.40
codegen_flags: <defaults>
</compile_context>

<pallas_src>
import functools

import jax
import jax.numpy as jnp
from jax import lax
from jax.experimental import pallas as pl
from jax.experimental.pallas import tpu as pltpu


# ----------------------------------------------------------------------------
# Fused DownConv kernel: maxpool2x2 -> conv3x3+BN+ReLU -> conv3x3+BN+ReLU
# ----------------------------------------------------------------------------

def _downconv_kernel(x_ref, w1_ref, s1_ref, t1_ref, w2_ref, s2_ref, t2_ref,
                     o_ref, pad1_ref, pad2_ref):
    """One batch-tile of DownConv, entirely in VMEM.

    x_ref  : (BT, Hp, 2, Wp, 2*Cin) f32  input, pre-reshaped so the 2x2 pool
                                         window is (axis 2) x (lane halves)
    w1_ref : (3, 3, Cin,  Cout) bf16     conv1 weights (HWIO)
    w2_ref : (3, 3, Cout, Cout) bf16     conv2 weights (HWIO)
    s*/t*  : (1, Cout) f32               folded BatchNorm scale / shift
    o_ref  : (BT, Hp, Wp, Cout) f32
    pad1_ref, pad2_ref : VMEM scratch, zero-padded conv inputs
    """
    BT, Hp, _, Wp, two_cin = x_ref.shape
    Cin = two_cin // 2
    Cout = o_ref.shape[-1]
    M = BT * Hp * Wp  # batch collapsed into the matmul M dimension

    # ---- 1) MaxPool2d(2, 2): max over the h-pair (outer axis 2) and the
    #         w-pair (static lane halves of the last dim). VPU only.
    x = x_ref[...]
    pooled = jnp.maximum(
        jnp.maximum(x[:, :, 0, :, :Cin], x[:, :, 0, :, Cin:]),
        jnp.maximum(x[:, :, 1, :, :Cin], x[:, :, 1, :, Cin:]))  # (BT,Hp,Wp,Cin)

    def conv3x3(pad_ref, w_ref, cin):
        # conv as 9 shifted matmuls out of the zero-padded scratch buffer;
        # bf16 MXU inputs, f32 accumulation.
        acc = jnp.zeros((M, Cout), jnp.float32)
        for kh in range(3):
            for kw in range(3):
                patch = pad_ref[:, kh:kh + Hp, kw:kw + Wp, :]
                patch = patch.reshape(M, cin).astype(jnp.bfloat16)
                acc += jnp.dot(patch, w_ref[kh, kw],
                               preferred_element_type=jnp.float32)
        return acc

    # ---- 2) conv1 + folded BN + ReLU
    pad1_ref[...] = jnp.zeros(pad1_ref.shape, pad1_ref.dtype)
    pad1_ref[:, 1:Hp + 1, 1:Wp + 1, :] = pooled
    y1 = conv3x3(pad1_ref, w1_ref, Cin)
    y1 = jnp.maximum(y1 * s1_ref[...] + t1_ref[...], 0.0)

    # ---- 3) conv2 + folded BN + ReLU (conv1 output never leaves VMEM)
    pad2_ref[...] = jnp.zeros(pad2_ref.shape, pad2_ref.dtype)
    pad2_ref[:, 1:Hp + 1, 1:Wp + 1, :] = y1.reshape(BT, Hp, Wp, Cout)
    y2 = conv3x3(pad2_ref, w2_ref, Cout)
    y2 = jnp.maximum(y2 * s2_ref[...] + t2_ref[...], 0.0)

    o_ref[...] = y2.reshape(BT, Hp, Wp, Cout).astype(o_ref.dtype)


# ----------------------------------------------------------------------------
# Wrapper
# ----------------------------------------------------------------------------

def _pick_batch_tile(batch, spatial):
    # Largest divisor of `batch` keeping the collapsed M dim (BT*Hp*Wp) modest
    # so all scratch / accumulators comfortably fit VMEM on every generation.
    for bt in range(batch, 0, -1):
        if batch % bt == 0 and bt * spatial <= 4096:
            return bt
    return 1


def downconv_forward(x_nchw, params):
    """DownConv forward. x_nchw: (B, Cin, H, W) f32 -> (B, Cout, H/2, W/2) f32."""
    w1, s1, t1, w2, s2, t2 = params
    B, Cin, H, W = x_nchw.shape
    assert H % 2 == 0 and W % 2 == 0, "spatial dims must be even for MaxPool2d(2,2)"
    Hp, Wp = H // 2, W // 2
    Cout = w1.shape[-1]

    # NCHW -> NHWC (channels on the lane axis), then a free contiguous reshape
    # exposing the 2x2 pooling window as (h-pair axis, lane halves).
    x_nhwc = jnp.transpose(x_nchw, (0, 2, 3, 1))
    x_r = x_nhwc.reshape(B, Hp, 2, Wp, 2 * Cin)

    # bf16 weights for the MXU; BN scale/shift stay f32 for the epilogue.
    w1b = w1.astype(jnp.bfloat16)
    w2b = w2.astype(jnp.bfloat16)
    s1r = s1.reshape(1, Cout).astype(jnp.float32)
    t1r = t1.reshape(1, Cout).astype(jnp.float32)
    s2r = s2.reshape(1, Cout).astype(jnp.float32)
    t2r = t2.reshape(1, Cout).astype(jnp.float32)

    BT = _pick_batch_tile(B, Hp * Wp)
    grid = (B // BT,)

    out = pl.pallas_call(
        _downconv_kernel,
        out_shape=jax.ShapeDtypeStruct((B, Hp, Wp, Cout), jnp.float32),
        grid_spec=pltpu.PrefetchScalarGridSpec(
            num_scalar_prefetch=0,
            grid=grid,
            in_specs=[
                pl.BlockSpec((BT, Hp, 2, Wp, 2 * Cin),
                             lambda b: (b, 0, 0, 0, 0)),
                pl.BlockSpec((3, 3, Cin, Cout), lambda b: (0, 0, 0, 0)),
                pl.BlockSpec((1, Cout), lambda b: (0, 0)),
                pl.BlockSpec((1, Cout), lambda b: (0, 0)),
                pl.BlockSpec((3, 3, Cout, Cout), lambda b: (0, 0, 0, 0)),
                pl.BlockSpec((1, Cout), lambda b: (0, 0)),
                pl.BlockSpec((1, Cout), lambda b: (0, 0)),
            ],
            out_specs=pl.BlockSpec((BT, Hp, Wp, Cout),
                                   lambda b: (b, 0, 0, 0)),
            scratch_shapes=[
                pltpu.VMEM((BT, Hp + 2, Wp + 2, Cin), jnp.float32),
                pltpu.VMEM((BT, Hp + 2, Wp + 2, Cout), jnp.float32),
            ],
        ),
        compiler_params=pltpu.CompilerParams(
            dimension_semantics=("parallel",)),
    )(x_r, w1b, s1r, t1r, w2b, s2r, t2r)

    # Back to the PyTorch module's NCHW output layout.
    return jnp.transpose(out, (0, 3, 1, 2))


# ----------------------------------------------------------------------------
# Pure-JAX reference (same math, XLA ops) for a correctness check
# ----------------------------------------------------------------------------

def downconv_reference(x_nchw, params):
    w1, s1, t1, w2, s2, t2 = params
    x = jnp.transpose(x_nchw, (0, 2, 3, 1))
    x = lax.reduce_window(x, -jnp.inf, lax.max,
                          (1, 2, 2, 1), (1, 2, 2, 1), 'VALID')

    def conv_bn_relu(h, w, s, t):
        wq = w.astype(jnp.bfloat16).astype(jnp.float32)  # match kernel's bf16 weights
        y = lax.conv_general_dilated(
            h, wq, window_strides=(1, 1), padding=((1, 1), (1, 1)),
            dimension_numbers=('NHWC', 'HWIO', 'NHWC'),
            precision=lax.Precision.HIGHEST)
        return jnp.maximum(y * s + t, 0.0)

    x = conv_bn_relu(x, w1, s1, t1)
    x = conv_bn_relu(x, w2, s2, t2)
    return jnp.transpose(x, (0, 3, 1, 2))


# ----------------------------------------------------------------------------
# Deterministic parameter initialization (shapes follow DownConv.__init__)
# ----------------------------------------------------------------------------

def init_params(key, cin, cout, eps=1e-5):
    k1, k2, k3, k4 = jax.random.split(key, 4)
    w1 = jax.random.normal(k1, (3, 3, cin, cout), jnp.float32) / jnp.sqrt(9.0 * cin)
    b1 = jax.random.normal(k2, (cout,), jnp.float32) * 0.01
    w2 = jax.random.normal(k3, (3, 3, cout, cout), jnp.float32) / jnp.sqrt(9.0 * cout)
    b2 = jax.random.normal(k4, (cout,), jnp.float32) * 0.01

    # BatchNorm2d in eval mode with fresh running stats; fold conv bias + BN
    # into a per-channel scale/shift.
    # TODO(synk): training-mode BatchNorm (per-batch statistics) is not implemented.
    def fold(bias, co):
        gamma = jnp.ones((co,), jnp.float32)
        beta = jnp.zeros((co,), jnp.float32)
        mean = jnp.zeros((co,), jnp.float32)
        var = jnp.ones((co,), jnp.float32)
        scale = gamma / jnp.sqrt(var + eps)
        shift = beta + (bias - mean) * scale
        return scale, shift

    s1, t1 = fold(b1, cout)
    s2, t2 = fold(b2, cout)
    return (w1, s1, t1, w2, s2, t2)


# ----------------------------------------------------------------------------
# Main
# ----------------------------------------------------------------------------

if __name__ == "__main__":
    key = jax.random.PRNGKey(0)
    kx, kp = jax.random.split(key)

    # Small shapes consistent with the module: DownConv(4 -> 32) on a 16x16 map.
    B, Cin, H, W = 2, 4, 16, 16
    Cout = 32

    x = jax.random.normal(kx, (B, Cin, H, W), jnp.float32)
    params = init_params(kp, Cin, Cout)

    fwd = jax.jit(downconv_forward)
    out = fwd(x, params)
    jax.block_until_ready(out)
    assert out.shape == (B, Cout, H // 2, W // 2), out.shape
    assert out.dtype == jnp.float32

    ref = jax.jit(downconv_reference)(x, params)
    jax.block_until_ready(ref)
    err = float(jnp.max(jnp.abs(out - ref)))
    assert err < 5e-2, f"max abs error vs reference: {err}"

    print("KERNEL_OK")
</pallas_src>

<mosaic_0001>
module attributes {stable_mosaic.version = 11 : i64} {
  func.func @_downconv_kernel(%arg0: i32, %arg1: memref<2x8x2x8x8xf32, #tpu.memory_space<vmem>>, %arg2: memref<3x3x4x32xbf16, #tpu.memory_space<vmem>>, %arg3: memref<1x32xf32, #tpu.memory_space<vmem>>, %arg4: memref<1x32xf32, #tpu.memory_space<vmem>>, %arg5: memref<3x3x32x32xbf16, #tpu.memory_space<vmem>>, %arg6: memref<1x32xf32, #tpu.memory_space<vmem>>, %arg7: memref<1x32xf32, #tpu.memory_space<vmem>>, %arg8: memref<2x8x8x32xf32, #tpu.memory_space<vmem>>, %arg9: memref<2x10x10x4xf32, #tpu.memory_space<vmem>>, %arg10: memref<2x10x10x32xf32, #tpu.memory_space<vmem>>) attributes {dimension_semantics = [#tpu.dimension_semantics<parallel>], iteration_bounds = array<i64: 1>, scalar_prefetch = 0 : i64, scratch_operands = 2 : i64, tpu.core_type = #tpu.core_type<tc>, window_params = [{transform_indices = @transform_0, window_bounds = array<i64: 2, 8, 2, 8, 8>}, {pipeline_mode = #tpu.pipeline_mode<synchronous>, transform_indices = @transform_1, window_bounds = array<i64: 3, 3, 4, 32>}, {pipeline_mode = #tpu.pipeline_mode<synchronous>, transform_indices = @transform_2, window_bounds = array<i64: 1, 32>}, {pipeline_mode = #tpu.pipeline_mode<synchronous>, transform_indices = @transform_3, window_bounds = array<i64: 1, 32>}, {pipeline_mode = #tpu.pipeline_mode<synchronous>, transform_indices = @transform_4, window_bounds = array<i64: 3, 3, 32, 32>}, {pipeline_mode = #tpu.pipeline_mode<synchronous>, transform_indices = @transform_5, window_bounds = array<i64: 1, 32>}, {pipeline_mode = #tpu.pipeline_mode<synchronous>, transform_indices = @transform_6, window_bounds = array<i64: 1, 32>}, {transform_indices = @transform_7, window_bounds = array<i64: 2, 8, 8, 32>}]} {
    %c0 = arith.constant 0 : index
    %c0_0 = arith.constant 0 : index
    %c0_1 = arith.constant 0 : index
    %c0_2 = arith.constant 0 : index
    %c0_3 = arith.constant 0 : index
    %0 = vector.load %arg1[%c0, %c0_0, %c0_1, %c0_2, %c0_3] : memref<2x8x2x8x8xf32, #tpu.memory_space<vmem>>, vector<2x8x2x8x8xf32>
    %1 = vector.extract_strided_slice %0 {offsets = [0, 0, 0, 0, 0], sizes = [2, 8, 1, 8, 4], strides = [1, 1, 1, 1, 1]} : vector<2x8x2x8x8xf32> to vector<2x8x1x8x4xf32>
    %2 = vector.shape_cast %1 : vector<2x8x1x8x4xf32> to vector<2x8x8x4xf32>
    %3 = vector.extract_strided_slice %0 {offsets = [0, 0, 0, 0, 4], sizes = [2, 8, 1, 8, 4], strides = [1, 1, 1, 1, 1]} : vector<2x8x2x8x8xf32> to vector<2x8x1x8x4xf32>
    %4 = vector.shape_cast %3 : vector<2x8x1x8x4xf32> to vector<2x8x8x4xf32>
    %5 = arith.maximumf %2, %4 : vector<2x8x8x4xf32>
    %6 = vector.extract_strided_slice %0 {offsets = [0, 0, 1, 0, 0], sizes = [2, 8, 1, 8, 4], strides = [1, 1, 1, 1, 1]} : vector<2x8x2x8x8xf32> to vector<2x8x1x8x4xf32>
    %7 = vector.shape_cast %6 : vector<2x8x1x8x4xf32> to vector<2x8x8x4xf32>
    %8 = vector.extract_strided_slice %0 {offsets = [0, 0, 1, 0, 4], sizes = [2, 8, 1, 8, 4], strides = [1, 1, 1, 1, 1]} : vector<2x8x2x8x8xf32> to vector<2x8x1x8x4xf32>
    %9 = vector.shape_cast %8 : vector<2x8x1x8x4xf32> to vector<2x8x8x4xf32>
    %10 = arith.maximumf %7, %9 : vector<2x8x8x4xf32>
    %11 = arith.maximumf %5, %10 : vector<2x8x8x4xf32>
    %cst = arith.constant 0.000000e+00 : f32
    %12 = vector.broadcast %cst : f32 to vector<2x10x10x4xf32>
    %c0_4 = arith.constant 0 : index
    %c0_5 = arith.constant 0 : index
    %c0_6 = arith.constant 0 : index
    %c0_7 = arith.constant 0 : index
    %13 = vector.load %arg9[%c0_4, %c0_5, %c0_6, %c0_7] : memref<2x10x10x4xf32, #tpu.memory_space<vmem>>, vector<2x10x10x4xf32>
    tpu.vector_store %arg9[%c0_4, %c0_5, %c0_6, %c0_7], %12 {strides = array<i32>} : memref<2x10x10x4xf32, #tpu.memory_space<vmem>>, vector<2x10x10x4xf32>,
    %c0_8 = arith.constant 0 : index
    %c1 = arith.constant 1 : index
    %c1_9 = arith.constant 1 : index
    %c0_10 = arith.constant 0 : index
    %14 = vector.load %arg9[%c0_8, %c1, %c1_9, %c0_10] : memref<2x10x10x4xf32, #tpu.memory_space<vmem>>, vector<2x8x8x4xf32>
    tpu.vector_store %arg9[%c0_8, %c1, %c1_9, %c0_10], %11 {strides = array<i32>} : memref<2x10x10x4xf32, #tpu.memory_space<vmem>>, vector<2x8x8x4xf32>,
    %cst_11 = arith.constant 0.000000e+00 : f32
    %15 = vector.broadcast %cst_11 : f32 to vector<128x32xf32>
    %c0_12 = arith.constant 0 : index
    %c0_13 = arith.constant 0 : index
    %c0_14 = arith.constant 0 : index
    %c0_15 = arith.constant 0 : index
    %16 = vector.load %arg9[%c0_12, %c0_13, %c0_14, %c0_15] : memref<2x10x10x4xf32, #tpu.memory_space<vmem>>, vector<2x8x8x4xf32>
    %17 = vector.shape_cast %16 : vector<2x8x8x4xf32> to vector<128x4xf32>
    %18 = arith.truncf %17 : vector<128x4xf32> to vector<128x4xbf16>
    %c0_16 = arith.constant 0 : index
    %c0_17 = arith.constant 0 : index
    %c0_18 = arith.constant 0 : index
    %c0_19 = arith.constant 0 : index
    %19 = vector.load %arg2[%c0_16, %c0_17, %c0_18, %c0_19] : memref<3x3x4x32xbf16, #tpu.memory_space<vmem>>, vector<1x1x4x32xbf16>
    %20 = vector.shape_cast %19 : vector<1x1x4x32xbf16> to vector<4x32xbf16>
    %cst_20 = arith.constant dense<0.000000e+00> : vector<128x32xf32>
    %21 = tpu.matmul %18, %20, %cst_20 {dimension_numbers = #tpu.dot_dimension_numbers<[1], [0], [0], [1], [0, 0, 1, 1], [], []>} : vector<128x4xbf16>, vector<4x32xbf16>, vector<128x32xf32> -> vector<128x32xf32>
    %22 = arith.addf %15, %21 : vector<128x32xf32>
    %c0_21 = arith.constant 0 : index
    %c0_22 = arith.constant 0 : index
    %c1_23 = arith.constant 1 : index
    %c0_24 = arith.constant 0 : index
    %23 = vector.load %arg9[%c0_21, %c0_22, %c1_23, %c0_24] : memref<2x10x10x4xf32, #tpu.memory_space<vmem>>, vector<2x8x8x4xf32>
    %24 = vector.shape_cast %23 : vector<2x8x8x4xf32> to vector<128x4xf32>
    %25 = arith.truncf %24 : vector<128x4xf32> to vector<128x4xbf16>
    %c0_25 = arith.constant 0 : index
    %c1_26 = arith.constant 1 : index
    %c0_27 = arith.constant 0 : index
    %c0_28 = arith.constant 0 : index
    %26 = vector.load %arg2[%c0_25, %c1_26, %c0_27, %c0_28] : memref<3x3x4x32xbf16, #tpu.memory_space<vmem>>, vector<1x1x4x32xbf16>
    %27 = vector.shape_cast %26 : vector<1x1x4x32xbf16> to vector<4x32xbf16>
    %cst_29 = arith.constant dense<0.000000e+00> : vector<128x32xf32>
    %28 = tpu.matmul %25, %27, %cst_29 {dimension_numbers = #tpu.dot_dimension_numbers<[1], [0], [0], [1], [0, 0, 1, 1], [], []>} : vector<128x4xbf16>, vector<4x32xbf16>, vector<128x32xf32> -> vector<128x32xf32>
    %29 = arith.addf %22, %28 : vector<128x32xf32>
    %c0_30 = arith.constant 0 : index
    %c0_31 = arith.constant 0 : index
    %c2 = arith.constant 2 : index
    %c0_32 = arith.constant 0 : index
    %30 = vector.load %arg9[%c0_30, %c0_31, %c2, %c0_32] : memref<2x10x10x4xf32, #tpu.memory_space<vmem>>, vector<2x8x8x4xf32>
    %31 = vector.shape_cast %30 : vector<2x8x8x4xf32> to vector<128x4xf32>
    %32 = arith.truncf %31 : vector<128x4xf32> to vector<128x4xbf16>
    %c0_33 = arith.constant 0 : index
    %c2_34 = arith.constant 2 : index
    %c0_35 = arith.constant 0 : index
    %c0_36 = arith.constant 0 : index
    %33 = vector.load %arg2[%c0_33, %c2_34, %c0_35, %c0_36] : memref<3x3x4x32xbf16, #tpu.memory_space<vmem>>, vector<1x1x4x32xbf16>
    %34 = vector.shape_cast %33 : vector<1x1x4x32xbf16> to vector<4x32xbf16>
    %cst_37 = arith.constant dense<0.000000e+00> : vector<128x32xf32>
    %35 = tpu.matmul %32, %34, %cst_37 {dimension_numbers = #tpu.dot_dimension_numbers<[1], [0], [0], [1], [0, 0, 1, 1], [], []>} : vector<128x4xbf16>, vector<4x32xbf16>, vector<128x32xf32> -> vector<128x32xf32>
    %36 = arith.addf %29, %35 : vector<128x32xf32>
    %c0_38 = arith.constant 0 : index
    %c1_39 = arith.constant 1 : index
    %c0_40 = arith.constant 0 : index
    %c0_41 = arith.constant 0 : index
    %37 = vector.load %arg9[%c0_38, %c1_39, %c0_40, %c0_41] : memref<2x10x10x4xf32, #tpu.memory_space<vmem>>, vector<2x8x8x4xf32>
    %38 = vector.shape_cast %37 : vector<2x8x8x4xf32> to vector<128x4xf32>
    %39 = arith.truncf %38 : vector<128x4xf32> to vector<128x4xbf16>
    %c1_42 = arith.constant 1 : index
    %c0_43 = arith.constant 0 : index
    %c0_44 = arith.constant 0 : index
    %c0_45 = arith.constant 0 : index
    %40 = vector.load %arg2[%c1_42, %c0_43, %c0_44, %c0_45] : memref<3x3x4x32xbf16, #tpu.memory_space<vmem>>, vector<1x1x4x32xbf16>
    %41 = vector.shape_cast %40 : vector<1x1x4x32xbf16> to vector<4x32xbf16>
    %cst_46 = arith.constant dense<0.000000e+00> : vector<128x32xf32>
    %42 = tpu.matmul %39, %41, %cst_46 {dimension_numbers = #tpu.dot_dimension_numbers<[1], [0], [0], [1], [0, 0, 1, 1], [], []>} : vector<128x4xbf16>, vector<4x32xbf16>, vector<128x32xf32> -> vector<128x32xf32>
    %43 = arith.addf %36, %42 : vector<128x32xf32>
    %c0_47 = arith.constant 0 : index
    %c1_48 = arith.constant 1 : index
    %c1_49 = arith.constant 1 : index
    %c0_50 = arith.constant 0 : index
    %44 = vector.load %arg9[%c0_47, %c1_48, %c1_49, %c0_50] : memref<2x10x10x4xf32, #tpu.memory_space<vmem>>, vector<2x8x8x4xf32>
    %45 = vector.shape_cast %44 : vector<2x8x8x4xf32> to vector<128x4xf32>
    %46 = arith.truncf %45 : vector<128x4xf32> to vector<128x4xbf16>
    %c1_51 = arith.constant 1 : index
    %c1_52 = arith.constant 1 : index
    %c0_53 = arith.constant 0 : index
    %c0_54 = arith.constant 0 : index
    %47 = vector.load %arg2[%c1_51, %c1_52, %c0_53, %c0_54] : memref<3x3x4x32xbf16, #tpu.memory_space<vmem>>, vector<1x1x4x32xbf16>
    %48 = vector.shape_cast %47 : vector<1x1x4x32xbf16> to vector<4x32xbf16>
    %cst_55 = arith.constant dense<0.000000e+00> : vector<128x32xf32>
    %49 = tpu.matmul %46, %48, %cst_55 {dimension_numbers = #tpu.dot_dimension_numbers<[1], [0], [0], [1], [0, 0, 1, 1], [], []>} : vector<128x4xbf16>, vector<4x32xbf16>, vector<128x32xf32> -> vector<128x32xf32>
    %50 = arith.addf %43, %49 : vector<128x32xf32>
    %c0_56 = arith.constant 0 : index
    %c1_57 = arith.constant 1 : index
    %c2_58 = arith.constant 2 : index
    %c0_59 = arith.constant 0 : index
    %51 = vector.load %arg9[%c0_56, %c1_57, %c2_58, %c0_59] : memref<2x10x10x4xf32, #tpu.memory_space<vmem>>, vector<2x8x8x4xf32>
    %52 = vector.shape_cast %51 : vector<2x8x8x4xf32> to vector<128x4xf32>
    %53 = arith.truncf %52 : vector<128x4xf32> to vector<128x4xbf16>
    %c1_60 = arith.constant 1 : index
    %c2_61 = arith.constant 2 : index
    %c0_62 = arith.constant 0 : index
    %c0_63 = arith.constant 0 : index
    %54 = vector.load %arg2[%c1_60, %c2_61, %c0_62, %c0_63] : memref<3x3x4x32xbf16, #tpu.memory_space<vmem>>, vector<1x1x4x32xbf16>
    %55 = vector.shape_cast %54 : vector<1x1x4x32xbf16> to vector<4x32xbf16>
    %cst_64 = arith.constant dense<0.000000e+00> : vector<128x32xf32>
    %56 = tpu.matmul %53, %55, %cst_64 {dimension_numbers = #tpu.dot_dimension_numbers<[1], [0], [0], [1], [0, 0, 1, 1], [], []>} : vector<128x4xbf16>, vector<4x32xbf16>, vector<128x32xf32> -> vector<128x32xf32>
    %57 = arith.addf %50, %56 : vector<128x32xf32>
    %c0_65 = arith.constant 0 : index
    %c2_66 = arith.constant 2 : index
    %c0_67 = arith.constant 0 : index
    %c0_68 = arith.constant 0 : index
    %58 = vector.load %arg9[%c0_65, %c2_66, %c0_67, %c0_68] : memref<2x10x10x4xf32, #tpu.memory_space<vmem>>, vector<2x8x8x4xf32>
    %59 = vector.shape_cast %58 : vector<2x8x8x4xf32> to vector<128x4xf32>
    %60 = arith.truncf %59 : vector<128x4xf32> to vector<128x4xbf16>
    %c2_69 = arith.constant 2 : index
    %c0_70 = arith.constant 0 : index
    %c0_71 = arith.constant 0 : index
    %c0_72 = arith.constant 0 : index
    %61 = vector.load %arg2[%c2_69, %c0_70, %c0_71, %c0_72] : memref<3x3x4x32xbf16, #tpu.memory_space<vmem>>, vector<1x1x4x32xbf16>
    %62 = vector.shape_cast %61 : vector<1x1x4x32xbf16> to vector<4x32xbf16>
    %cst_73 = arith.constant dense<0.000000e+00> : vector<128x32xf32>
    %63 = tpu.matmul %60, %62, %cst_73 {dimension_numbers = #tpu.dot_dimension_numbers<[1], [0], [0], [1], [0, 0, 1, 1], [], []>} : vector<128x4xbf16>, vector<4x32xbf16>, vector<128x32xf32> -> vector<128x32xf32>
    %64 = arith.addf %57, %63 : vector<128x32xf32>
    %c0_74 = arith.constant 0 : index
    %c2_75 = arith.constant 2 : index
    %c1_76 = arith.constant 1 : index
    %c0_77 = arith.constant 0 : index
    %65 = vector.load %arg9[%c0_74, %c2_75, %c1_76, %c0_77] : memref<2x10x10x4xf32, #tpu.memory_space<vmem>>, vector<2x8x8x4xf32>
    %66 = vector.shape_cast %65 : vector<2x8x8x4xf32> to vector<128x4xf32>
    %67 = arith.truncf %66 : vector<128x4xf32> to vector<128x4xbf16>
    %c2_78 = arith.constant 2 : index
    %c1_79 = arith.constant 1 : index
    %c0_80 = arith.constant 0 : index
    %c0_81 = arith.constant 0 : index
    %68 = vector.load %arg2[%c2_78, %c1_79, %c0_80, %c0_81] : memref<3x3x4x32xbf16, #tpu.memory_space<vmem>>, vector<1x1x4x32xbf16>
    %69 = vector.shape_cast %68 : vector<1x1x4x32xbf16> to vector<4x32xbf16>
    %cst_82 = arith.constant dense<0.000000e+00> : vector<128x32xf32>
    %70 = tpu.matmul %67, %69, %cst_82 {dimension_numbers = #tpu.dot_dimension_numbers<[1], [0], [0], [1], [0, 0, 1, 1], [], []>} : vector<128x4xbf16>, vector<4x32xbf16>, vector<128x32xf32> -> vector<128x32xf32>
    %71 = arith.addf %64, %70 : vector<128x32xf32>
    %c0_83 = arith.constant 0 : index
    %c2_84 = arith.constant 2 : index
    %c2_85 = arith.constant 2 : index
    %c0_86 = arith.constant 0 : index
    %72 = vector.load %arg9[%c0_83, %c2_84, %c2_85, %c0_86] : memref<2x10x10x4xf32, #tpu.memory_space<vmem>>, vector<2x8x8x4xf32>
    %73 = vector.shape_cast %72 : vector<2x8x8x4xf32> to vector<128x4xf32>
    %74 = arith.truncf %73 : vector<128x4xf32> to vector<128x4xbf16>
    %c2_87 = arith.constant 2 : index
    %c2_88 = arith.constant 2 : index
    %c0_89 = arith.constant 0 : index
    %c0_90 = arith.constant 0 : index
    %75 = vector.load %arg2[%c2_87, %c2_88, %c0_89, %c0_90] : memref<3x3x4x32xbf16, #tpu.memory_space<vmem>>, vector<1x1x4x32xbf16>
    %76 = vector.shape_cast %75 : vector<1x1x4x32xbf16> to vector<4x32xbf16>
    %cst_91 = arith.constant dense<0.000000e+00> : vector<128x32xf32>
    %77 = tpu.matmul %74, %76, %cst_91 {dimension_numbers = #tpu.dot_dimension_numbers<[1], [0], [0], [1], [0, 0, 1, 1], [], []>} : vector<128x4xbf16>, vector<4x32xbf16>, vector<128x32xf32> -> vector<128x32xf32>
    %78 = arith.addf %71, %77 : vector<128x32xf32>
    %c0_92 = arith.constant 0 : index
    %c0_93 = arith.constant 0 : index
    %79 = vector.load %arg3[%c0_92, %c0_93] : memref<1x32xf32, #tpu.memory_space<vmem>>, vector<1x32xf32>
    %80 = vector.broadcast %79 : vector<1x32xf32> to vector<128x32xf32>
    %81 = arith.mulf %78, %80 : vector<128x32xf32>
    %c0_94 = arith.constant 0 : index
    %c0_95 = arith.constant 0 : index
    %82 = vector.load %arg4[%c0_94, %c0_95] : memref<1x32xf32, #tpu.memory_space<vmem>>, vector<1x32xf32>
    %83 = vector.broadcast %82 : vector<1x32xf32> to vector<128x32xf32>
    %84 = arith.addf %81, %83 : vector<128x32xf32>
    %cst_96 = arith.constant 0.000000e+00 : f32
    %85 = vector.broadcast %cst_96 : f32 to vector<128x32xf32>
    %86 = arith.maximumf %84, %85 : vector<128x32xf32>
    %cst_97 = arith.constant 0.000000e+00 : f32
    %87 = vector.broadcast %cst_97 : f32 to vector<2x10x10x32xf32>
    %c0_98 = arith.constant 0 : index
    %c0_99 = arith.constant 0 : index
    %c0_100 = arith.constant 0 : index
    %c0_101 = arith.constant 0 : index
    %88 = vector.load %arg10[%c0_98, %c0_99, %c0_100, %c0_101] : memref<2x10x10x32xf32, #tpu.memory_space<vmem>>, vector<2x10x10x32xf32>
    tpu.vector_store %arg10[%c0_98, %c0_99, %c0_100, %c0_101], %87 {strides = array<i32>} : memref<2x10x10x32xf32, #tpu.memory_space<vmem>>, vector<2x10x10x32xf32>,
    %89 = vector.shape_cast %86 : vector<128x32xf32> to vector<2x8x8x32xf32>
    %c0_102 = arith.constant 0 : index
    %c1_103 = arith.constant 1 : index
    %c1_104 = arith.constant 1 : index
    %c0_105 = arith.constant 0 : index
    %90 = vector.load %arg10[%c0_102, %c1_103, %c1_104, %c0_105] : memref<2x10x10x32xf32, #tpu.memory_space<vmem>>, vector<2x8x8x32xf32>
    tpu.vector_store %arg10[%c0_102, %c1_103, %c1_104, %c0_105], %89 {strides = array<i32>} : memref<2x10x10x32xf32, #tpu.memory_space<vmem>>, vector<2x8x8x32xf32>,
    %cst_106 = arith.constant 0.000000e+00 : f32
    %91 = vector.broadcast %cst_106 : f32 to vector<128x32xf32>
    %c0_107 = arith.constant 0 : index
    %c0_108 = arith.constant 0 : index
    %c0_109 = arith.constant 0 : index
    %c0_110 = arith.constant 0 : index
    %92 = vector.load %arg10[%c0_107, %c0_108, %c0_109, %c0_110] : memref<2x10x10x32xf32, #tpu.memory_space<vmem>>, vector<2x8x8x32xf32>
    %93 = vector.shape_cast %92 : vector<2x8x8x32xf32> to vector<128x32xf32>
    %94 = arith.truncf %93 : vector<128x32xf32> to vector<128x32xbf16>
    %c0_111 = arith.constant 0 : index
    %c0_112 = arith.constant 0 : index
    %c0_113 = arith.constant 0 : index
    %c0_114 = arith.constant 0 : index
    %95 = vector.load %arg5[%c0_111, %c0_112, %c0_113, %c0_114] : memref<3x3x32x32xbf16, #tpu.memory_space<vmem>>, vector<1x1x32x32xbf16>
    %96 = vector.shape_cast %95 : vector<1x1x32x32xbf16> to vector<32x32xbf16>
    %cst_115 = arith.constant dense<0.000000e+00> : vector<128x32xf32>
    %97 = tpu.matmul %94, %96, %cst_115 {dimension_numbers = #tpu.dot_dimension_numbers<[1], [0], [0], [1], [0, 0, 1, 1], [], []>} : vector<128x32xbf16>, vector<32x32xbf16>, vector<128x32xf32> -> vector<128x32xf32>
    %98 = arith.addf %91, %97 : vector<128x32xf32>
    %c0_116 = arith.constant 0 : index
    %c0_117 = arith.constant 0 : index
    %c1_118 = arith.constant 1 : index
    %c0_119 = arith.constant 0 : index
    %99 = vector.load %arg10[%c0_116, %c0_117, %c1_118, %c0_119] : memref<2x10x10x32xf32, #tpu.memory_space<vmem>>, vector<2x8x8x32xf32>
    %100 = vector.shape_cast %99 : vector<2x8x8x32xf32> to vector<128x32xf32>
    %101 = arith.truncf %100 : vector<128x32xf32> to vector<128x32xbf16>
    %c0_120 = arith.constant 0 : index
    %c1_121 = arith.constant 1 : index
    %c0_122 = arith.constant 0 : index
    %c0_123 = arith.constant 0 : index
    %102 = vector.load %arg5[%c0_120, %c1_121, %c0_122, %c0_123] : memref<3x3x32x32xbf16, #tpu.memory_space<vmem>>, vector<1x1x32x32xbf16>
    %103 = vector.shape_cast %102 : vector<1x1x32x32xbf16> to vector<32x32xbf16>
    %cst_124 = arith.constant dense<0.000000e+00> : vector<128x32xf32>
    %104 = tpu.matmul %101, %103, %cst_124 {dimension_numbers = #tpu.dot_dimension_numbers<[1], [0], [0], [1], [0, 0, 1, 1], [], []>} : vector<128x32xbf16>, vector<32x32xbf16>, vector<128x32xf32> -> vector<128x32xf32>
    %105 = arith.addf %98, %104 : vector<128x32xf32>
    %c0_125 = arith.constant 0 : index
    %c0_126 = arith.constant 0 : index
    %c2_127 = arith.constant 2 : index
    %c0_128 = arith.constant 0 : index
    %106 = vector.load %arg10[%c0_125, %c0_126, %c2_127, %c0_128] : memref<2x10x10x32xf32, #tpu.memory_space<vmem>>, vector<2x8x8x32xf32>
    %107 = vector.shape_cast %106 : vector<2x8x8x32xf32> to vector<128x32xf32>
    %108 = arith.truncf %107 : vector<128x32xf32> to vector<128x32xbf16>
    %c0_129 = arith.constant 0 : index
    %c2_130 = arith.constant 2 : index
    %c0_131 = arith.constant 0 : index
    %c0_132 = arith.constant 0 : index
    %109 = vector.load %arg5[%c0_129, %c2_130, %c0_131, %c0_132] : memref<3x3x32x32xbf16, #tpu.memory_space<vmem>>, vector<1x1x32x32xbf16>
    %110 = vector.shape_cast %109 : vector<1x1x32x32xbf16> to vector<32x32xbf16>
    %cst_133 = arith.constant dense<0.000000e+00> : vector<128x32xf32>
    %111 = tpu.matmul %108, %110, %cst_133 {dimension_numbers = #tpu.dot_dimension_numbers<[1], [0], [0], [1], [0, 0, 1, 1], [], []>} : vector<128x32xbf16>, vector<32x32xbf16>, vector<128x32xf32> -> vector<128x32xf32>
    %112 = arith.addf %105, %111 : vector<128x32xf32>
    %c0_134 = arith.constant 0 : index
    %c1_135 = arith.constant 1 : index
    %c0_136 = arith.constant 0 : index
    %c0_137 = arith.constant 0 : index
    %113 = vector.load %arg10[%c0_134, %c1_135, %c0_136, %c0_137] : memref<2x10x10x32xf32, #tpu.memory_space<vmem>>, vector<2x8x8x32xf32>
    %114 = vector.shape_cast %113 : vector<2x8x8x32xf32> to vector<128x32xf32>
    %115 = arith.truncf %114 : vector<128x32xf32> to vector<128x32xbf16>
    %c1_138 = arith.constant 1 : index
    %c0_139 = arith.constant 0 : index
    %c0_140 = arith.constant 0 : index
    %c0_141 = arith.constant 0 : index
    %116 = vector.load %arg5[%c1_138, %c0_139, %c0_140, %c0_141] : memref<3x3x32x32xbf16, #tpu.memory_space<vmem>>, vector<1x1x32x32xbf16>
    %117 = vector.shape_cast %116 : vector<1x1x32x32xbf16> to vector<32x32xbf16>
    %cst_142 = arith.constant dense<0.000000e+00> : vector<128x32xf32>
    %118 = tpu.matmul %115, %117, %cst_142 {dimension_numbers = #tpu.dot_dimension_numbers<[1], [0], [0], [1], [0, 0, 1, 1], [], []>} : vector<128x32xbf16>, vector<32x32xbf16>, vector<128x32xf32> -> vector<128x32xf32>
    %119 = arith.addf %112, %118 : vector<128x32xf32>
    %c0_143 = arith.constant 0 : index
    %c1_144 = arith.constant 1 : index
    %c1_145 = arith.constant 1 : index
    %c0_146 = arith.constant 0 : index
    %120 = vector.load %arg10[%c0_143, %c1_144, %c1_145, %c0_146] : memref<2x10x10x32xf32, #tpu.memory_space<vmem>>, vector<2x8x8x32xf32>
    %121 = vector.shape_cast %120 : vector<2x8x8x32xf32> to vector<128x32xf32>
    %122 = arith.truncf %121 : vector<128x32xf32> to vector<128x32xbf16>
    %c1_147 = arith.constant 1 : index
    %c1_148 = arith.constant 1 : index
    %c0_149 = arith.constant 0 : index
    %c0_150 = arith.constant 0 : index
    %123 = vector.load %arg5[%c1_147, %c1_148, %c0_149, %c0_150] : memref<3x3x32x32xbf16, #tpu.memory_space<vmem>>, vector<1x1x32x32xbf16>
    %124 = vector.shape_cast %123 : vector<1x1x32x32xbf16> to vector<32x32xbf16>
    %cst_151 = arith.constant dense<0.000000e+00> : vector<128x32xf32>
    %125 = tpu.matmul %122, %124, %cst_151 {dimension_numbers = #tpu.dot_dimension_numbers<[1], [0], [0], [1], [0, 0, 1, 1], [], []>} : vector<128x32xbf16>, vector<32x32xbf16>, vector<128x32xf32> -> vector<128x32xf32>
    %126 = arith.addf %119, %125 : vector<128x32xf32>
    %c0_152 = arith.constant 0 : index
    %c1_153 = arith.constant 1 : index
    %c2_154 = arith.constant 2 : index
    %c0_155 = arith.constant 0 : index
    %127 = vector.load %arg10[%c0_152, %c1_153, %c2_154, %c0_155] : memref<2x10x10x32xf32, #tpu.memory_space<vmem>>, vector<2x8x8x32xf32>
    %128 = vector.shape_cast %127 : vector<2x8x8x32xf32> to vector<128x32xf32>
    %129 = arith.truncf %128 : vector<128x32xf32> to vector<128x32xbf16>
    %c1_156 = arith.constant 1 : index
    %c2_157 = arith.constant 2 : index
    %c0_158 = arith.constant 0 : index
    %c0_159 = arith.constant 0 : index
    %130 = vector.load %arg5[%c1_156, %c2_157, %c0_158, %c0_159] : memref<3x3x32x32xbf16, #tpu.memory_space<vmem>>, vector<1x1x32x32xbf16>
    %131 = vector.shape_cast %130 : vector<1x1x32x32xbf16> to vector<32x32xbf16>
    %cst_160 = arith.constant dense<0.000000e+00> : vector<128x32xf32>
    %132 = tpu.matmul %129, %131, %cst_160 {dimension_numbers = #tpu.dot_dimension_numbers<[1], [0], [0], [1], [0, 0, 1, 1], [], []>} : vector<128x32xbf16>, vector<32x32xbf16>, vector<128x32xf32> -> vector<128x32xf32>
    %133 = arith.addf %126, %132 : vector<128x32xf32>
    %c0_161 = arith.constant 0 : index
    %c2_162 = arith.constant 2 : index
    %c0_163 = arith.constant 0 : index
    %c0_164 = arith.constant 0 : index
    %134 = vector.load %arg10[%c0_161, %c2_162, %c0_163, %c0_164] : memref<2x10x10x32xf32, #tpu.memory_space<vmem>>, vector<2x8x8x32xf32>
    %135 = vector.shape_cast %134 : vector<2x8x8x32xf32> to vector<128x32xf32>
    %136 = arith.truncf %135 : vector<128x32xf32> to vector<128x32xbf16>
    %c2_165 = arith.constant 2 : index
    %c0_166 = arith.constant 0 : index
    %c0_167 = arith.constant 0 : index
    %c0_168 = arith.constant 0 : index
    %137 = vector.load %arg5[%c2_165, %c0_166, %c0_167, %c0_168] : memref<3x3x32x32xbf16, #tpu.memory_space<vmem>>, vector<1x1x32x32xbf16>
    %138 = vector.shape_cast %137 : vector<1x1x32x32xbf16> to vector<32x32xbf16>
    %cst_169 = arith.constant dense<0.000000e+00> : vector<128x32xf32>
    %139 = tpu.matmul %136, %138, %cst_169 {dimension_numbers = #tpu.dot_dimension_numbers<[1], [0], [0], [1], [0, 0, 1, 1], [], []>} : vector<128x32xbf16>, vector<32x32xbf16>, vector<128x32xf32> -> vector<128x32xf32>
    %140 = arith.addf %133, %139 : vector<128x32xf32>
    %c0_170 = arith.constant 0 : index
    %c2_171 = arith.constant 2 : index
    %c1_172 = arith.constant 1 : index
    %c0_173 = arith.constant 0 : index
    %141 = vector.load %arg10[%c0_170, %c2_171, %c1_172, %c0_173] : memref<2x10x10x32xf32, #tpu.memory_space<vmem>>, vector<2x8x8x32xf32>
    %142 = vector.shape_cast %141 : vector<2x8x8x32xf32> to vector<128x32xf32>
    %143 = arith.truncf %142 : vector<128x32xf32> to vector<128x32xbf16>
    %c2_174 = arith.constant 2 : index
    %c1_175 = arith.constant 1 : index
    %c0_176 = arith.constant 0 : index
    %c0_177 = arith.constant 0 : index
    %144 = vector.load %arg5[%c2_174, %c1_175, %c0_176, %c0_177] : memref<3x3x32x32xbf16, #tpu.memory_space<vmem>>, vector<1x1x32x32xbf16>
    %145 = vector.shape_cast %144 : vector<1x1x32x32xbf16> to vector<32x32xbf16>
    %cst_178 = arith.constant dense<0.000000e+00> : vector<128x32xf32>
    %146 = tpu.matmul %143, %145, %cst_178 {dimension_numbers = #tpu.dot_dimension_numbers<[1], [0], [0], [1], [0, 0, 1, 1], [], []>} : vector<128x32xbf16>, vector<32x32xbf16>, vector<128x32xf32> -> vector<128x32xf32>
    %147 = arith.addf %140, %146 : vector<128x32xf32>
    %c0_179 = arith.constant 0 : index
    %c2_180 = arith.constant 2 : index
    %c2_181 = arith.constant 2 : index
    %c0_182 = arith.constant 0 : index
    %148 = vector.load %arg10[%c0_179, %c2_180, %c2_181, %c0_182] : memref<2x10x10x32xf32, #tpu.memory_space<vmem>>, vector<2x8x8x32xf32>
    %149 = vector.shape_cast %148 : vector<2x8x8x32xf32> to vector<128x32xf32>
    %150 = arith.truncf %149 : vector<128x32xf32> to vector<128x32xbf16>
    %c2_183 = arith.constant 2 : index
    %c2_184 = arith.constant 2 : index
    %c0_185 = arith.constant 0 : index
    %c0_186 = arith.constant 0 : index
    %151 = vector.load %arg5[%c2_183, %c2_184, %c0_185, %c0_186] : memref<3x3x32x32xbf16, #tpu.memory_space<vmem>>, vector<1x1x32x32xbf16>
    %152 = vector.shape_cast %151 : vector<1x1x32x32xbf16> to vector<32x32xbf16>
    %cst_187 = arith.constant dense<0.000000e+00> : vector<128x32xf32>
    %153 = tpu.matmul %150, %152, %cst_187 {dimension_numbers = #tpu.dot_dimension_numbers<[1], [0], [0], [1], [0, 0, 1, 1], [], []>} : vector<128x32xbf16>, vector<32x32xbf16>, vector<128x32xf32> -> vector<128x32xf32>
    %154 = arith.addf %147, %153 : vector<128x32xf32>
    %c0_188 = arith.constant 0 : index
    %c0_189 = arith.constant 0 : index
    %155 = vector.load %arg6[%c0_188, %c0_189] : memref<1x32xf32, #tpu.memory_space<vmem>>, vector<1x32xf32>
    %156 = vector.broadcast %155 : vector<1x32xf32> to vector<128x32xf32>
    %157 = arith.mulf %154, %156 : vector<128x32xf32>
    %c0_190 = arith.constant 0 : index
    %c0_191 = arith.constant 0 : index
    %158 = vector.load %arg7[%c0_190, %c0_191] : memref<1x32xf32, #tpu.memory_space<vmem>>, vector<1x32xf32>
    %159 = vector.broadcast %158 : vector<1x32xf32> to vector<128x32xf32>
    %160 = arith.addf %157, %159 : vector<128x32xf32>
    %cst_192 = arith.constant 0.000000e+00 : f32
    %161 = vector.broadcast %cst_192 : f32 to vector<128x32xf32>
    %162 = arith.maximumf %160, %161 : vector<128x32xf32>
    %163 = vector.shape_cast %162 : vector<128x32xf32> to vector<2x8x8x32xf32>
    %c0_193 = arith.constant 0 : index
    %c0_194 = arith.constant 0 : index
    %c0_195 = arith.constant 0 : index
    %c0_196 = arith.constant 0 : index
    %164 = vector.load %arg8[%c0_193, %c0_194, %c0_195, %c0_196] : memref<2x8x8x32xf32, #tpu.memory_space<vmem>>, vector<2x8x8x32xf32>
    tpu.vector_store %arg8[%c0_193, %c0_194, %c0_195, %c0_196], %163 {strides = array<i32>} : memref<2x8x8x32xf32, #tpu.memory_space<vmem>>, vector<2x8x8x32xf32>,
    return
  }
  func.func @transform_0(%arg0: i32) -> (i32, i32, i32, i32, i32) {
    %c0_i32 = arith.constant 0 : i32
    %c0_i32_0 = arith.constant 0 : i32
    %c0_i32_1 = arith.constant 0 : i32
    %c0_i32_2 = arith.constant 0 : i32
    %c0_i32_3 = arith.constant 0 : i32
    return %arg0, %c0_i32, %c0_i32_0, %c0_i32_1, %c0_i32_2 : i32, i32, i32, i32, i32
  }
  func.func @transform_1(%arg0: i32) -> (i32, i32, i32, i32) {
    %c0_i32 = arith.constant 0 : i32
    %c0_i32_0 = arith.constant 0 : i32
    %c0_i32_1 = arith.constant 0 : i32
    %c0_i32_2 = arith.constant 0 : i32
    %c0_i32_3 = arith.constant 0 : i32
    return %c0_i32, %c0_i32_0, %c0_i32_1, %c0_i32_2 : i32, i32, i32, i32
  }
  func.func @transform_2(%arg0: i32) -> (i32, i32) {
    %c0_i32 = arith.constant 0 : i32
    %c0_i32_0 = arith.constant 0 : i32
    %c0_i32_1 = arith.constant 0 : i32
    return %c0_i32, %c0_i32_0 : i32, i32
  }
  func.func @transform_3(%arg0: i32) -> (i32, i32) {
    %c0_i32 = arith.constant 0 : i32
    %c0_i32_0 = arith.constant 0 : i32
    %c0_i32_1 = arith.constant 0 : i32
    return %c0_i32, %c0_i32_0 : i32, i32
  }
  func.func @transform_4(%arg0: i32) -> (i32, i32, i32, i32) {
    %c0_i32 = arith.constant 0 : i32
    %c0_i32_0 = arith.constant 0 : i32
    %c0_i32_1 = arith.constant 0 : i32
    %c0_i32_2 = arith.constant 0 : i32
    %c0_i32_3 = arith.constant 0 : i32
    return %c0_i32, %c0_i32_0, %c0_i32_1, %c0_i32_2 : i32, i32, i32, i32
  }
  func.func @transform_5(%arg0: i32) -> (i32, i32) {
    %c0_i32 = arith.constant 0 : i32
    %c0_i32_0 = arith.constant 0 : i32
    %c0_i32_1 = arith.constant 0 : i32
    return %c0_i32, %c0_i32_0 : i32, i32
  }
  func.func @transform_6(%arg0: i32) -> (i32, i32) {
    %c0_i32 = arith.constant 0 : i32
    %c0_i32_0 = arith.constant 0 : i32
    %c0_i32_1 = arith.constant 0 : i32
    return %c0_i32, %c0_i32_0 : i32, i32
  }
  func.func @transform_7(%arg0: i32) -> (i32, i32, i32, i32) {
    %c0_i32 = arith.constant 0 : i32
    %c0_i32_0 = arith.constant 0 : i32
    %c0_i32_1 = arith.constant 0 : i32
    %c0_i32_2 = arith.constant 0 : i32
    return %arg0, %c0_i32, %c0_i32_0, %c0_i32_1 : i32, i32, i32, i32
  }
}

</mosaic_0001>

<llo_original>
// kernel: downconv_forward.1
$region0: #{downconv_forward.1}
  #allocation0 [shape = 'u32[]', space=smem, size = 0x4, offset = 0x4, fixed_abs, tag = 'smem constant byte address 0x4 - core index']
  #allocation1 [shape = 'u32[144,128]{1,0:T(1,128)}', space=vmem, size = 0x12000, scoped, tag = 'internal scratch']
  #allocation2 [shape = 'f32[2,10,10,4]{3,2,1,0:T(8,128)}', space=vmem, size = 0x28000, scoped, tag = 'scratch operand']
  #allocation3 [shape = 'f32[2,10,10,32]{3,2,1,0:T(8,128)}', space=vmem, size = 0x28000, scoped, tag = 'scratch operand']
  %s0 = inlined_call_operand.vmem [shape: f32[2,8,2,8,8], index: 0, kind: input, shape index: {}]
  %s1 = inlined_call_operand.vmem [shape: bf16[3,3,4,32], index: 1, kind: input, shape index: {}]
  %s2 = inlined_call_operand.vmem [shape: f32[1,32], index: 2, kind: input, shape index: {}]
  %s3 = inlined_call_operand.vmem [shape: f32[1,32], index: 3, kind: input, shape index: {}]
  %s4 = inlined_call_operand.vmem [shape: bf16[3,3,32,32], index: 4, kind: input, shape index: {}]
  %s5 = inlined_call_operand.vmem [shape: f32[1,32], index: 5, kind: input, shape index: {}]
  %s6 = inlined_call_operand.vmem [shape: f32[1,32], index: 6, kind: input, shape index: {}]
  %s7 = inlined_call_operand.hbm [shape: f32[2,8,8,32], index: 7, kind: output, shape index: {}]
  %s8 = sld [smem:[#allocation0]]
  $region38: #{downconv_forward.1} parent=0
    _
  %s10 = ssub.s32 1, %s8
  %s11 = scalar_select 0, %s10, %s8
  $region1: #{downconv_forward.1} parent=0
    #allocation4 [shape = 'u8[65536]{0}', space=vmem, size = 0x10000, scoped, tag = 'output window, operand 0, single buffered']
    #allocation5 [shape = 's32[1]{0}', space=sflag, size = 0x4, scoped, tag = 'scoped memory for downconv_forward.1']
    %12 = vsyncpa [#allocation5], 0
    // Predicated region
    $region2: #{downconv_forward.1} parent=1 // pred_check
      _
    $region3: #{downconv_forward.1} parent=1 // pred_check_branch
      %14 = sbr.rel (0) target = $region5
    $region4: #{downconv_forward.1} parent=1 // pred_region
      _
    $region5: #{downconv_forward.1} parent=1 // pred_fallthru
      _
    // Predicated region
    $region6: #{downconv_forward.1} parent=1 // pred_check
      _
    $region7: #{downconv_forward.1} parent=1 // pred_check_branch
      %16 = sbr.rel (0) target = $region9
    $region8: #{downconv_forward.1} parent=1 // pred_region
      _
    $region9: #{downconv_forward.1} parent=1 // pred_fallthru
      _
    // Predicated region
    $region10: #{downconv_forward.1} parent=1 // pred_check
      _
    $region11: #{downconv_forward.1} parent=1 // pred_check_branch
      %18 = sbr.rel (0) target = $region13
    $region12: #{downconv_forward.1} parent=1 // pred_region
      _
    $region13: #{downconv_forward.1} parent=1 // pred_fallthru
      _
    // Predicated region
    $region14: #{downconv_forward.1} parent=1 // pred_check
      _
    $region15: #{downconv_forward.1} parent=1 // pred_check_branch
      %20 = sbr.rel (0) target = $region17
    $region16: #{downconv_forward.1} parent=1 // pred_region
      _
    $region17: #{downconv_forward.1} parent=1 // pred_fallthru
      _
    // Predicated region
    $region18: #{downconv_forward.1} parent=1 // pred_check
      _
    $region19: #{downconv_forward.1} parent=1 // pred_check_branch
      %22 = sbr.rel (0) target = $region21
    $region20: #{downconv_forward.1} parent=1 // pred_region
      _
    $region21: #{downconv_forward.1} parent=1 // pred_fallthru
      _
    // Predicated region
    $region22: #{downconv_forward.1} parent=1 // pred_check
      _
    $region23: #{downconv_forward.1} parent=1 // pred_check_branch
      %24 = sbr.rel (0) target = $region25
    $region24: #{downconv_forward.1} parent=1 // pred_region
      _
    $region25: #{downconv_forward.1} parent=1 // pred_fallthru
      _
    // Predicated region
    $region26: #{downconv_forward.1} parent=1 // pred_check
      _
    $region27: #{downconv_forward.1} parent=1 // pred_check_branch
      %26 = sbr.rel (0) target = $region29
    $region28: #{downconv_forward.1} parent=1 // pred_region
      _
    $region29: #{downconv_forward.1} parent=1 // pred_fallthru
      _
    %v28 = vld [vmem:[%s0] sm:$0xff]
    %v29 = vld [vmem:[%s0 + $0x8] sm:$0xff]
    %v30 = vld [vmem:[%s0 + $0x10] sm:$0xff]
    %v31 = vld [vmem:[%s0 + $0x18] sm:$0xff]
    %v32 = vld [vmem:[%s0 + $0x20] sm:$0xff]
    %v33 = vld [vmem:[%s0 + $0x28] sm:$0xff]
    %v34 = vld [vmem:[%s0 + $0x30] sm:$0xff]
    %v35 = vld [vmem:[%s0 + $0x38] sm:$0xff]
    %v36 = vld [vmem:[%s0 + $0x40] sm:$0xff]
    %v37 = vld [vmem:[%s0 + $0x48] sm:$0xff]
    %v38 = vld [vmem:[%s0 + $0x50] sm:$0xff]
    %v39 = vld [vmem:[%s0 + $0x58] sm:$0xff]
    %v40 = vld [vmem:[%s0 + $0x60] sm:$0xff]
    %v41 = vld [vmem:[%s0 + $0x68] sm:$0xff]
    %v42 = vld [vmem:[%s0 + $0x70] sm:$0xff]
    %v43 = vld [vmem:[%s0 + $0x78] sm:$0xff]
    %v44 = vld [vmem:[%s0 + $0x80] sm:$0xff]
    %v45 = vld [vmem:[%s0 + $0x88] sm:$0xff]
    %v46 = vld [vmem:[%s0 + $0x90] sm:$0xff]
    %v47 = vld [vmem:[%s0 + $0x98] sm:$0xff]
    %v48 = vld [vmem:[%s0 + $0xa0] sm:$0xff]
    %v49 = vld [vmem:[%s0 + $0xa8] sm:$0xff]
    %v50 = vld [vmem:[%s0 + $0xb0] sm:$0xff]
    %v51 = vld [vmem:[%s0 + $0xb8] sm:$0xff]
    %v52 = vld [vmem:[%s0 + $0xc0] sm:$0xff]
    %v53 = vld [vmem:[%s0 + $0xc8] sm:$0xff]
    %v54 = vld [vmem:[%s0 + $0xd0] sm:$0xff]
    %v55 = vld [vmem:[%s0 + $0xd8] sm:$0xff]
    %v56 = vld [vmem:[%s0 + $0xe0] sm:$0xff]
    %v57 = vld [vmem:[%s0 + $0xe8] sm:$0xff]
    %v58 = vld [vmem:[%s0 + $0xf0] sm:$0xff]
    %v59 = vld [vmem:[%s0 + $0xf8] sm:$0xff]
    %76 = vrot.lane.b32.xlu0 %v28, 124
    %v77 = vpop.permute.xlu0 %76
    %78 = vrot.lane.b32.xlu0 %v30, 124
    %v79 = vpop.permute.xlu0 %78
    %80 = vrot.lane.b32.xlu0 %v32, 124
    %v81 = vpop.permute.xlu0 %80
    %82 = vrot.lane.b32.xlu0 %v34, 124
    %v83 = vpop.permute.xlu0 %82
    %84 = vrot.lane.b32.xlu0 %v36, 124
    %v85 = vpop.permute.xlu0 %84
    %86 = vrot.lane.b32.xlu0 %v38, 124
    %v87 = vpop.permute.xlu0 %86
    %88 = vrot.lane.b32.xlu0 %v40, 124
    %v89 = vpop.permute.xlu0 %88
    %90 = vrot.lane.b32.xlu0 %v42, 124
    %v91 = vpop.permute.xlu0 %90
    %92 = vrot.lane.b32.xlu0 %v44, 124
    %v93 = vpop.permute.xlu0 %92
    %94 = vrot.lane.b32.xlu0 %v46, 124
    %v95 = vpop.permute.xlu0 %94
    %96 = vrot.lane.b32.xlu0 %v48, 124
    %v97 = vpop.permute.xlu0 %96
    %98 = vrot.lane.b32.xlu0 %v50, 124
    %v99 = vpop.permute.xlu0 %98
    %100 = vrot.lane.b32.xlu0 %v52, 124
    %v101 = vpop.permute.xlu0 %100
    %102 = vrot.lane.b32.xlu0 %v54, 124
    %v103 = vpop.permute.xlu0 %102
    %104 = vrot.lane.b32.xlu0 %v56, 124
    %v105 = vpop.permute.xlu0 %104
    %106 = vrot.lane.b32.xlu0 %v58, 124
    %v107 = vpop.permute.xlu0 %106
    %v124 = vmax.f32 %v28, %v77
    %v125 = vmax.f32 %v30, %v79
    %v126 = vmax.f32 %v32, %v81
    %v127 = vmax.f32 %v34, %v83
    %v128 = vmax.f32 %v36, %v85
    %v129 = vmax.f32 %v38, %v87
    %v130 = vmax.f32 %v40, %v89
    %v131 = vmax.f32 %v42, %v91
    %v132 = vmax.f32 %v44, %v93
    %v133 = vmax.f32 %v46, %v95
    %v134 = vmax.f32 %v48, %v97
    %v135 = vmax.f32 %v50, %v99
    %v136 = vmax.f32 %v52, %v101
    %v137 = vmax.f32 %v54, %v103
    %v138 = vmax.f32 %v56, %v105
    %v139 = vmax.f32 %v58, %v107
    %156 = vrot.lane.b32.xlu0 %v29, 124
    %v157 = vpop.permute.xlu0 %156
    %158 = vrot.lane.b32.xlu0 %v31, 124
    %v159 = vpop.permute.xlu0 %158
    %160 = vrot.lane.b32.xlu0 %v33, 124
    %v161 = vpop.permute.xlu0 %160
    %162 = vrot.lane.b32.xlu0 %v35, 124
    %v163 = vpop.permute.xlu0 %162
    %164 = vrot.lane.b32.xlu0 %v37, 124
    %v165 = vpop.permute.xlu0 %164
    %166 = vrot.lane.b32.xlu0 %v39, 124
    %v167 = vpop.permute.xlu0 %166
    %168 = vrot.lane.b32.xlu0 %v41, 124
    %v169 = vpop.permute.xlu0 %168
    %170 = vrot.lane.b32.xlu0 %v43, 124
    %v171 = vpop.permute.xlu0 %170
    %172 = vrot.lane.b32.xlu0 %v45, 124
    %v173 = vpop.permute.xlu0 %172
    %174 = vrot.lane.b32.xlu0 %v47, 124
    %v175 = vpop.permute.xlu0 %174
    %176 = vrot.lane.b32.xlu0 %v49, 124
    %v177 = vpop.permute.xlu0 %176
    %178 = vrot.lane.b32.xlu0 %v51, 124
    %v179 = vpop.permute.xlu0 %178
    %180 = vrot.lane.b32.xlu0 %v53, 124
    %v181 = vpop.permute.xlu0 %180
    %182 = vrot.lane.b32.xlu0 %v55, 124
    %v183 = vpop.permute.xlu0 %182
    %184 = vrot.lane.b32.xlu0 %v57, 124
    %v185 = vpop.permute.xlu0 %184
    %186 = vrot.lane.b32.xlu0 %v59, 124
    %v187 = vpop.permute.xlu0 %186
    %v204 = vmax.f32 %v29, %v157
    %v205 = vmax.f32 %v31, %v159
    %v206 = vmax.f32 %v33, %v161
    %v207 = vmax.f32 %v35, %v163
    %v208 = vmax.f32 %v37, %v165
    %v209 = vmax.f32 %v39, %v167
    %v210 = vmax.f32 %v41, %v169
    %v211 = vmax.f32 %v43, %v171
    %v212 = vmax.f32 %v45, %v173
    %v213 = vmax.f32 %v47, %v175
    %v214 = vmax.f32 %v49, %v177
    %v215 = vmax.f32 %v51, %v179
    %v216 = vmax.f32 %v53, %v181
    %v217 = vmax.f32 %v55, %v183
    %v218 = vmax.f32 %v57, %v185
    %v219 = vmax.f32 %v59, %v187
    %v220 = vmax.f32 %v124, %v204
    %v221 = vmax.f32 %v125, %v205
    %v222 = vmax.f32 %v126, %v206
    %v223 = vmax.f32 %v127, %v207
    %v224 = vmax.f32 %v128, %v208
    %v225 = vmax.f32 %v129, %v209
    %v226 = vmax.f32 %v130, %v210
    %v227 = vmax.f32 %v131, %v211
    %v228 = vmax.f32 %v132, %v212
    %v229 = vmax.f32 %v133, %v213
    %v230 = vmax.f32 %v134, %v214
    %v231 = vmax.f32 %v135, %v215
    %v232 = vmax.f32 %v136, %v216
    %v233 = vmax.f32 %v137, %v217
    %v234 = vmax.f32 %v138, %v218
    %v235 = vmax.f32 %v139, %v219
    %vm236 = vcmask 31744
    %237 = vst.msk [vmem:[#allocation2] sm:$0xff] %vm236, 0.0
    %vm238 = vcmask 25600
    %239 = vst.msk [vmem:[#allocation2 + $0x8] sm:$0x3] %vm238, 0.0
    %240 = vst.msk [vmem:[#allocation2 + $0x10] sm:$0xff] %vm236, 0.0
    %241 = vst.msk [vmem:[#allocation2 + $0x18] sm:$0x3] %vm238, 0.0
    %242 = vst.msk [vmem:[#allocation2 + $0x20] sm:$0xff] %vm236, 0.0
    %243 = vst.msk [vmem:[#allocation2 + $0x28] sm:$0x3] %vm238, 0.0
    %244 = vst.msk [vmem:[#allocation2 + $0x30] sm:$0xff] %vm236, 0.0
    %245 = vst.msk [vmem:[#allocation2 + $0x38] sm:$0x3] %vm238, 0.0
    %246 = vst.msk [vmem:[#allocation2 + $0x40] sm:$0xff] %vm236, 0.0
    %247 = vst.msk [vmem:[#allocation2 + $0x48] sm:$0x3] %vm238, 0.0
    %248 = vst.msk [vmem:[#allocation2 + $0x50] sm:$0xff] %vm236, 0.0
    %249 = vst.msk [vmem:[#allocation2 + $0x58] sm:$0x3] %vm238, 0.0
    %250 = vst.msk [vmem:[#allocation2 + $0x60] sm:$0xff] %vm236, 0.0
    %251 = vst.msk [vmem:[#allocation2 + $0x68] sm:$0x3] %vm238, 0.0
    %252 = vst.msk [vmem:[#allocation2 + $0x70] sm:$0xff] %vm236, 0.0
    %253 = vst.msk [vmem:[#allocation2 + $0x78] sm:$0x3] %vm238, 0.0
    %254 = vst.msk [vmem:[#allocation2 + $0x80] sm:$0xff] %vm236, 0.0
    %255 = vst.msk [vmem:[#allocation2 + $0x88] sm:$0x3] %vm238, 0.0
    %256 = vst.msk [vmem:[#allocation2 + $0x90] sm:$0xff] %vm236, 0.0
    %257 = vst.msk [vmem:[#allocation2 + $0x98] sm:$0x3] %vm238, 0.0
    %258 = vst.msk [vmem:[#allocation2 + $0xa0] sm:$0xff] %vm236, 0.0
    %259 = vst.msk [vmem:[#allocation2 + $0xa8] sm:$0x3] %vm238, 0.0
    %260 = vst.msk [vmem:[#allocation2 + $0xb0] sm:$0xff] %vm236, 0.0
    %261 = vst.msk [vmem:[#allocation2 + $0xb8] sm:$0x3] %vm238, 0.0
    %262 = vst.msk [vmem:[#allocation2 + $0xc0] sm:$0xff] %vm236, 0.0
    %263 = vst.msk [vmem:[#allocation2 + $0xc8] sm:$0x3] %vm238, 0.0
    %264 = vst.msk [vmem:[#allocation2 + $0xd0] sm:$0xff] %vm236, 0.0
    %265 = vst.msk [vmem:[#allocation2 + $0xd8] sm:$0x3] %vm238, 0.0
    %266 = vst.msk [vmem:[#allocation2 + $0xe0] sm:$0xff] %vm236, 0.0
    %267 = vst.msk [vmem:[#allocation2 + $0xe8] sm:$0x3] %vm238, 0.0
    %268 = vst.msk [vmem:[#allocation2 + $0xf0] sm:$0xff] %vm236, 0.0
    %269 = vst.msk [vmem:[#allocation2 + $0xf8] sm:$0x3] %vm238, 0.0
    %270 = vst.msk [vmem:[#allocation2 + $0x100] sm:$0xff] %vm236, 0.0
    %271 = vst.msk [vmem:[#allocation2 + $0x108] sm:$0x3] %vm238, 0.0
    %272 = vst.msk [vmem:[#allocation2 + $0x110] sm:$0xff] %vm236, 0.0
    %273 = vst.msk [vmem:[#allocation2 + $0x118] sm:$0x3] %vm238, 0.0
    %274 = vst.msk [vmem:[#allocation2 + $0x120] sm:$0xff] %vm236, 0.0
    %275 = vst.msk [vmem:[#allocation2 + $0x128] sm:$0x3] %vm238, 0.0
    %276 = vst.msk [vmem:[#allocation2 + $0x130] sm:$0xff] %vm236, 0.0
    %277 = vst.msk [vmem:[#allocation2 + $0x138] sm:$0x3] %vm238, 0.0
    %s278 = scalar_lea.vmem [#allocation2], 16
    %279 = vst.msk [vmem:[%s278 + $0x1] sm:$0xff] %vm236, %v220
    %280 = vst.msk [vmem:[%s278 + $0x11] sm:$0xff] %vm236, %v221
    %281 = vst.msk [vmem:[%s278 + $0x21] sm:$0xff] %vm236, %v222
    %282 = vst.msk [vmem:[%s278 + $0x31] sm:$0xff] %vm236, %v223
    %283 = vst.msk [vmem:[%s278 + $0x41] sm:$0xff] %vm236, %v224
    %284 = vst.msk [vmem:[%s278 + $0x51] sm:$0xff] %vm236, %v225
    %285 = vst.msk [vmem:[%s278 + $0x61] sm:$0xff] %vm236, %v226
    %286 = vst.msk [vmem:[%s278 + $0x71] sm:$0xff] %vm236, %v227
    %287 = vst.msk [vmem:[%s278 + $0xa1] sm:$0xff] %vm236, %v228
    %288 = vst.msk [vmem:[%s278 + $0xb1] sm:$0xff] %vm236, %v229
    %289 = vst.msk [vmem:[%s278 + $0xc1] sm:$0xff] %vm236, %v230
    %290 = vst.msk [vmem:[%s278 + $0xd1] sm:$0xff] %vm236, %v231
    %291 = vst.msk [vmem:[%s278 + $0xe1] sm:$0xff] %vm236, %v232
    %292 = vst.msk [vmem:[%s278 + $0xf1] sm:$0xff] %vm236, %v233
    %293 = vst.msk [vmem:[%s278 + $0x101] sm:$0xff] %vm236, %v234
    %294 = vst.msk [vmem:[%s278 + $0x111] sm:$0xff] %vm236, %v235
    %v295 = vld [vmem:[#allocation2] sm:$0xff]
    %v296 = vld [vmem:[#allocation2 + $0x10] sm:$0xff]
    %v297 = vld [vmem:[#allocation2 + $0x20] sm:$0xff]
    %v298 = vld [vmem:[#allocation2 + $0x30] sm:$0xff]
    %v299 = vld [vmem:[#allocation2 + $0x40] sm:$0xff]
    %v300 = vld [vmem:[#allocation2 + $0x50] sm:$0xff]
    %v301 = vld [vmem:[#allocation2 + $0x60] sm:$0xff]
    %v302 = vld [vmem:[#allocation2 + $0x70] sm:$0xff]
    %v303 = vld [vmem:[#allocation2 + $0xa0] sm:$0xff]
    %v304 = vld [vmem:[#allocation2 + $0xb0] sm:$0xff]
    %v305 = vld [vmem:[#allocation2 + $0xc0] sm:$0xff]
    %v306 = vld [vmem:[#allocation2 + $0xd0] sm:$0xff]
    %v307 = vld [vmem:[#allocation2 + $0xe0] sm:$0xff]
    %v308 = vld [vmem:[#allocation2 + $0xf0] sm:$0xff]
    %v309 = vld [vmem:[#allocation2 + $0x100] sm:$0xff]
    %v310 = vld [vmem:[#allocation2 + $0x110] sm:$0xff]
    %v311 = vpack.c.bf16 %v296, %v295
    %v312 = vpack.c.bf16 %v298, %v297
    %v313 = vpack.c.bf16 %v300, %v299
    %v314 = vpack.c.bf16 %v302, %v301
    %v315 = vpack.c.bf16 %v304, %v303
    %v316 = vpack.c.bf16 %v306, %v305
    %v317 = vpack.c.bf16 %v308, %v307
    %v318 = vpack.c.bf16 %v310, %v309
    %v319 = vld [vmem:[%s1] sm:$0x3]
    %v320 = vld [vmem:[#allocation2 + $0x1] sm:$0xff]
    %v321 = vld [vmem:[#allocation2 + $0x11] sm:$0xff]
    %v322 = vld [vmem:[#allocation2 + $0x21] sm:$0xff]
    %v323 = vld [vmem:[#allocation2 + $0x31] sm:$0xff]
    %v324 = vld [vmem:[#allocation2 + $0x41] sm:$0xff]
    %v325 = vld [vmem:[#allocation2 + $0x51] sm:$0xff]
    %v326 = vld [vmem:[#allocation2 + $0x61] sm:$0xff]
    %v327 = vld [vmem:[#allocation2 + $0x71] sm:$0xff]
    %v328 = vld [vmem:[#allocation2 + $0xa1] sm:$0xff]
    %v329 = vld [vmem:[#allocation2 + $0xb1] sm:$0xff]
    %v330 = vld [vmem:[#allocation2 + $0xc1] sm:$0xff]
    %v331 = vld [vmem:[#allocation2 + $0xd1] sm:$0xff]
    %v332 = vld [vmem:[#allocation2 + $0xe1] sm:$0xff]
    %v333 = vld [vmem:[#allocation2 + $0xf1] sm:$0xff]
    %v334 = vld [vmem:[#allocation2 + $0x101] sm:$0xff]
    %v335 = vld [vmem:[#allocation2 + $0x111] sm:$0xff]
    %v336 = vpack.c.bf16 %v321, %v320
    %v337 = vpack.c.bf16 %v323, %v322
    %v338 = vpack.c.bf16 %v325, %v324
    %v339 = vpack.c.bf16 %v327, %v326
    %v340 = vpack.c.bf16 %v329, %v328
    %v341 = vpack.c.bf16 %v331, %v330
    %v342 = vpack.c.bf16 %v333, %v332
    %v343 = vpack.c.bf16 %v335, %v334
    %s344 = scalar_lea.vmem %s1, 2
    %v345 = vld [vmem:[%s344] sm:$0x3]
    %v347 = vsel %vm236, %v336, 0
    %v350 = vsel %vm236, %v337, 0
    %v353 = vsel %vm236, %v338, 0
    %v356 = vsel %vm236, %v339, 0
    %v359 = vsel %vm236, %v340, 0
    %v362 = vsel %vm236, %v341, 0
    %v365 = vsel %vm236, %v342, 0
    %v368 = vsel %vm236, %v343, 0
    %vm370 = vcmask 1041408
    %v372 = vsel %vm370, %v345, 0
    %374 = vmatprep.subr.bf16.mxu0 0
    %375 = vmatpush1.bf16.msra.mxu0 %v372
    %376 = vmatprep.subr.bf16.mxu0 0
    %377 = vmatpush1.bf16.msra.mxu0 0
    %378 = vmatprep.subr.bf16.mxu0 0
    %379 = vmatpush1.bf16.msra.mxu0 0
    %380 = vmatprep.subr.bf16.mxu0 0
    %381 = vmatpush1.bf16.msra.mxu0 0
    %382 = vmatprep.subr.bf16.mxu0 0
    %383 = vmatpush1.bf16.msra.mxu0 0
    %384 = vmatprep.subr.bf16.mxu0 0
    %385 = vmatpush1.bf16.msra.mxu0 0
    %386 = vmatprep.subr.bf16.mxu0 0
    %387 = vmatpush1.bf16.msra.mxu0 0
    %388 = vmatprep.subr.bf16.mxu0 0
    %389 = vmatpush1.bf16.msra.mxu0 0
    %390 = vmatprep.subr.bf16.mxu0 0
    %391 = vmatpush1.bf16.msra.mxu0 0
    %392 = vmatprep.subr.bf16.mxu0 0
    %393 = vmatpush1.bf16.msra.mxu0 0
    %394 = vmatprep.subr.bf16.mxu0 0
    %395 = vmatpush1.bf16.msra.mxu0 0
    %396 = vmatprep.subr.bf16.mxu0 0
    %397 = vmatpush1.bf16.msra.mxu0 0
    %398 = vmatprep.subr.bf16.mxu0 0
    %399 = vmatpush1.bf16.msra.mxu0 0
    %400 = vmatprep.subr.bf16.mxu0 0
    %401 = vmatpush1.bf16.msra.mxu0 0
    %402 = vmatprep.subr.bf16.mxu0 0
    %403 = vmatpush1.bf16.msra.mxu0 0
    %404 = vmatprep.subr.bf16.mxu0 0
    %405 = vmatpush1.bf16.msra.mxu0 0
    %406 = vmatprep.mubr.bf16.mxu0 0
    %407 = vmatmul.mubr.bf16.gmra.mrb[0].mxu0 %v347
    %v408 = vpop.f32.mrb[0].mxu0
    %v409 = vadd.f32 0.0, %v408
    %v410 = vpop.f32.mrb[0].mxu0
    %v411 = vpop.f32.mrb[0].mxu0
    %v412 = vadd.f32 0.0, %v411
    %v413 = vpop.f32.mrb[0].mxu0
    %414 = vmatprep.mubr.bf16.mxu0 0
    %415 = vmatmul.mubr.bf16.gmra.mrb[0].mxu0 %v350
    %v416 = vpop.f32.mrb[0].mxu0
    %v417 = vadd.f32 0.0, %v416
    %v418 = vpop.f32.mrb[0].mxu0
    %v419 = vpop.f32.mrb[0].mxu0
    %v420 = vadd.f32 0.0, %v419
    %v421 = vpop.f32.mrb[0].mxu0
    %422 = vmatprep.mubr.bf16.mxu0 0
    %423 = vmatmul.mubr.bf16.gmra.mrb[0].mxu0 %v353
    %v424 = vpop.f32.mrb[0].mxu0
    %v425 = vadd.f32 0.0, %v424
    %v426 = vpop.f32.mrb[0].mxu0
    %v427 = vpop.f32.mrb[0].mxu0
    %v428 = vadd.f32 0.0, %v427
    %v429 = vpop.f32.mrb[0].mxu0
    %430 = vmatprep.mubr.bf16.mxu0 0
    %431 = vmatmul.mubr.bf16.gmra.mrb[0].mxu0 %v356
    %v432 = vpop.f32.mrb[0].mxu0
    %v433 = vadd.f32 0.0, %v432
    %v434 = vpop.f32.mrb[0].mxu0
    %v435 = vpop.f32.mrb[0].mxu0
    %v436 = vadd.f32 0.0, %v435
    %v437 = vpop.f32.mrb[0].mxu0
    %438 = vmatprep.mubr.bf16.mxu0 0
    %439 = vmatmul.mubr.bf16.gmra.mrb[0].mxu0 %v359
    %v440 = vpop.f32.mrb[0].mxu0
    %v441 = vadd.f32 0.0, %v440
    %v442 = vpop.f32.mrb[0].mxu0
    %v443 = vpop.f32.mrb[0].mxu0
    %v444 = vadd.f32 0.0, %v443
    %v445 = vpop.f32.mrb[0].mxu0
    %446 = vmatprep.mubr.bf16.mxu0 0
    %447 = vmatmul.mubr.bf16.gmra.mrb[0].mxu0 %v362
    %v448 = vpop.f32.mrb[0].mxu0
    %v449 = vadd.f32 0.0, %v448
    %v450 = vpop.f32.mrb[0].mxu0
    %v451 = vpop.f32.mrb[0].mxu0
    %v452 = vadd.f32 0.0, %v451
    %v453 = vpop.f32.mrb[0].mxu0
    %454 = vmatprep.mubr.bf16.mxu0 0
    %455 = vmatmul.mubr.bf16.gmra.mrb[0].mxu0 %v365
    %v456 = vpop.f32.mrb[0].mxu0
    %v457 = vadd.f32 0.0, %v456
    %v458 = vpop.f32.mrb[0].mxu0
    %v459 = vpop.f32.mrb[0].mxu0
    %v460 = vadd.f32 0.0, %v459
    %v461 = vpop.f32.mrb[0].mxu0
    %462 = vmatprep.mubr.bf16.mxu0 0
    %463 = vmatmul.mubr.bf16.gmra.mrb[0].mxu0 %v368
    %v464 = vpop.f32.mrb[0].mxu0
    %v465 = vadd.f32 0.0, %v464
    %v466 = vpop.f32.mrb[0].mxu0
    %v467 = vpop.f32.mrb[0].mxu0
    %v468 = vadd.f32 0.0, %v467
    %v469 = vpop.f32.mrb[0].mxu0
    %470 = vdwg.mxu0
    %v472 = vsel %vm236, %v311, 0
    %v475 = vsel %vm236, %v312, 0
    %v478 = vsel %vm236, %v313, 0
    %v481 = vsel %vm236, %v314, 0
    %v484 = vsel %vm236, %v315, 0
    %v487 = vsel %vm236, %v316, 0
    %v490 = vsel %vm236, %v317, 0
    %v493 = vsel %vm236, %v318, 0
    %v496 = vsel %vm370, %v319, 0
    %498 = vmatprep.subr.bf16.mxu0 0
    %499 = vmatpush1.bf16.msra.mxu0 %v496
    %500 = vmatprep.subr.bf16.mxu0 0
    %501 = vmatpush1.bf16.msra.mxu0 0
    %502 = vmatprep.subr.bf16.mxu0 0
    %503 = vmatpush1.bf16.msra.mxu0 0
    %504 = vmatprep.subr.bf16.mxu0 0
    %505 = vmatpush1.bf16.msra.mxu0 0
    %506 = vmatprep.subr.bf16.mxu0 0
    %507 = vmatpush1.bf16.msra.mxu0 0
    %508 = vmatprep.subr.bf16.mxu0 0
    %509 = vmatpush1.bf16.msra.mxu0 0
    %510 = vmatprep.subr.bf16.mxu0 0
    %511 = vmatpush1.bf16.msra.mxu0 0
    %512 = vmatprep.subr.bf16.mxu0 0
    %513 = vmatpush1.bf16.msra.mxu0 0
    %514 = vmatprep.subr.bf16.mxu0 0
    %515 = vmatpush1.bf16.msra.mxu0 0
    %516 = vmatprep.subr.bf16.mxu0 0
    %517 = vmatpush1.bf16.msra.mxu0 0
    %518 = vmatprep.subr.bf16.mxu0 0
    %519 = vmatpush1.bf16.msra.mxu0 0
    %520 = vmatprep.subr.bf16.mxu0 0
    %521 = vmatpush1.bf16.msra.mxu0 0
    %522 = vmatprep.subr.bf16.mxu0 0
    %523 = vmatpush1.bf16.msra.mxu0 0
    %524 = vmatprep.subr.bf16.mxu0 0
    %525 = vmatpush1.bf16.msra.mxu0 0
    %526 = vmatprep.subr.bf16.mxu0 0
    %527 = vmatpush1.bf16.msra.mxu0 0
    %528 = vmatprep.subr.bf16.mxu0 0
    %529 = vmatpush1.bf16.msra.mxu0 0
    %530 = vmatprep.mubr.bf16.mxu0 0
    %531 = vmatmul.mubr.bf16.gmra.mrb[0].mxu0 %v472
    %v532 = vpop.f32.mrb[0].mxu0
    %v533 = vadd.f32 %v409, %v532
    %v534 = vpop.f32.mrb[0].mxu0
    %v535 = vpop.f32.mrb[0].mxu0
    %v536 = vadd.f32 %v412, %v535
    %v537 = vpop.f32.mrb[0].mxu0
    %538 = vmatprep.mubr.bf16.mxu0 0
    %539 = vmatmul.mubr.bf16.gmra.mrb[0].mxu0 %v475
    %v540 = vpop.f32.mrb[0].mxu0
    %v541 = vadd.f32 %v417, %v540
    %v542 = vpop.f32.mrb[0].mxu0
    %v543 = vpop.f32.mrb[0].mxu0
    %v544 = vadd.f32 %v420, %v543
    %v545 = vpop.f32.mrb[0].mxu0
    %546 = vmatprep.mubr.bf16.mxu0 0
    %547 = vmatmul.mubr.bf16.gmra.mrb[0].mxu0 %v478
    %v548 = vpop.f32.mrb[0].mxu0
    %v549 = vadd.f32 %v425, %v548
    %v550 = vpop.f32.mrb[0].mxu0
    %v551 = vpop.f32.mrb[0].mxu0
    %v552 = vadd.f32 %v428, %v551
    %v553 = vpop.f32.mrb[0].mxu0
    %554 = vmatprep.mubr.bf16.mxu0 0
    %555 = vmatmul.mubr.bf16.gmra.mrb[0].mxu0 %v481
    %v556 = vpop.f32.mrb[0].mxu0
    %v557 = vadd.f32 %v433, %v556
    %v558 = vpop.f32.mrb[0].mxu0
    %v559 = vpop.f32.mrb[0].mxu0
    %v560 = vadd.f32 %v436, %v559
    %v561 = vpop.f32.mrb[0].mxu0
    %562 = vmatprep.mubr.bf16.mxu0 0
    %563 = vmatmul.mubr.bf16.gmra.mrb[0].mxu0 %v484
    %v564 = vpop.f32.mrb[0].mxu0
    %v565 = vadd.f32 %v441, %v564
    %v566 = vpop.f32.mrb[0].mxu0
    %v567 = vpop.f32.mrb[0].mxu0
    %v568 = vadd.f32 %v444, %v567
    %v569 = vpop.f32.mrb[0].mxu0
    %570 = vmatprep.mubr.bf16.mxu0 0
    %571 = vmatmul.mubr.bf16.gmra.mrb[0].mxu0 %v487
    %v572 = vpop.f32.mrb[0].mxu0
    %v573 = vadd.f32 %v449, %v572
    %v574 = vpop.f32.mrb[0].mxu0
    %v575 = vpop.f32.mrb[0].mxu0
    %v576 = vadd.f32 %v452, %v575
    %v577 = vpop.f32.mrb[0].mxu0
    %578 = vmatprep.mubr.bf16.mxu0 0
    %579 = vmatmul.mubr.bf16.gmra.mrb[0].mxu0 %v490
    %v580 = vpop.f32.mrb[0].mxu0
    %v581 = vadd.f32 %v457, %v580
    %v582 = vpop.f32.mrb[0].mxu0
    %v583 = vpop.f32.mrb[0].mxu0
    %v584 = vadd.f32 %v460, %v583
    %v585 = vpop.f32.mrb[0].mxu0
    %586 = vmatprep.mubr.bf16.mxu0 0
    %587 = vmatmul.mubr.bf16.gmra.mrb[0].mxu0 %v493
    %v588 = vpop.f32.mrb[0].mxu0
    %v589 = vadd.f32 %v465, %v588
    %v590 = vpop.f32.mrb[0].mxu0
    %v591 = vpop.f32.mrb[0].mxu0
    %v592 = vadd.f32 %v468, %v591
    %v593 = vpop.f32.mrb[0].mxu0
    %594 = vdwg.mxu0
    %v595 = vld [vmem:[#allocation2 + $0x2] sm:$0xff]
    %v596 = vld [vmem:[#allocation2 + $0x12] sm:$0xff]
    %v597 = vld [vmem:[#allocation2 + $0x22] sm:$0xff]
    %v598 = vld [vmem:[#allocation2 + $0x32] sm:$0xff]
    %v599 = vld [vmem:[#allocation2 + $0x42] sm:$0xff]
    %v600 = vld [vmem:[#allocation2 + $0x52] sm:$0xff]
    %v601 = vld [vmem:[#allocation2 + $0x62] sm:$0xff]
    %v602 = vld [vmem:[#allocation2 + $0x72] sm:$0xff]
    %v603 = vld [vmem:[#allocation2 + $0xa2] sm:$0xff]
    %v604 = vld [vmem:[#allocation2 + $0xb2] sm:$0xff]
    %v605 = vld [vmem:[#allocation2 + $0xc2] sm:$0xff]
    %v606 = vld [vmem:[#allocation2 + $0xd2] sm:$0xff]
    %v607 = vld [vmem:[#allocation2 + $0xe2] sm:$0xff]
    %v608 = vld [vmem:[#allocation2 + $0xf2] sm:$0xff]
    %v609 = vld [vmem:[#allocation2 + $0x102] sm:$0xff]
    %v610 = vld [vmem:[#allocation2 + $0x112] sm:$0xff]
    %v611 = vpack.c.bf16 %v596, %v595
    %v612 = vpack.c.bf16 %v598, %v597
    %v613 = vpack.c.bf16 %v600, %v599
    %v614 = vpack.c.bf16 %v602, %v601
    %v615 = vpack.c.bf16 %v604, %v603
    %v616 = vpack.c.bf16 %v606, %v605
    %v617 = vpack.c.bf16 %v608, %v607
    %v618 = vpack.c.bf16 %v610, %v609
    %s619 = scalar_lea.vmem %s1, 4
    %v620 = vld [vmem:[%s619] sm:$0x3]
    %v622 = vsel %vm236, %v611, 0
    %v625 = vsel %vm236, %v612, 0
    %v628 = vsel %vm236, %v613, 0
    %v631 = vsel %vm236, %v614, 0
    %v634 = vsel %vm236, %v615, 0
    %v637 = vsel %vm236, %v616, 0
    %v640 = vsel %vm236, %v617, 0
    %v643 = vsel %vm236, %v618, 0
    %v646 = vsel %vm370, %v620, 0
    %648 = vmatprep.subr.bf16.mxu0 0
    %649 = vmatpush1.bf16.msra.mxu0 %v646
    %650 = vmatprep.subr.bf16.mxu0 0
    %651 = vmatpush1.bf16.msra.mxu0 0
    %652 = vmatprep.subr.bf16.mxu0 0
    %653 = vmatpush1.bf16.msra.mxu0 0
    %654 = vmatprep.subr.bf16.mxu0 0
    %655 = vmatpush1.bf16.msra.mxu0 0
    %656 = vmatprep.subr.bf16.mxu0 0
    %657 = vmatpush1.bf16.msra.mxu0 0
    %658 = vmatprep.subr.bf16.mxu0 0
    %659 = vmatpush1.bf16.msra.mxu0 0
    %660 = vmatprep.subr.bf16.mxu0 0
    %661 = vmatpush1.bf16.msra.mxu0 0
    %662 = vmatprep.subr.bf16.mxu0 0
    %663 = vmatpush1.bf16.msra.mxu0 0
    %664 = vmatprep.subr.bf16.mxu0 0
    %665 = vmatpush1.bf16.msra.mxu0 0
    %666 = vmatprep.subr.bf16.mxu0 0
    %667 = vmatpush1.bf16.msra.mxu0 0
    %668 = vmatprep.subr.bf16.mxu0 0
    %669 = vmatpush1.bf16.msra.mxu0 0
    %670 = vmatprep.subr.bf16.mxu0 0
    %671 = vmatpush1.bf16.msra.mxu0 0
    %672 = vmatprep.subr.bf16.mxu0 0
    %673 = vmatpush1.bf16.msra.mxu0 0
    %674 = vmatprep.subr.bf16.mxu0 0
    %675 = vmatpush1.bf16.msra.mxu0 0
    %676 = vmatprep.subr.bf16.mxu0 0
    %677 = vmatpush1.bf16.msra.mxu0 0
    %678 = vmatprep.subr.bf16.mxu0 0
    %679 = vmatpush1.bf16.msra.mxu0 0
    %680 = vmatprep.mubr.bf16.mxu0 0
    %681 = vmatmul.mubr.bf16.gmra.mrb[0].mxu0 %v622
    %v682 = vpop.f32.mrb[0].mxu0
    %v683 = vadd.f32 0.0, %v682
    %v684 = vpop.f32.mrb[0].mxu0
    %v685 = vpop.f32.mrb[0].mxu0
    %v686 = vadd.f32 0.0, %v685
    %v687 = vpop.f32.mrb[0].mxu0
    %688 = vmatprep.mubr.bf16.mxu0 0
    %689 = vmatmul.mubr.bf16.gmra.mrb[0].mxu0 %v625
    %v690 = vpop.f32.mrb[0].mxu0
    %v691 = vadd.f32 0.0, %v690
    %v692 = vpop.f32.mrb[0].mxu0
    %v693 = vpop.f32.mrb[0].mxu0
    %v694 = vadd.f32 0.0, %v693
    %v695 = vpop.f32.mrb[0].mxu0
    %696 = vmatprep.mubr.bf16.mxu0 0
    %697 = vmatmul.mubr.bf16.gmra.mrb[0].mxu0 %v628
    %v698 = vpop.f32.mrb[0].mxu0
    %v699 = vadd.f32 0.0, %v698
    %v700 = vpop.f32.mrb[0].mxu0
    %v701 = vpop.f32.mrb[0].mxu0
    %v702 = vadd.f32 0.0, %v701
    %v703 = vpop.f32.mrb[0].mxu0
    %704 = vmatprep.mubr.bf16.mxu0 0
    %705 = vmatmul.mubr.bf16.gmra.mrb[0].mxu0 %v631
    %v706 = vpop.f32.mrb[0].mxu0
    %v707 = vadd.f32 0.0, %v706
    %v708 = vpop.f32.mrb[0].mxu0
    %v709 = vpop.f32.mrb[0].mxu0
    %v710 = vadd.f32 0.0, %v709
    %v711 = vpop.f32.mrb[0].mxu0
    %712 = vmatprep.mubr.bf16.mxu0 0
    %713 = vmatmul.mubr.bf16.gmra.mrb[0].mxu0 %v634
    %v714 = vpop.f32.mrb[0].mxu0
    %v715 = vadd.f32 0.0, %v714
    %v716 = vpop.f32.mrb[0].mxu0
    %v717 = vpop.f32.mrb[0].mxu0
    %v718 = vadd.f32 0.0, %v717
    %v719 = vpop.f32.mrb[0].mxu0
    %720 = vmatprep.mubr.bf16.mxu0 0
    %721 = vmatmul.mubr.bf16.gmra.mrb[0].mxu0 %v637
    %v722 = vpop.f32.mrb[0].mxu0
    %v723 = vadd.f32 0.0, %v722
    %v724 = vpop.f32.mrb[0].mxu0
    %v725 = vpop.f32.mrb[0].mxu0
    %v726 = vadd.f32 0.0, %v725
    %v727 = vpop.f32.mrb[0].mxu0
    %728 = vmatprep.mubr.bf16.mxu0 0
    %729 = vmatmul.mubr.bf16.gmra.mrb[0].mxu0 %v640
    %v730 = vpop.f32.mrb[0].mxu0
    %v731 = vadd.f32 0.0, %v730
    %v732 = vpop.f32.mrb[0].mxu0
    %v733 = vpop.f32.mrb[0].mxu0
    %v734 = vadd.f32 0.0, %v733
    %v735 = vpop.f32.mrb[0].mxu0
    %736 = vmatprep.mubr.bf16.mxu0 0
    %737 = vmatmul.mubr.bf16.gmra.mrb[0].mxu0 %v643
    %v738 = vpop.f32.mrb[0].mxu0
    %v739 = vadd.f32 0.0, %v738
    %v740 = vpop.f32.mrb[0].mxu0
    %v741 = vpop.f32.mrb[0].mxu0
    %v742 = vadd.f32 0.0, %v741
    %v743 = vpop.f32.mrb[0].mxu0
    %744 = vdwg.mxu0
    %v745 = vadd.f32 %v533, %v683
    %v746 = vadd.f32 %v536, %v686
    %v747 = vadd.f32 %v541, %v691
    %v748 = vadd.f32 %v544, %v694
    %v749 = vadd.f32 %v549, %v699
    %v750 = vadd.f32 %v552, %v702
    %v751 = vadd.f32 %v557, %v707
    %v752 = vadd.f32 %v560, %v710
    %v753 = vadd.f32 %v565, %v715
    %v754 = vadd.f32 %v568, %v718
    %v755 = vadd.f32 %v573, %v723
    %v756 = vadd.f32 %v576, %v726
    %v757 = vadd.f32 %v581, %v731
    %v758 = vadd.f32 %v584, %v734
    %v759 = vadd.f32 %v589, %v739
    %v760 = vadd.f32 %v592, %v742
    %v761 = vld [vmem:[%s278] sm:$0xff]
    %v762 = vld [vmem:[%s278 + $0x10] sm:$0xff]
    %v763 = vld [vmem:[%s278 + $0x20] sm:$0xff]
    %v764 = vld [vmem:[%s278 + $0x30] sm:$0xff]
    %v765 = vld [vmem:[%s278 + $0x40] sm:$0xff]
    %v766 = vld [vmem:[%s278 + $0x50] sm:$0xff]
    %v767 = vld [vmem:[%s278 + $0x60] sm:$0xff]
    %v768 = vld [vmem:[%s278 + $0x70] sm:$0xff]
    %v769 = vld [vmem:[%s278 + $0xa0] sm:$0xff]
    %v770 = vld [vmem:[%s278 + $0xb0] sm:$0xff]
    %v771 = vld [vmem:[%s278 + $0xc0] sm:$0xff]
    %v772 = vld [vmem:[%s278 + $0xd0] sm:$0xff]
    %v773 = vld [vmem:[%s278 + $0xe0] sm:$0xff]
    %v774 = vld [vmem:[%s278 + $0xf0] sm:$0xff]
    %v775 = vld [vmem:[%s278 + $0x100] sm:$0xff]
    %v776 = vld [vmem:[%s278 + $0x110] sm:$0xff]
    %v777 = vpack.c.bf16 %v762, %v761
    %v778 = vpack.c.bf16 %v764, %v763
    %v779 = vpack.c.bf16 %v766, %v765
    %v780 = vpack.c.bf16 %v768, %v767
    %v781 = vpack.c.bf16 %v770, %v769
    %v782 = vpack.c.bf16 %v772, %v771
    %v783 = vpack.c.bf16 %v774, %v773
    %v784 = vpack.c.bf16 %v776, %v775
    %s785 = scalar_lea.vmem %s1, 6
    %v786 = vld [vmem:[%s785] sm:$0x3]
    %v788 = vsel %vm236, %v777, 0
    %v791 = vsel %vm236, %v778, 0
    %v794 = vsel %vm236, %v779, 0
    %v797 = vsel %vm236, %v780, 0
    %v800 = vsel %vm236, %v781, 0
    %v803 = vsel %vm236, %v782, 0
    %v806 = vsel %vm236, %v783, 0
    %v809 = vsel %vm236, %v784, 0
    %v812 = vsel %vm370, %v786, 0
    %814 = vmatprep.subr.bf16.mxu0 0
    %815 = vmatpush1.bf16.msra.mxu0 %v812
    %816 = vmatprep.subr.bf16.mxu0 0
    %817 = vmatpush1.bf16.msra.mxu0 0
    %818 = vmatprep.subr.bf16.mxu0 0
    %819 = vmatpush1.bf16.msra.mxu0 0
    %820 = vmatprep.subr.bf16.mxu0 0
    %821 = vmatpush1.bf16.msra.mxu0 0
    %822 = vmatprep.subr.bf16.mxu0 0
    %823 = vmatpush1.bf16.msra.mxu0 0
    %824 = vmatprep.subr.bf16.mxu0 0
    %825 = vmatpush1.bf16.msra.mxu0 0
    %826 = vmatprep.subr.bf16.mxu0 0
    %827 = vmatpush1.bf16.msra.mxu0 0
    %828 = vmatprep.subr.bf16.mxu0 0
    %829 = vmatpush1.bf16.msra.mxu0 0
    %830 = vmatprep.subr.bf16.mxu0 0
    %831 = vmatpush1.bf16.msra.mxu0 0
    %832 = vmatprep.subr.bf16.mxu0 0
    %833 = vmatpush1.bf16.msra.mxu0 0
    %834 = vmatprep.subr.bf16.mxu0 0
    %835 = vmatpush1.bf16.msra.mxu0 0
    %836 = vmatprep.subr.bf16.mxu0 0
    %837 = vmatpush1.bf16.msra.mxu0 0
    %838 = vmatprep.subr.bf16.mxu0 0
    %839 = vmatpush1.bf16.msra.mxu0 0
    %840 = vmatprep.subr.bf16.mxu0 0
    %841 = vmatpush1.bf16.msra.mxu0 0
    %842 = vmatprep.subr.bf16.mxu0 0
    %843 = vmatpush1.bf16.msra.mxu0 0
    %844 = vmatprep.subr.bf16.mxu0 0
    %845 = vmatpush1.bf16.msra.mxu0 0
    %846 = vmatprep.mubr.bf16.mxu0 0
    %847 = vmatmul.mubr.bf16.gmra.mrb[0].mxu0 %v788
    %v848 = vpop.f32.mrb[0].mxu0
    %v849 = vadd.f32 0.0, %v848
    %v850 = vpop.f32.mrb[0].mxu0
    %v851 = vpop.f32.mrb[0].mxu0
    %v852 = vadd.f32 0.0, %v851
    %v853 = vpop.f32.mrb[0].mxu0
    %854 = vmatprep.mubr.bf16.mxu0 0
    %855 = vmatmul.mubr.bf16.gmra.mrb[0].mxu0 %v791
    %v856 = vpop.f32.mrb[0].mxu0
    %v857 = vadd.f32 0.0, %v856
    %v858 = vpop.f32.mrb[0].mxu0
    %v859 = vpop.f32.mrb[0].mxu0
    %v860 = vadd.f32 0.0, %v859
    %v861 = vpop.f32.mrb[0].mxu0
    %862 = vmatprep.mubr.bf16.mxu0 0
    %863 = vmatmul.mubr.bf16.gmra.mrb[0].mxu0 %v794
    %v864 = vpop.f32.mrb[0].mxu0
    %v865 = vadd.f32 0.0, %v864
    %v866 = vpop.f32.mrb[0].mxu0
    %v867 = vpop.f32.mrb[0].mxu0
    %v868 = vadd.f32 0.0, %v867
    %v869 = vpop.f32.mrb[0].mxu0
    %870 = vmatprep.mubr.bf16.mxu0 0
    %871 = vmatmul.mubr.bf16.gmra.mrb[0].mxu0 %v797
    %v872 = vpop.f32.mrb[0].mxu0
    %v873 = vadd.f32 0.0, %v872
    %v874 = vpop.f32.mrb[0].mxu0
    %v875 = vpop.f32.mrb[0].mxu0
    %v876 = vadd.f32 0.0, %v875
    %v877 = vpop.f32.mrb[0].mxu0
    %878 = vmatprep.mubr.bf16.mxu0 0
    %879 = vmatmul.mubr.bf16.gmra.mrb[0].mxu0 %v800
    %v880 = vpop.f32.mrb[0].mxu0
    %v881 = vadd.f32 0.0, %v880
    %v882 = vpop.f32.mrb[0].mxu0
    %v883 = vpop.f32.mrb[0].mxu0
    %v884 = vadd.f32 0.0, %v883
    %v885 = vpop.f32.mrb[0].mxu0
    %886 = vmatprep.mubr.bf16.mxu0 0
    %887 = vmatmul.mubr.bf16.gmra.mrb[0].mxu0 %v803
    %v888 = vpop.f32.mrb[0].mxu0
    %v889 = vadd.f32 0.0, %v888
    %v890 = vpop.f32.mrb[0].mxu0
    %v891 = vpop.f32.mrb[0].mxu0
    %v892 = vadd.f32 0.0, %v891
    %v893 = vpop.f32.mrb[0].mxu0
    %894 = vmatprep.mubr.bf16.mxu0 0
    %895 = vmatmul.mubr.bf16.gmra.mrb[0].mxu0 %v806
    %v896 = vpop.f32.mrb[0].mxu0
    %v897 = vadd.f32 0.0, %v896
    %v898 = vpop.f32.mrb[0].mxu0
    %v899 = vpop.f32.mrb[0].mxu0
    %v900 = vadd.f32 0.0, %v899
    %v901 = vpop.f32.mrb[0].mxu0
    %902 = vmatprep.mubr.bf16.mxu0 0
    %903 = vmatmul.mubr.bf16.gmra.mrb[0].mxu0 %v809
    %v904 = vpop.f32.mrb[0].mxu0
    %v905 = vadd.f32 0.0, %v904
    %v906 = vpop.f32.mrb[0].mxu0
    %v907 = vpop.f32.mrb[0].mxu0
    %v908 = vadd.f32 0.0, %v907
    %v909 = vpop.f32.mrb[0].mxu0
    %910 = vdwg.mxu0
    %v911 = vadd.f32 %v745, %v849
    %v912 = vadd.f32 %v746, %v852
    %v913 = vadd.f32 %v747, %v857
    %v914 = vadd.f32 %v748, %v860
    %v915 = vadd.f32 %v749, %v865
    %v916 = vadd.f32 %v750, %v868
    %v917 = vadd.f32 %v751, %v873
    %v918 = vadd.f32 %v752, %v876
    %v919 = vadd.f32 %v753, %v881
    %v920 = vadd.f32 %v754, %v884
    %v921 = vadd.f32 %v755, %v889
    %v922 = vadd.f32 %v756, %v892
    %v923 = vadd.f32 %v757, %v897
    %v924 = vadd.f32 %v758, %v900
    %v925 = vadd.f32 %v759, %v905
    %v926 = vadd.f32 %v760, %v908
    %v927 = vld [vmem:[%s278 + $0x1] sm:$0xff]
    %v928 = vld [vmem:[%s278 + $0x11] sm:$0xff]
    %v929 = vld [vmem:[%s278 + $0x21] sm:$0xff]
    %v930 = vld [vmem:[%s278 + $0x31] sm:$0xff]
    %v931 = vld [vmem:[%s278 + $0x41] sm:$0xff]
    %v932 = vld [vmem:[%s278 + $0x51] sm:$0xff]
    %v933 = vld [vmem:[%s278 + $0x61] sm:$0xff]
    %v934 = vld [vmem:[%s278 + $0x71] sm:$0xff]
    %v935 = vld [vmem:[%s278 + $0xa1] sm:$0xff]
    %v936 = vld [vmem:[%s278 + $0xb1] sm:$0xff]
    %v937 = vld [vmem:[%s278 + $0xc1] sm:$0xff]
    %v938 = vld [vmem:[%s278 + $0xd1] sm:$0xff]
    %v939 = vld [vmem:[%s278 + $0xe1] sm:$0xff]
    %v940 = vld [vmem:[%s278 + $0xf1] sm:$0xff]
    %v941 = vld [vmem:[%s278 + $0x101] sm:$0xff]
    %v942 = vld [vmem:[%s278 + $0x111] sm:$0xff]
    %v943 = vpack.c.bf16 %v928, %v927
    %v944 = vpack.c.bf16 %v930, %v929
    %v945 = vpack.c.bf16 %v932, %v931
    %v946 = vpack.c.bf16 %v934, %v933
    %v947 = vpack.c.bf16 %v936, %v935
    %v948 = vpack.c.bf16 %v938, %v937
    %v949 = vpack.c.bf16 %v940, %v939
    %v950 = vpack.c.bf16 %v942, %v941
    %s951 = scalar_lea.vmem %s1, 8
    %v952 = vld [vmem:[%s951] sm:$0x3]
    %v954 = vsel %vm236, %v943, 0
    %v957 = vsel %vm236, %v944, 0
    %v960 = vsel %vm236, %v945, 0
    %v963 = vsel %vm236, %v946, 0
    %v966 = vsel %vm236, %v947, 0
    %v969 = vsel %vm236, %v948, 0
    %v972 = vsel %vm236, %v949, 0
    %v975 = vsel %vm236, %v950, 0
    %v978 = vsel %vm370, %v952, 0
    %980 = vmatprep.subr.bf16.mxu0 0
    %981 = vmatpush1.bf16.msra.mxu0 %v978
    %982 = vmatprep.subr.bf16.mxu0 0
    %983 = vmatpush1.bf16.msra.mxu0 0
    %984 = vmatprep.subr.bf16.mxu0 0
    %985 = vmatpush1.bf16.msra.mxu0 0
    %986 = vmatprep.subr.bf16.mxu0 0
    %987 = vmatpush1.bf16.msra.mxu0 0
    %988 = vmatprep.subr.bf16.mxu0 0
    %989 = vmatpush1.bf16.msra.mxu0 0
    %990 = vmatprep.subr.bf16.mxu0 0
    %991 = vmatpush1.bf16.msra.mxu0 0
    %992 = vmatprep.subr.bf16.mxu0 0
    %993 = vmatpush1.bf16.msra.mxu0 0
    %994 = vmatprep.subr.bf16.mxu0 0
    %995 = vmatpush1.bf16.msra.mxu0 0
    %996 = vmatprep.subr.bf16.mxu0 0
    %997 = vmatpush1.bf16.msra.mxu0 0
    %998 = vmatprep.subr.bf16.mxu0 0
    %999 = vmatpush1.bf16.msra.mxu0 0
    %1000 = vmatprep.subr.bf16.mxu0 0
    %1001 = vmatpush1.bf16.msra.mxu0 0
    %1002 = vmatprep.subr.bf16.mxu0 0
    %1003 = vmatpush1.bf16.msra.mxu0 0
    %1004 = vmatprep.subr.bf16.mxu0 0
    %1005 = vmatpush1.bf16.msra.mxu0 0
    %1006 = vmatprep.subr.bf16.mxu0 0
    %1007 = vmatpush1.bf16.msra.mxu0 0
    %1008 = vmatprep.subr.bf16.mxu0 0
    %1009 = vmatpush1.bf16.msra.mxu0 0
    %1010 = vmatprep.subr.bf16.mxu0 0
    %1011 = vmatpush1.bf16.msra.mxu0 0
    %1012 = vmatprep.mubr.bf16.mxu0 0
    %1013 = vmatmul.mubr.bf16.gmra.mrb[0].mxu0 %v954
    %v1014 = vpop.f32.mrb[0].mxu0
    %v1015 = vadd.f32 0.0, %v1014
    %v1016 = vpop.f32.mrb[0].mxu0
    %v1017 = vpop.f32.mrb[0].mxu0
    %v1018 = vadd.f32 0.0, %v1017
    %v1019 = vpop.f32.mrb[0].mxu0
    %1020 = vmatprep.mubr.bf16.mxu0 0
    %1021 = vmatmul.mubr.bf16.gmra.mrb[0].mxu0 %v957
    %v1022 = vpop.f32.mrb[0].mxu0
    %v1023 = vadd.f32 0.0, %v1022
    %v1024 = vpop.f32.mrb[0].mxu0
    %v1025 = vpop.f32.mrb[0].mxu0
    %v1026 = vadd.f32 0.0, %v1025
    %v1027 = vpop.f32.mrb[0].mxu0
    %1028 = vmatprep.mubr.bf16.mxu0 0
    %1029 = vmatmul.mubr.bf16.gmra.mrb[0].mxu0 %v960
    %v1030 = vpop.f32.mrb[0].mxu0
    %v1031 = vadd.f32 0.0, %v1030
    %v1032 = vpop.f32.mrb[0].mxu0
    %v1033 = vpop.f32.mrb[0].mxu0
    %v1034 = vadd.f32 0.0, %v1033
    %v1035 = vpop.f32.mrb[0].mxu0
    %1036 = vmatprep.mubr.bf16.mxu0 0
    %1037 = vmatmul.mubr.bf16.gmra.mrb[0].mxu0 %v963
    %v1038 = vpop.f32.mrb[0].mxu0
    %v1039 = vadd.f32 0.0, %v1038
    %v1040 = vpop.f32.mrb[0].mxu0
    %v1041 = vpop.f32.mrb[0].mxu0
    %v1042 = vadd.f32 0.0, %v1041
    %v1043 = vpop.f32.mrb[0].mxu0
    %1044 = vmatprep.mubr.bf16.mxu0 0
    %1045 = vmatmul.mubr.bf16.gmra.mrb[0].mxu0 %v966
    %v1046 = vpop.f32.mrb[0].mxu0
    %v1047 = vadd.f32 0.0, %v1046
    %v1048 = vpop.f32.mrb[0].mxu0
    %v1049 = vpop.f32.mrb[0].mxu0
    %v1050 = vadd.f32 0.0, %v1049
    %v1051 = vpop.f32.mrb[0].mxu0
    %1052 = vmatprep.mubr.bf16.mxu0 0
    %1053 = vmatmul.mubr.bf16.gmra.mrb[0].mxu0 %v969
    %v1054 = vpop.f32.mrb[0].mxu0
    %v1055 = vadd.f32 0.0, %v1054
    %v1056 = vpop.f32.mrb[0].mxu0
    %v1057 = vpop.f32.mrb[0].mxu0
    %v1058 = vadd.f32 0.0, %v1057
    %v1059 = vpop.f32.mrb[0].mxu0
    %1060 = vmatprep.mubr.bf16.mxu0 0
    %1061 = vmatmul.mubr.bf16.gmra.mrb[0].mxu0 %v972
    %v1062 = vpop.f32.mrb[0].mxu0
    %v1063 = vadd.f32 0.0, %v1062
    %v1064 = vpop.f32.mrb[0].mxu0
    %v1065 = vpop.f32.mrb[0].mxu0
    %v1066 = vadd.f32 0.0, %v1065
    %v1067 = vpop.f32.mrb[0].mxu0
    %1068 = vmatprep.mubr.bf16.mxu0 0
    %1069 = vmatmul.mubr.bf16.gmra.mrb[0].mxu0 %v975
    %v1070 = vpop.f32.mrb[0].mxu0
    %v1071 = vadd.f32 0.0, %v1070
    %v1072 = vpop.f32.mrb[0].mxu0
    %v1073 = vpop.f32.mrb[0].mxu0
    %v1074 = vadd.f32 0.0, %v1073
    %v1075 = vpop.f32.mrb[0].mxu0
    %1076 = vdwg.mxu0
    %v1077 = vadd.f32 %v911, %v1015
    %v1078 = vadd.f32 %v912, %v1018
    %v1079 = vadd.f32 %v913, %v1023
    %v1080 = vadd.f32 %v914, %v1026
    %v1081 = vadd.f32 %v915, %v1031
    %v1082 = vadd.f32 %v916, %v1034
    %v1083 = vadd.f32 %v917, %v1039
    %v1084 = vadd.f32 %v918, %v1042
    %v1085 = vadd.f32 %v919, %v1047
    %v1086 = vadd.f32 %v920, %v1050
    %v1087 = vadd.f32 %v921, %v1055
    %v1088 = vadd.f32 %v922, %v1058
    %v1089 = vadd.f32 %v923, %v1063
    %v1090 = vadd.f32 %v924, %v1066
    %v1091 = vadd.f32 %v925, %v1071
    %v1092 = vadd.f32 %v926, %v1074
    %v1093 = vld [vmem:[%s278 + $0x2] sm:$0xff]
    %v1094 = vld [vmem:[%s278 + $0x12] sm:$0xff]
    %v1095 = vld [vmem:[%s278 + $0x22] sm:$0xff]
    %v1096 = vld [vmem:[%s278 + $0x32] sm:$0xff]
    %v1097 = vld [vmem:[%s278 + $0x42] sm:$0xff]
    %v1098 = vld [vmem:[%s278 + $0x52] sm:$0xff]
    %v1099 = vld [vmem:[%s278 + $0x62] sm:$0xff]
    %v1100 = vld [vmem:[%s278 + $0x72] sm:$0xff]
    %v1101 = vld [vmem:[%s278 + $0xa2] sm:$0xff]
    %v1102 = vld [vmem:[%s278 + $0xb2] sm:$0xff]
    %v1103 = vld [vmem:[%s278 + $0xc2] sm:$0xff]
    %v1104 = vld [vmem:[%s278 + $0xd2] sm:$0xff]
    %v1105 = vld [vmem:[%s278 + $0xe2] sm:$0xff]
    %v1106 = vld [vmem:[%s278 + $0xf2] sm:$0xff]
    %v1107 = vld [vmem:[%s278 + $0x102] sm:$0xff]
    %v1108 = vld [vmem:[%s278 + $0x112] sm:$0xff]
    %v1109 = vpack.c.bf16 %v1094, %v1093
    %v1110 = vpack.c.bf16 %v1096, %v1095
    %v1111 = vpack.c.bf16 %v1098, %v1097
    %v1112 = vpack.c.bf16 %v1100, %v1099
    %v1113 = vpack.c.bf16 %v1102, %v1101
    %v1114 = vpack.c.bf16 %v1104, %v1103
    %v1115 = vpack.c.bf16 %v1106, %v1105
    %v1116 = vpack.c.bf16 %v1108, %v1107
    %s1117 = scalar_lea.vmem %s1, 10
    %v1118 = vld [vmem:[%s1117] sm:$0x3]
    %v1120 = vsel %vm236, %v1109, 0
    %v1123 = vsel %vm236, %v1110, 0
    %v1126 = vsel %vm236, %v1111, 0
    %v1129 = vsel %vm236, %v1112, 0
    %v1132 = vsel %vm236, %v1113, 0
    %v1135 = vsel %vm236, %v1114, 0
    %v1138 = vsel %vm236, %v1115, 0
    %v1141 = vsel %vm236, %v1116, 0
    %v1144 = vsel %vm370, %v1118, 0
    %1146 = vmatprep.subr.bf16.mxu0 0
    %1147 = vmatpush1.bf16.msra.mxu0 %v1144
    %1148 = vmatprep.subr.bf16.mxu0 0
    %1149 = vmatpush1.bf16.msra.mxu0 0
    %1150 = vmatprep.subr.bf16.mxu0 0
    %1151 = vmatpush1.bf16.msra.mxu0 0
    %1152 = vmatprep.subr.bf16.mxu0 0
    %1153 = vmatpush1.bf16.msra.mxu0 0
    %1154 = vmatprep.subr.bf16.mxu0 0
    %1155 = vmatpush1.bf16.msra.mxu0 0
    %1156 = vmatprep.subr.bf16.mxu0 0
    %1157 = vmatpush1.bf16.msra.mxu0 0
    %1158 = vmatprep.subr.bf16.mxu0 0
    %1159 = vmatpush1.bf16.msra.mxu0 0
    %1160 = vmatprep.subr.bf16.mxu0 0
    %1161 = vmatpush1.bf16.msra.mxu0 0
    %1162 = vmatprep.subr.bf16.mxu0 0
    %1163 = vmatpush1.bf16.msra.mxu0 0
    %1164 = vmatprep.subr.bf16.mxu0 0
    %1165 = vmatpush1.bf16.msra.mxu0 0
    %1166 = vmatprep.subr.bf16.mxu0 0
    %1167 = vmatpush1.bf16.msra.mxu0 0
    %1168 = vmatprep.subr.bf16.mxu0 0
    %1169 = vmatpush1.bf16.msra.mxu0 0
    %1170 = vmatprep.subr.bf16.mxu0 0
    %1171 = vmatpush1.bf16.msra.mxu0 0
    %1172 = vmatprep.subr.bf16.mxu0 0
    %1173 = vmatpush1.bf16.msra.mxu0 0
    %1174 = vmatprep.subr.bf16.mxu0 0
    %1175 = vmatpush1.bf16.msra.mxu0 0
    %1176 = vmatprep.subr.bf16.mxu0 0
    %1177 = vmatpush1.bf16.msra.mxu0 0
    %1178 = vmatprep.mubr.bf16.mxu0 0
    %1179 = vmatmul.mubr.bf16.gmra.mrb[0].mxu0 %v1120
    %v1180 = vpop.f32.mrb[0].mxu0
    %v1181 = vadd.f32 0.0, %v1180
    %v1182 = vpop.f32.mrb[0].mxu0
    %v1183 = vpop.f32.mrb[0].mxu0
    %v1184 = vadd.f32 0.0, %v1183
    %v1185 = vpop.f32.mrb[0].mxu0
    %1186 = vmatprep.mubr.bf16.mxu0 0
    %1187 = vmatmul.mubr.bf16.gmra.mrb[0].mxu0 %v1123
    %v1188 = vpop.f32.mrb[0].mxu0
    %v1189 = vadd.f32 0.0, %v1188
    %v1190 = vpop.f32.mrb[0].mxu0
    %v1191 = vpop.f32.mrb[0].mxu0
    %v1192 = vadd.f32 0.0, %v1191
    %v1193 = vpop.f32.mrb[0].mxu0
    %1194 = vmatprep.mubr.bf16.mxu0 0
    %1195 = vmatmul.mubr.bf16.gmra.mrb[0].mxu0 %v1126
    %v1196 = vpop.f32.mrb[0].mxu0
    %v1197 = vadd.f32 0.0, %v1196
    %v1198 = vpop.f32.mrb[0].mxu0
    %v1199 = vpop.f32.mrb[0].mxu0
    %v1200 = vadd.f32 0.0, %v1199
    %v1201 = vpop.f32.mrb[0].mxu0
    %1202 = vmatprep.mubr.bf16.mxu0 0
    %1203 = vmatmul.mubr.bf16.gmra.mrb[0].mxu0 %v1129
    %v1204 = vpop.f32.mrb[0].mxu0
    %v1205 = vadd.f32 0.0, %v1204
    %v1206 = vpop.f32.mrb[0].mxu0
    %v1207 = vpop.f32.mrb[0].mxu0
    %v1208 = vadd.f32 0.0, %v1207
    %v1209 = vpop.f32.mrb[0].mxu0
    %1210 = vmatprep.mubr.bf16.mxu0 0
    %1211 = vmatmul.mubr.bf16.gmra.mrb[0].mxu0 %v1132
    %v1212 = vpop.f32.mrb[0].mxu0
    %v1213 = vadd.f32 0.0, %v1212
    %v1214 = vpop.f32.mrb[0].mxu0
    %v1215 = vpop.f32.mrb[0].mxu0
    %v1216 = vadd.f32 0.0, %v1215
    %v1217 = vpop.f32.mrb[0].mxu0
    %1218 = vmatprep.mubr.bf16.mxu0 0
    %1219 = vmatmul.mubr.bf16.gmra.mrb[0].mxu0 %v1135
    %v1220 = vpop.f32.mrb[0].mxu0
    %v1221 = vadd.f32 0.0, %v1220
    %v1222 = vpop.f32.mrb[0].mxu0
    %v1223 = vpop.f32.mrb[0].mxu0
    %v1224 = vadd.f32 0.0, %v1223
    %v1225 = vpop.f32.mrb[0].mxu0
    %1226 = vmatprep.mubr.bf16.mxu0 0
    %1227 = vmatmul.mubr.bf16.gmra.mrb[0].mxu0 %v1138
    %v1228 = vpop.f32.mrb[0].mxu0
    %v1229 = vadd.f32 0.0, %v1228
    %v1230 = vpop.f32.mrb[0].mxu0
    %v1231 = vpop.f32.mrb[0].mxu0
    %v1232 = vadd.f32 0.0, %v1231
    %v1233 = vpop.f32.mrb[0].mxu0
    %1234 = vmatprep.mubr.bf16.mxu0 0
    %1235 = vmatmul.mubr.bf16.gmra.mrb[0].mxu0 %v1141
    %v1236 = vpop.f32.mrb[0].mxu0
    %v1237 = vadd.f32 0.0, %v1236
    %v1238 = vpop.f32.mrb[0].mxu0
    %v1239 = vpop.f32.mrb[0].mxu0
    %v1240 = vadd.f32 0.0, %v1239
    %v1241 = vpop.f32.mrb[0].mxu0
    %1242 = vdwg.mxu0
    %v1243 = vadd.f32 %v1077, %v1181
    %v1244 = vadd.f32 %v1078, %v1184
    %v1245 = vadd.f32 %v1079, %v1189
    %v1246 = vadd.f32 %v1080, %v1192
    %v1247 = vadd.f32 %v1081, %v1197
    %v1248 = vadd.f32 %v1082, %v1200
    %v1249 = vadd.f32 %v1083, %v1205
    %v1250 = vadd.f32 %v1084, %v1208
    %v1251 = vadd.f32 %v1085, %v1213
    %v1252 = vadd.f32 %v1086, %v1216
    %v1253 = vadd.f32 %v1087, %v1221
    %v1254 = vadd.f32 %v1088, %v1224
    %v1255 = vadd.f32 %v1089, %v1229
    %v1256 = vadd.f32 %v1090, %v1232
    %v1257 = vadd.f32 %v1091, %v1237
    %v1258 = vadd.f32 %v1092, %v1240
    %s1259 = scalar_lea.vmem [#allocation2], 32
    %v1260 = vld [vmem:[%s1259] sm:$0xff]
    %v1261 = vld [vmem:[%s1259 + $0x10] sm:$0xff]
    %v1262 = vld [vmem:[%s1259 + $0x20] sm:$0xff]
    %v1263 = vld [vmem:[%s1259 + $0x30] sm:$0xff]
    %v1264 = vld [vmem:[%s1259 + $0x40] sm:$0xff]
    %v1265 = vld [vmem:[%s1259 + $0x50] sm:$0xff]
    %v1266 = vld [vmem:[%s1259 + $0x60] sm:$0xff]
    %v1267 = vld [vmem:[%s1259 + $0x70] sm:$0xff]
    %v1268 = vld [vmem:[%s1259 + $0xa0] sm:$0xff]
    %v1269 = vld [vmem:[%s1259 + $0xb0] sm:$0xff]
    %v1270 = vld [vmem:[%s1259 + $0xc0] sm:$0xff]
    %v1271 = vld [vmem:[%s1259 + $0xd0] sm:$0xff]
    %v1272 = vld [vmem:[%s1259 + $0xe0] sm:$0xff]
    %v1273 = vld [vmem:[%s1259 + $0xf0] sm:$0xff]
    %v1274 = vld [vmem:[%s1259 + $0x100] sm:$0xff]
    %v1275 = vld [vmem:[%s1259 + $0x110] sm:$0xff]
    %v1276 = vpack.c.bf16 %v1261, %v1260
    %v1277 = vpack.c.bf16 %v1263, %v1262
    %v1278 = vpack.c.bf16 %v1265, %v1264
    %v1279 = vpack.c.bf16 %v1267, %v1266
    %v1280 = vpack.c.bf16 %v1269, %v1268
    %v1281 = vpack.c.bf16 %v1271, %v1270
    %v1282 = vpack.c.bf16 %v1273, %v1272
    %v1283 = vpack.c.bf16 %v1275, %v1274
    %s1284 = scalar_lea.vmem %s1, 12
    %v1285 = vld [vmem:[%s1284] sm:$0x3]
    %v1287 = vsel %vm236, %v1276, 0
    %v1290 = vsel %vm236, %v1277, 0
    %v1293 = vsel %vm236, %v1278, 0
    %v1296 = vsel %vm236, %v1279, 0
    %v1299 = vsel %vm236, %v1280, 0
    %v1302 = vsel %vm236, %v1281, 0
    %v1305 = vsel %vm236, %v1282, 0
    %v1308 = vsel %vm236, %v1283, 0
    %v1311 = vsel %vm370, %v1285, 0
    %1313 = vmatprep.subr.bf16.mxu0 0
    %1314 = vmatpush1.bf16.msra.mxu0 %v1311
    %1315 = vmatprep.subr.bf16.mxu0 0
    %1316 = vmatpush1.bf16.msra.mxu0 0
    %1317 = vmatprep.subr.bf16.mxu0 0
    %1318 = vmatpush1.bf16.msra.mxu0 0
    %1319 = vmatprep.subr.bf16.mxu0 0
    %1320 = vmatpush1.bf16.msra.mxu0 0
    %1321 = vmatprep.subr.bf16.mxu0 0
    %1322 = vmatpush1.bf16.msra.mxu0 0
    %1323 = vmatprep.subr.bf16.mxu0 0
    %1324 = vmatpush1.bf16.msra.mxu0 0
    %1325 = vmatprep.subr.bf16.mxu0 0
    %1326 = vmatpush1.bf16.msra.mxu0 0
    %1327 = vmatprep.subr.bf16.mxu0 0
    %1328 = vmatpush1.bf16.msra.mxu0 0
    %1329 = vmatprep.subr.bf16.mxu0 0
    %1330 = vmatpush1.bf16.msra.mxu0 0
    %1331 = vmatprep.subr.bf16.mxu0 0
    %1332 = vmatpush1.bf16.msra.mxu0 0
    %1333 = vmatprep.subr.bf16.mxu0 0
    %1334 = vmatpush1.bf16.msra.mxu0 0
    %1335 = vmatprep.subr.bf16.mxu0 0
    %1336 = vmatpush1.bf16.msra.mxu0 0
    %1337 = vmatprep.subr.bf16.mxu0 0
    %1338 = vmatpush1.bf16.msra.mxu0 0
    %1339 = vmatprep.subr.bf16.mxu0 0
    %1340 = vmatpush1.bf16.msra.mxu0 0
    %1341 = vmatprep.subr.bf16.mxu0 0
    %1342 = vmatpush1.bf16.msra.mxu0 0
    %1343 = vmatprep.subr.bf16.mxu0 0
    %1344 = vmatpush1.bf16.msra.mxu0 0
    %1345 = vmatprep.mubr.bf16.mxu0 0
    %1346 = vmatmul.mubr.bf16.gmra.mrb[0].mxu0 %v1287
    %v1347 = vpop.f32.mrb[0].mxu0
    %v1348 = vadd.f32 0.0, %v1347
    %v1349 = vpop.f32.mrb[0].mxu0
    %v1350 = vpop.f32.mrb[0].mxu0
    %v1351 = vadd.f32 0.0, %v1350
    %v1352 = vpop.f32.mrb[0].mxu0
    %1353 = vmatprep.mubr.bf16.mxu0 0
    %1354 = vmatmul.mubr.bf16.gmra.mrb[0].mxu0 %v1290
    %v1355 = vpop.f32.mrb[0].mxu0
    %v1356 = vadd.f32 0.0, %v1355
    %v1357 = vpop.f32.mrb[0].mxu0
    %v1358 = vpop.f32.mrb[0].mxu0
    %v1359 = vadd.f32 0.0, %v1358
    %v1360 = vpop.f32.mrb[0].mxu0
    %1361 = vmatprep.mubr.bf16.mxu0 0
    %1362 = vmatmul.mubr.bf16.gmra.mrb[0].mxu0 %v1293
    %v1363 = vpop.f32.mrb[0].mxu0
    %v1364 = vadd.f32 0.0, %v1363
    %v1365 = vpop.f32.mrb[0].mxu0
    %v1366 = vpop.f32.mrb[0].mxu0
    %v1367 = vadd.f32 0.0, %v1366
    %v1368 = vpop.f32.mrb[0].mxu0
    %1369 = vmatprep.mubr.bf16.mxu0 0
    %1370 = vmatmul.mubr.bf16.gmra.mrb[0].mxu0 %v1296
    %v1371 = vpop.f32.mrb[0].mxu0
    %v1372 = vadd.f32 0.0, %v1371
    %v1373 = vpop.f32.mrb[0].mxu0
    %v1374 = vpop.f32.mrb[0].mxu0
    %v1375 = vadd.f32 0.0, %v1374
    %v1376 = vpop.f32.mrb[0].mxu0
    %1377 = vmatprep.mubr.bf16.mxu0 0
    %1378 = vmatmul.mubr.bf16.gmra.mrb[0].mxu0 %v1299
    %v1379 = vpop.f32.mrb[0].mxu0
    %v1380 = vadd.f32 0.0, %v1379
    %v1381 = vpop.f32.mrb[0].mxu0
    %v1382 = vpop.f32.mrb[0].mxu0
    %v1383 = vadd.f32 0.0, %v1382
    %v1384 = vpop.f32.mrb[0].mxu0
    %1385 = vmatprep.mubr.bf16.mxu0 0
    %1386 = vmatmul.mubr.bf16.gmra.mrb[0].mxu0 %v1302
    %v1387 = vpop.f32.mrb[0].mxu0
    %v1388 = vadd.f32 0.0, %v1387
    %v1389 = vpop.f32.mrb[0].mxu0
    %v1390 = vpop.f32.mrb[0].mxu0
    %v1391 = vadd.f32 0.0, %v1390
    %v1392 = vpop.f32.mrb[0].mxu0
    %1393 = vmatprep.mubr.bf16.mxu0 0
    %1394 = vmatmul.mubr.bf16.gmra.mrb[0].mxu0 %v1305
    %v1395 = vpop.f32.mrb[0].mxu0
    %v1396 = vadd.f32 0.0, %v1395
    %v1397 = vpop.f32.mrb[0].mxu0
    %v1398 = vpop.f32.mrb[0].mxu0
    %v1399 = vadd.f32 0.0, %v1398
    %v1400 = vpop.f32.mrb[0].mxu0
    %1401 = vmatprep.mubr.bf16.mxu0 0
    %1402 = vmatmul.mubr.bf16.gmra.mrb[0].mxu0 %v1308
    %v1403 = vpop.f32.mrb[0].mxu0
    %v1404 = vadd.f32 0.0, %v1403
    %v1405 = vpop.f32.mrb[0].mxu0
    %v1406 = vpop.f32.mrb[0].mxu0
    %v1407 = vadd.f32 0.0, %v1406
    %v1408 = vpop.f32.mrb[0].mxu0
    %1409 = vdwg.mxu0
    %v1410 = vadd.f32 %v1243, %v1348
    %v1411 = vadd.f32 %v1244, %v1351
    %v1412 = vadd.f32 %v1245, %v1356
    %v1413 = vadd.f32 %v1246, %v1359
    %v1414 = vadd.f32 %v1247, %v1364
    %v1415 = vadd.f32 %v1248, %v1367
    %v1416 = vadd.f32 %v1249, %v1372
    %v1417 = vadd.f32 %v1250, %v1375
    %v1418 = vadd.f32 %v1251, %v1380
    %v1419 = vadd.f32 %v1252, %v1383
    %v1420 = vadd.f32 %v1253, %v1388
    %v1421 = vadd.f32 %v1254, %v1391
    %v1422 = vadd.f32 %v1255, %v1396
    %v1423 = vadd.f32 %v1256, %v1399
    %v1424 = vadd.f32 %v1257, %v1404
    %v1425 = vadd.f32 %v1258, %v1407
    %v1426 = vld [vmem:[%s1259 + $0x1] sm:$0xff]
    %v1427 = vld [vmem:[%s1259 + $0x11] sm:$0xff]
    %v1428 = vld [vmem:[%s1259 + $0x21] sm:$0xff]
    %v1429 = vld [vmem:[%s1259 + $0x31] sm:$0xff]
    %v1430 = vld [vmem:[%s1259 + $0x41] sm:$0xff]
    %v1431 = vld [vmem:[%s1259 + $0x51] sm:$0xff]
    %v1432 = vld [vmem:[%s1259 + $0x61] sm:$0xff]
    %v1433 = vld [vmem:[%s1259 + $0x71] sm:$0xff]
    %v1434 = vld [vmem:[%s1259 + $0xa1] sm:$0xff]
    %v1435 = vld [vmem:[%s1259 + $0xb1] sm:$0xff]
    %v1436 = vld [vmem:[%s1259 + $0xc1] sm:$0xff]
    %v1437 = vld [vmem:[%s1259 + $0xd1] sm:$0xff]
    %v1438 = vld [vmem:[%s1259 + $0xe1] sm:$0xff]
    %v1439 = vld [vmem:[%s1259 + $0xf1] sm:$0xff]
    %v1440 = vld [vmem:[%s1259 + $0x101] sm:$0xff]
    %v1441 = vld [vmem:[%s1259 + $0x111] sm:$0xff]
    %v1442 = vpack.c.bf16 %v1427, %v1426
    %v1443 = vpack.c.bf16 %v1429, %v1428
    %v1444 = vpack.c.bf16 %v1431, %v1430
    %v1445 = vpack.c.bf16 %v1433, %v1432
    %v1446 = vpack.c.bf16 %v1435, %v1434
    %v1447 = vpack.c.bf16 %v1437, %v1436
    %v1448 = vpack.c.bf16 %v1439, %v1438
    %v1449 = vpack.c.bf16 %v1441, %v1440
    %s1450 = scalar_lea.vmem %s1, 14
    %v1451 = vld [vmem:[%s1450] sm:$0x3]
    %v1453 = vsel %vm236, %v1442, 0
    %v1456 = vsel %vm236, %v1443, 0
    %v1459 = vsel %vm236, %v1444, 0
    %v1462 = vsel %vm236, %v1445, 0
    %v1465 = vsel %vm236, %v1446, 0
    %v1468 = vsel %vm236, %v1447, 0
    %v1471 = vsel %vm236, %v1448, 0
    %v1474 = vsel %vm236, %v1449, 0
    %v1477 = vsel %vm370, %v1451, 0
    %1479 = vmatprep.subr.bf16.mxu0 0
    %1480 = vmatpush1.bf16.msra.mxu0 %v1477
    %1481 = vmatprep.subr.bf16.mxu0 0
    %1482 = vmatpush1.bf16.msra.mxu0 0
    %1483 = vmatprep.subr.bf16.mxu0 0
    %1484 = vmatpush1.bf16.msra.mxu0 0
    %1485 = vmatprep.subr.bf16.mxu0 0
    %1486 = vmatpush1.bf16.msra.mxu0 0
    %1487 = vmatprep.subr.bf16.mxu0 0
    %1488 = vmatpush1.bf16.msra.mxu0 0
    %1489 = vmatprep.subr.bf16.mxu0 0
    %1490 = vmatpush1.bf16.msra.mxu0 0
    %1491 = vmatprep.subr.bf16.mxu0 0
    %1492 = vmatpush1.bf16.msra.mxu0 0
    %1493 = vmatprep.subr.bf16.mxu0 0
    %1494 = vmatpush1.bf16.msra.mxu0 0
    %1495 = vmatprep.subr.bf16.mxu0 0
    %1496 = vmatpush1.bf16.msra.mxu0 0
    %1497 = vmatprep.subr.bf16.mxu0 0
    %1498 = vmatpush1.bf16.msra.mxu0 0
    %1499 = vmatprep.subr.bf16.mxu0 0
    %1500 = vmatpush1.bf16.msra.mxu0 0
    %1501 = vmatprep.subr.bf16.mxu0 0
    %1502 = vmatpush1.bf16.msra.mxu0 0
    %1503 = vmatprep.subr.bf16.mxu0 0
    %1504 = vmatpush1.bf16.msra.mxu0 0
    %1505 = vmatprep.subr.bf16.mxu0 0
    %1506 = vmatpush1.bf16.msra.mxu0 0
    %1507 = vmatprep.subr.bf16.mxu0 0
    %1508 = vmatpush1.bf16.msra.mxu0 0
    %1509 = vmatprep.subr.bf16.mxu0 0
    %1510 = vmatpush1.bf16.msra.mxu0 0
    %1511 = vmatprep.mubr.bf16.mxu0 0
    %1512 = vmatmul.mubr.bf16.gmra.mrb[0].mxu0 %v1453
    %v1513 = vpop.f32.mrb[0].mxu0
    %v1514 = vadd.f32 0.0, %v1513
    %v1515 = vpop.f32.mrb[0].mxu0
    %v1516 = vpop.f32.mrb[0].mxu0
    %v1517 = vadd.f32 0.0, %v1516
    %v1518 = vpop.f32.mrb[0].mxu0
    %1519 = vmatprep.mubr.bf16.mxu0 0
    %1520 = vmatmul.mubr.bf16.gmra.mrb[0].mxu0 %v1456
    %v1521 = vpop.f32.mrb[0].mxu0
    %v1522 = vadd.f32 0.0, %v1521
    %v1523 = vpop.f32.mrb[0].mxu0
    %v1524 = vpop.f32.mrb[0].mxu0
    %v1525 = vadd.f32 0.0, %v1524
    %v1526 = vpop.f32.mrb[0].mxu0
    %1527 = vmatprep.mubr.bf16.mxu0 0
    %1528 = vmatmul.mubr.bf16.gmra.mrb[0].mxu0 %v1459
    %v1529 = vpop.f32.mrb[0].mxu0
    %v1530 = vadd.f32 0.0, %v1529
    %v1531 = vpop.f32.mrb[0].mxu0
    %v1532 = vpop.f32.mrb[0].mxu0
    %v1533 = vadd.f32 0.0, %v1532
    %v1534 = vpop.f32.mrb[0].mxu0
    %1535 = vmatprep.mubr.bf16.mxu0 0
    %1536 = vmatmul.mubr.bf16.gmra.mrb[0].mxu0 %v1462
    %v1537 = vpop.f32.mrb[0].mxu0
    %v1538 = vadd.f32 0.0, %v1537
    %v1539 = vpop.f32.mrb[0].mxu0
    %v1540 = vpop.f32.mrb[0].mxu0
    %v1541 = vadd.f32 0.0, %v1540
    %v1542 = vpop.f32.mrb[0].mxu0
    %1543 = vmatprep.mubr.bf16.mxu0 0
    %1544 = vmatmul.mubr.bf16.gmra.mrb[0].mxu0 %v1465
    %v1545 = vpop.f32.mrb[0].mxu0
    %v1546 = vadd.f32 0.0, %v1545
    %v1547 = vpop.f32.mrb[0].mxu0
    %v1548 = vpop.f32.mrb[0].mxu0
    %v1549 = vadd.f32 0.0, %v1548
    %v1550 = vpop.f32.mrb[0].mxu0
    %1551 = vmatprep.mubr.bf16.mxu0 0
    %1552 = vmatmul.mubr.bf16.gmra.mrb[0].mxu0 %v1468
    %v1553 = vpop.f32.mrb[0].mxu0
    %v1554 = vadd.f32 0.0, %v1553
    %v1555 = vpop.f32.mrb[0].mxu0
    %v1556 = vpop.f32.mrb[0].mxu0
    %v1557 = vadd.f32 0.0, %v1556
    %v1558 = vpop.f32.mrb[0].mxu0
    %1559 = vmatprep.mubr.bf16.mxu0 0
    %1560 = vmatmul.mubr.bf16.gmra.mrb[0].mxu0 %v1471
    %v1561 = vpop.f32.mrb[0].mxu0
    %v1562 = vadd.f32 0.0, %v1561
    %v1563 = vpop.f32.mrb[0].mxu0
    %v1564 = vpop.f32.mrb[0].mxu0
    %v1565 = vadd.f32 0.0, %v1564
    %v1566 = vpop.f32.mrb[0].mxu0
    %1567 = vmatprep.mubr.bf16.mxu0 0
    %1568 = vmatmul.mubr.bf16.gmra.mrb[0].mxu0 %v1474
    %v1569 = vpop.f32.mrb[0].mxu0
    %v1570 = vadd.f32 0.0, %v1569
    %v1571 = vpop.f32.mrb[0].mxu0
    %v1572 = vpop.f32.mrb[0].mxu0
    %v1573 = vadd.f32 0.0, %v1572
    %v1574 = vpop.f32.mrb[0].mxu0
    %1575 = vdwg.mxu0
    %v1576 = vadd.f32 %v1410, %v1514
    %v1577 = vadd.f32 %v1411, %v1517
    %v1578 = vadd.f32 %v1412, %v1522
    %v1579 = vadd.f32 %v1413, %v1525
    %v1580 = vadd.f32 %v1414, %v1530
    %v1581 = vadd.f32 %v1415, %v1533
    %v1582 = vadd.f32 %v1416, %v1538
    %v1583 = vadd.f32 %v1417, %v1541
    %v1584 = vadd.f32 %v1418, %v1546
    %v1585 = vadd.f32 %v1419, %v1549
    %v1586 = vadd.f32 %v1420, %v1554
    %v1587 = vadd.f32 %v1421, %v1557
    %v1588 = vadd.f32 %v1422, %v1562
    %v1589 = vadd.f32 %v1423, %v1565
    %v1590 = vadd.f32 %v1424, %v1570
    %v1591 = vadd.f32 %v1425, %v1573
    %v1592 = vld [vmem:[%s1259 + $0x2] sm:$0xff]
    %v1593 = vld [vmem:[%s1259 + $0x12] sm:$0xff]
    %v1594 = vld [vmem:[%s1259 + $0x22] sm:$0xff]
    %v1595 = vld [vmem:[%s1259 + $0x32] sm:$0xff]
    %v1596 = vld [vmem:[%s1259 + $0x42] sm:$0xff]
    %v1597 = vld [vmem:[%s1259 + $0x52] sm:$0xff]
    %v1598 = vld [vmem:[%s1259 + $0x62] sm:$0xff]
    %v1599 = vld [vmem:[%s1259 + $0x72] sm:$0xff]
    %v1600 = vld [vmem:[%s1259 + $0xa2] sm:$0xff]
    %v1601 = vld [vmem:[%s1259 + $0xb2] sm:$0xff]
    %v1602 = vld [vmem:[%s1259 + $0xc2] sm:$0xff]
    %v1603 = vld [vmem:[%s1259 + $0xd2] sm:$0xff]
    %v1604 = vld [vmem:[%s1259 + $0xe2] sm:$0xff]
    %v1605 = vld [vmem:[%s1259 + $0xf2] sm:$0xff]
    %v1606 = vld [vmem:[%s1259 + $0x102] sm:$0xff]
    %v1607 = vld [vmem:[%s1259 + $0x112] sm:$0xff]
    %v1608 = vpack.c.bf16 %v1593, %v1592
    %v1609 = vpack.c.bf16 %v1595, %v1594
    %v1610 = vpack.c.bf16 %v1597, %v1596
    %v1611 = vpack.c.bf16 %v1599, %v1598
    %v1612 = vpack.c.bf16 %v1601, %v1600
    %v1613 = vpack.c.bf16 %v1603, %v1602
    %v1614 = vpack.c.bf16 %v1605, %v1604
    %v1615 = vpack.c.bf16 %v1607, %v1606
    %s1616 = scalar_lea.vmem %s1, 16
    %v1617 = vld [vmem:[%s1616] sm:$0x3]
    %v1619 = vsel %vm236, %v1608, 0
    %v1622 = vsel %vm236, %v1609, 0
    %v1625 = vsel %vm236, %v1610, 0
    %v1628 = vsel %vm236, %v1611, 0
    %v1631 = vsel %vm236, %v1612, 0
    %v1634 = vsel %vm236, %v1613, 0
    %v1637 = vsel %vm236, %v1614, 0
    %v1640 = vsel %vm236, %v1615, 0
    %v1643 = vsel %vm370, %v1617, 0
    %1645 = vmatprep.subr.bf16.mxu0 0
    %1646 = vmatpush1.bf16.msra.mxu0 %v1643
    %1647 = vmatprep.subr.bf16.mxu0 0
    %1648 = vmatpush1.bf16.msra.mxu0 0
    %1649 = vmatprep.subr.bf16.mxu0 0
    %1650 = vmatpush1.bf16.msra.mxu0 0
    %1651 = vmatprep.subr.bf16.mxu0 0
    %1652 = vmatpush1.bf16.msra.mxu0 0
    %1653 = vmatprep.subr.bf16.mxu0 0
    %1654 = vmatpush1.bf16.msra.mxu0 0
    %1655 = vmatprep.subr.bf16.mxu0 0
    %1656 = vmatpush1.bf16.msra.mxu0 0
    %1657 = vmatprep.subr.bf16.mxu0 0
    %1658 = vmatpush1.bf16.msra.mxu0 0
    %1659 = vmatprep.subr.bf16.mxu0 0
    %1660 = vmatpush1.bf16.msra.mxu0 0
    %1661 = vmatprep.subr.bf16.mxu0 0
    %1662 = vmatpush1.bf16.msra.mxu0 0
    %1663 = vmatprep.subr.bf16.mxu0 0
    %1664 = vmatpush1.bf16.msra.mxu0 0
    %1665 = vmatprep.subr.bf16.mxu0 0
    %1666 = vmatpush1.bf16.msra.mxu0 0
    %1667 = vmatprep.subr.bf16.mxu0 0
    %1668 = vmatpush1.bf16.msra.mxu0 0
    %1669 = vmatprep.subr.bf16.mxu0 0
    %1670 = vmatpush1.bf16.msra.mxu0 0
    %1671 = vmatprep.subr.bf16.mxu0 0
    %1672 = vmatpush1.bf16.msra.mxu0 0
    %1673 = vmatprep.subr.bf16.mxu0 0
    %1674 = vmatpush1.bf16.msra.mxu0 0
    %1675 = vmatprep.subr.bf16.mxu0 0
    %1676 = vmatpush1.bf16.msra.mxu0 0
    %1677 = vmatprep.mubr.bf16.mxu0 0
    %1678 = vmatmul.mubr.bf16.gmra.mrb[0].mxu0 %v1619
    %v1679 = vpop.f32.mrb[0].mxu0
    %v1680 = vadd.f32 0.0, %v1679
    %v1681 = vpop.f32.mrb[0].mxu0
    %v1682 = vpop.f32.mrb[0].mxu0
    %v1683 = vadd.f32 0.0, %v1682
    %v1684 = vpop.f32.mrb[0].mxu0
    %1685 = vmatprep.mubr.bf16.mxu0 0
    %1686 = vmatmul.mubr.bf16.gmra.mrb[0].mxu0 %v1622
    %v1687 = vpop.f32.mrb[0].mxu0
    %v1688 = vadd.f32 0.0, %v1687
    %v1689 = vpop.f32.mrb[0].mxu0
    %v1690 = vpop.f32.mrb[0].mxu0
    %v1691 = vadd.f32 0.0, %v1690
    %v1692 = vpop.f32.mrb[0].mxu0
    %1693 = vmatprep.mubr.bf16.mxu0 0
    %1694 = vmatmul.mubr.bf16.gmra.mrb[0].mxu0 %v1625
    %v1695 = vpop.f32.mrb[0].mxu0
    %v1696 = vadd.f32 0.0, %v1695
    %v1697 = vpop.f32.mrb[0].mxu0
    %v1698 = vpop.f32.mrb[0].mxu0
    %v1699 = vadd.f32 0.0, %v1698
    %v1700 = vpop.f32.mrb[0].mxu0
    %1701 = vmatprep.mubr.bf16.mxu0 0
    %1702 = vmatmul.mubr.bf16.gmra.mrb[0].mxu0 %v1628
    %v1703 = vpop.f32.mrb[0].mxu0
    %v1704 = vadd.f32 0.0, %v1703
    %v1705 = vpop.f32.mrb[0].mxu0
    %v1706 = vpop.f32.mrb[0].mxu0
    %v1707 = vadd.f32 0.0, %v1706
    %v1708 = vpop.f32.mrb[0].mxu0
    %1709 = vmatprep.mubr.bf16.mxu0 0
    %1710 = vmatmul.mubr.bf16.gmra.mrb[0].mxu0 %v1631
    %v1711 = vpop.f32.mrb[0].mxu0
    %v1712 = vadd.f32 0.0, %v1711
    %v1713 = vpop.f32.mrb[0].mxu0
    %v1714 = vpop.f32.mrb[0].mxu0
    %v1715 = vadd.f32 0.0, %v1714
    %v1716 = vpop.f32.mrb[0].mxu0
    %1717 = vmatprep.mubr.bf16.mxu0 0
    %1718 = vmatmul.mubr.bf16.gmra.mrb[0].mxu0 %v1634
    %v1719 = vpop.f32.mrb[0].mxu0
    %v1720 = vadd.f32 0.0, %v1719
    %v1721 = vpop.f32.mrb[0].mxu0
    %v1722 = vpop.f32.mrb[0].mxu0
    %v1723 = vadd.f32 0.0, %v1722
    %v1724 = vpop.f32.mrb[0].mxu0
    %1725 = vmatprep.mubr.bf16.mxu0 0
    %1726 = vmatmul.mubr.bf16.gmra.mrb[0].mxu0 %v1637
    %v1727 = vpop.f32.mrb[0].mxu0
    %v1728 = vadd.f32 0.0, %v1727
    %v1729 = vpop.f32.mrb[0].mxu0
    %v1730 = vpop.f32.mrb[0].mxu0
    %v1731 = vadd.f32 0.0, %v1730
    %v1732 = vpop.f32.mrb[0].mxu0
    %1733 = vmatprep.mubr.bf16.mxu0 0
    %1734 = vmatmul.mubr.bf16.gmra.mrb[0].mxu0 %v1640
    %v1735 = vpop.f32.mrb[0].mxu0
    %v1736 = vadd.f32 0.0, %v1735
    %v1737 = vpop.f32.mrb[0].mxu0
    %v1738 = vpop.f32.mrb[0].mxu0
    %v1739 = vadd.f32 0.0, %v1738
    %v1740 = vpop.f32.mrb[0].mxu0
    %1741 = vdwg.mxu0
    %v1742 = vadd.f32 %v1576, %v1680
    %v1743 = vadd.f32 %v1577, %v1683
    %v1744 = vadd.f32 %v1578, %v1688
    %v1745 = vadd.f32 %v1579, %v1691
    %v1746 = vadd.f32 %v1580, %v1696
    %v1747 = vadd.f32 %v1581, %v1699
    %v1748 = vadd.f32 %v1582, %v1704
    %v1749 = vadd.f32 %v1583, %v1707
    %v1750 = vadd.f32 %v1584, %v1712
    %v1751 = vadd.f32 %v1585, %v1715
    %v1752 = vadd.f32 %v1586, %v1720
    %v1753 = vadd.f32 %v1587, %v1723
    %v1754 = vadd.f32 %v1588, %v1728
    %v1755 = vadd.f32 %v1589, %v1731
    %v1756 = vadd.f32 %v1590, %v1736
    %v1757 = vadd.f32 %v1591, %v1739
    %v1758 = vld [vmem:[%s2] sm:$0x1]
    %v1760 = vlaneseq
    %v1761 = vshrl.u32 %v1760, 7
    %v1762 = vsub.s32 0, %v1761
    %v1763 = vrot.slane %v1758, %v1762
    %v1765 = vmul.f32 %v1742, %v1763
    %v1766 = vmul.f32 %v1743, %v1763
    %v1767 = vmul.f32 %v1744, %v1763
    %v1768 = vmul.f32 %v1745, %v1763
    %v1769 = vmul.f32 %v1746, %v1763
    %v1770 = vmul.f32 %v1747, %v1763
    %v1771 = vmul.f32 %v1748, %v1763
    %v1772 = vmul.f32 %v1749, %v1763
    %v1773 = vmul.f32 %v1750, %v1763
    %v1774 = vmul.f32 %v1751, %v1763
    %v1775 = vmul.f32 %v1752, %v1763
    %v1776 = vmul.f32 %v1753, %v1763
    %v1777 = vmul.f32 %v1754, %v1763
    %v1778 = vmul.f32 %v1755, %v1763
    %v1779 = vmul.f32 %v1756, %v1763
    %v1780 = vmul.f32 %v1757, %v1763
    %v1781 = vld [vmem:[%s3] sm:$0x1]
    %v1783 = vlaneseq
    %v1784 = vshrl.u32 %v1783, 7
    %v1785 = vsub.s32 0, %v1784
    %v1786 = vrot.slane %v1781, %v1785
    %v1788 = vadd.f32 %v1765, %v1786
    %v1789 = vadd.f32 %v1766, %v1786
    %v1790 = vadd.f32 %v1767, %v1786
    %v1791 = vadd.f32 %v1768, %v1786
    %v1792 = vadd.f32 %v1769, %v1786
    %v1793 = vadd.f32 %v1770, %v1786
    %v1794 = vadd.f32 %v1771, %v1786
    %v1795 = vadd.f32 %v1772, %v1786
    %v1796 = vadd.f32 %v1773, %v1786
    %v1797 = vadd.f32 %v1774, %v1786
    %v1798 = vadd.f32 %v1775, %v1786
    %v1799 = vadd.f32 %v1776, %v1786
    %v1800 = vadd.f32 %v1777, %v1786
    %v1801 = vadd.f32 %v1778, %v1786
    %v1802 = vadd.f32 %v1779, %v1786
    %v1803 = vadd.f32 %v1780, %v1786
    %v1804 = vmax.f32 %v1788, 0.0
    %v1805 = vmax.f32 %v1789, 0.0
    %v1806 = vmax.f32 %v1790, 0.0
    %v1807 = vmax.f32 %v1791, 0.0
    %v1808 = vmax.f32 %v1792, 0.0
    %v1809 = vmax.f32 %v1793, 0.0
    %v1810 = vmax.f32 %v1794, 0.0
    %v1811 = vmax.f32 %v1795, 0.0
    %v1812 = vmax.f32 %v1796, 0.0
    %v1813 = vmax.f32 %v1797, 0.0
    %v1814 = vmax.f32 %v1798, 0.0
    %v1815 = vmax.f32 %v1799, 0.0
    %v1816 = vmax.f32 %v1800, 0.0
    %v1817 = vmax.f32 %v1801, 0.0
    %v1818 = vmax.f32 %v1802, 0.0
    %v1819 = vmax.f32 %v1803, 0.0
    %vm1820 = vcmask 261120
    %1821 = vst.msk [vmem:[#allocation3] sm:$0xff] %vm1820, 0.0
    %vm1822 = vcmask 254976
    %1823 = vst.msk [vmem:[#allocation3 + $0x8] sm:$0x3] %vm1822, 0.0
    %1824 = vst.msk [vmem:[#allocation3 + $0x10] sm:$0xff] %vm1820, 0.0
    %1825 = vst.msk [vmem:[#allocation3 + $0x18] sm:$0x3] %vm1822, 0.0
    %1826 = vst.msk [vmem:[#allocation3 + $0x20] sm:$0xff] %vm1820, 0.0
    %1827 = vst.msk [vmem:[#allocation3 + $0x28] sm:$0x3] %vm1822, 0.0
    %1828 = vst.msk [vmem:[#allocation3 + $0x30] sm:$0xff] %vm1820, 0.0
    %1829 = vst.msk [vmem:[#allocation3 + $0x38] sm:$0x3] %vm1822, 0.0
    %1830 = vst.msk [vmem:[#allocation3 + $0x40] sm:$0xff] %vm1820, 0.0
    %1831 = vst.msk [vmem:[#allocation3 + $0x48] sm:$0x3] %vm1822, 0.0
    %1832 = vst.msk [vmem:[#allocation3 + $0x50] sm:$0xff] %vm1820, 0.0
    %1833 = vst.msk [vmem:[#allocation3 + $0x58] sm:$0x3] %vm1822, 0.0
    %1834 = vst.msk [vmem:[#allocation3 + $0x60] sm:$0xff] %vm1820, 0.0
    %1835 = vst.msk [vmem:[#allocation3 + $0x68] sm:$0x3] %vm1822, 0.0
    %1836 = vst.msk [vmem:[#allocation3 + $0x70] sm:$0xff] %vm1820, 0.0
    %1837 = vst.msk [vmem:[#allocation3 + $0x78] sm:$0x3] %vm1822, 0.0
    %1838 = vst.msk [vmem:[#allocation3 + $0x80] sm:$0xff] %vm1820, 0.0
    %1839 = vst.msk [vmem:[#allocation3 + $0x88] sm:$0x3] %vm1822, 0.0
    %1840 = vst.msk [vmem:[#allocation3 + $0x90] sm:$0xff] %vm1820, 0.0
    %1841 = vst.msk [vmem:[#allocation3 + $0x98] sm:$0x3] %vm1822, 0.0
    %1842 = vst.msk [vmem:[#allocation3 + $0xa0] sm:$0xff] %vm1820, 0.0
    %1843 = vst.msk [vmem:[#allocation3 + $0xa8] sm:$0x3] %vm1822, 0.0
    %1844 = vst.msk [vmem:[#allocation3 + $0xb0] sm:$0xff] %vm1820, 0.0
    %1845 = vst.msk [vmem:[#allocation3 + $0xb8] sm:$0x3] %vm1822, 0.0
    %1846 = vst.msk [vmem:[#allocation3 + $0xc0] sm:$0xff] %vm1820, 0.0
    %1847 = vst.msk [vmem:[#allocation3 + $0xc8] sm:$0x3] %vm1822, 0.0
    %1848 = vst.msk [vmem:[#allocation3 + $0xd0] sm:$0xff] %vm1820, 0.0
    %1849 = vst.msk [vmem:[#allocation3 + $0xd8] sm:$0x3] %vm1822, 0.0
    %1850 = vst.msk [vmem:[#allocation3 + $0xe0] sm:$0xff] %vm1820, 0.0
    %1851 = vst.msk [vmem:[#allocation3 + $0xe8] sm:$0x3] %vm1822, 0.0
    %1852 = vst.msk [vmem:[#allocation3 + $0xf0] sm:$0xff] %vm1820, 0.0
    %1853 = vst.msk [vmem:[#allocation3 + $0xf8] sm:$0x3] %vm1822, 0.0
    %1854 = vst.msk [vmem:[#allocation3 + $0x100] sm:$0xff] %vm1820, 0.0
    %1855 = vst.msk [vmem:[#allocation3 + $0x108] sm:$0x3] %vm1822, 0.0
    %1856 = vst.msk [vmem:[#allocation3 + $0x110] sm:$0xff] %vm1820, 0.0
    %1857 = vst.msk [vmem:[#allocation3 + $0x118] sm:$0x3] %vm1822, 0.0
    %1858 = vst.msk [vmem:[#allocation3 + $0x120] sm:$0xff] %vm1820, 0.0
    %1859 = vst.msk [vmem:[#allocation3 + $0x128] sm:$0x3] %vm1822, 0.0
    %1860 = vst.msk [vmem:[#allocation3 + $0x130] sm:$0xff] %vm1820, 0.0
    %1861 = vst.msk [vmem:[#allocation3 + $0x138] sm:$0x3] %vm1822, 0.0
    %s1862 = scalar_lea.vmem [#allocation3], 16
    %1863 = vst.msk [vmem:[%s1862 + $0x1] sm:$0xff] %vm1820, %v1804
    %1864 = vst.msk [vmem:[%s1862 + $0x11] sm:$0xff] %vm1820, %v1805
    %1865 = vst.msk [vmem:[%s1862 + $0x21] sm:$0xff] %vm1820, %v1806
    %1866 = vst.msk [vmem:[%s1862 + $0x31] sm:$0xff] %vm1820, %v1807
    %1867 = vst.msk [vmem:[%s1862 + $0x41] sm:$0xff] %vm1820, %v1808
    %1868 = vst.msk [vmem:[%s1862 + $0x51] sm:$0xff] %vm1820, %v1809
    %1869 = vst.msk [vmem:[%s1862 + $0x61] sm:$0xff] %vm1820, %v1810
    %1870 = vst.msk [vmem:[%s1862 + $0x71] sm:$0xff] %vm1820, %v1811
    %1871 = vst.msk [vmem:[%s1862 + $0xa1] sm:$0xff] %vm1820, %v1812
    %1872 = vst.msk [vmem:[%s1862 + $0xb1] sm:$0xff] %vm1820, %v1813
    %1873 = vst.msk [vmem:[%s1862 + $0xc1] sm:$0xff] %vm1820, %v1814
    %1874 = vst.msk [vmem:[%s1862 + $0xd1] sm:$0xff] %vm1820, %v1815
    %1875 = vst.msk [vmem:[%s1862 + $0xe1] sm:$0xff] %vm1820, %v1816
    %1876 = vst.msk [vmem:[%s1862 + $0xf1] sm:$0xff] %vm1820, %v1817
    %1877 = vst.msk [vmem:[%s1862 + $0x101] sm:$0xff] %vm1820, %v1818
    %1878 = vst.msk [vmem:[%s1862 + $0x111] sm:$0xff] %vm1820, %v1819
    %v1879 = vld [vmem:[#allocation3] sm:$0xff]
    %v1880 = vld [vmem:[#allocation3 + $0x10] sm:$0xff]
    %v1881 = vld [vmem:[#allocation3 + $0x20] sm:$0xff]
    %v1882 = vld [vmem:[#allocation3 + $0x30] sm:$0xff]
    %v1883 = vld [vmem:[#allocation3 + $0x40] sm:$0xff]
    %v1884 = vld [vmem:[#allocation3 + $0x50] sm:$0xff]
    %v1885 = vld [vmem:[#allocation3 + $0x60] sm:$0xff]
    %v1886 = vld [vmem:[#allocation3 + $0x70] sm:$0xff]
    %v1887 = vld [vmem:[#allocation3 + $0xa0] sm:$0xff]
    %v1888 = vld [vmem:[#allocation3 + $0xb0] sm:$0xff]
    %v1889 = vld [vmem:[#allocation3 + $0xc0] sm:$0xff]
    %v1890 = vld [vmem:[#allocation3 + $0xd0] sm:$0xff]
    %v1891 = vld [vmem:[#allocation3 + $0xe0] sm:$0xff]
    %v1892 = vld [vmem:[#allocation3 + $0xf0] sm:$0xff]
    %v1893 = vld [vmem:[#allocation3 + $0x100] sm:$0xff]
    %v1894 = vld [vmem:[#allocation3 + $0x110] sm:$0xff]
    %v1895 = vpack.c.bf16 %v1880, %v1879
    %v1896 = vpack.c.bf16 %v1882, %v1881
    %v1897 = vpack.c.bf16 %v1884, %v1883
    %v1898 = vpack.c.bf16 %v1886, %v1885
    %v1899 = vpack.c.bf16 %v1888, %v1887
    %v1900 = vpack.c.bf16 %v1890, %v1889
    %v1901 = vpack.c.bf16 %v1892, %v1891
    %v1902 = vpack.c.bf16 %v1894, %v1893
    %v1903 = vld [vmem:[%s4] sm:$0xf]
    %v1904 = vld [vmem:[%s4 + $0x4] sm:$0xf]
    %v1905 = vld [vmem:[%s4 + $0x8] sm:$0xf]
    %v1906 = vld [vmem:[%s4 + $0xc] sm:$0xf]
    %v1907 = vld [vmem:[#allocation3 + $0x1] sm:$0xff]
    %v1908 = vld [vmem:[#allocation3 + $0x11] sm:$0xff]
    %v1909 = vld [vmem:[#allocation3 + $0x21] sm:$0xff]
    %v1910 = vld [vmem:[#allocation3 + $0x31] sm:$0xff]
    %v1911 = vld [vmem:[#allocation3 + $0x41] sm:$0xff]
    %v1912 = vld [vmem:[#allocation3 + $0x51] sm:$0xff]
    %v1913 = vld [vmem:[#allocation3 + $0x61] sm:$0xff]
    %v1914 = vld [vmem:[#allocation3 + $0x71] sm:$0xff]
    %v1915 = vld [vmem:[#allocation3 + $0xa1] sm:$0xff]
    %v1916 = vld [vmem:[#allocation3 + $0xb1] sm:$0xff]
    %v1917 = vld [vmem:[#allocation3 + $0xc1] sm:$0xff]
    %v1918 = vld [vmem:[#allocation3 + $0xd1] sm:$0xff]
    %v1919 = vld [vmem:[#allocation3 + $0xe1] sm:$0xff]
    %v1920 = vld [vmem:[#allocation3 + $0xf1] sm:$0xff]
    %v1921 = vld [vmem:[#allocation3 + $0x101] sm:$0xff]
    %v1922 = vld [vmem:[#allocation3 + $0x111] sm:$0xff]
    %v1923 = vpack.c.bf16 %v1908, %v1907
    %v1924 = vpack.c.bf16 %v1910, %v1909
    %v1925 = vpack.c.bf16 %v1912, %v1911
    %v1926 = vpack.c.bf16 %v1914, %v1913
    %v1927 = vpack.c.bf16 %v1916, %v1915
    %v1928 = vpack.c.bf16 %v1918, %v1917
    %v1929 = vpack.c.bf16 %v1920, %v1919
    %v1930 = vpack.c.bf16 %v1922, %v1921
    %s1931 = scalar_lea.vmem %s4, 16
    %v1932 = vld [vmem:[%s1931] sm:$0xf]
    %v1933 = vld [vmem:[%s1931 + $0x4] sm:$0xf]
    %v1934 = vld [vmem:[%s1931 + $0x8] sm:$0xf]
    %v1935 = vld [vmem:[%s1931 + $0xc] sm:$0xf]
    %v1940 = vunpack.c.l.b16 %v1932
    %v1941 = vunpack.c.l.b16 %v1933
    %v1942 = vunpack.c.l.b16 %v1934
    %v1943 = vunpack.c.l.b16 %v1935
    %v1944 = vpack.c.b16 %v1941, %v1940
    %v1945 = vpack.c.b16 %v1943, %v1942
    %v1949 = vsel %vm1820, %v1923, 0
    %v1952 = vsel %vm1820, %v1924, 0
    %v1955 = vsel %vm1820, %v1925, 0
    %v1958 = vsel %vm1820, %v1926, 0
    %v1961 = vsel %vm1820, %v1927, 0
    %v1964 = vsel %vm1820, %v1928, 0
    %v1967 = vsel %vm1820, %v1929, 0
    %v1970 = vsel %vm1820, %v1930, 0
    %1972 = vmatprep.subr.bf16.mxu0 0
    %1973 = vmatpush1.bf16.msra.mxu0 %v1944
    %1974 = vmatprep.subr.bf16.mxu0 0
    %1975 = vmatpush1.bf16.msra.mxu0 %v1945
    %1976 = vmatprep.subr.bf16.mxu0 0
    %1977 = vmatpush1.bf16.msra.mxu0 0
    %1978 = vmatprep.subr.bf16.mxu0 0
    %1979 = vmatpush1.bf16.msra.mxu0 0
    %1980 = vmatprep.subr.bf16.mxu0 0
    %1981 = vmatpush1.bf16.msra.mxu0 0
    %1982 = vmatprep.subr.bf16.mxu0 0
    %1983 = vmatpush1.bf16.msra.mxu0 0
    %1984 = vmatprep.subr.bf16.mxu0 0
    %1985 = vmatpush1.bf16.msra.mxu0 0
    %1986 = vmatprep.subr.bf16.mxu0 0
    %1987 = vmatpush1.bf16.msra.mxu0 0
    %1988 = vmatprep.subr.bf16.mxu0 0
    %1989 = vmatpush1.bf16.msra.mxu0 0
    %1990 = vmatprep.subr.bf16.mxu0 0
    %1991 = vmatpush1.bf16.msra.mxu0 0
    %1992 = vmatprep.subr.bf16.mxu0 0
    %1993 = vmatpush1.bf16.msra.mxu0 0
    %1994 = vmatprep.subr.bf16.mxu0 0
    %1995 = vmatpush1.bf16.msra.mxu0 0
    %1996 = vmatprep.subr.bf16.mxu0 0
    %1997 = vmatpush1.bf16.msra.mxu0 0
    %1998 = vmatprep.subr.bf16.mxu0 0
    %1999 = vmatpush1.bf16.msra.mxu0 0
    %2000 = vmatprep.subr.bf16.mxu0 0
    %2001 = vmatpush1.bf16.msra.mxu0 0
    %2002 = vmatprep.subr.bf16.mxu0 0
    %2003 = vmatpush1.bf16.msra.mxu0 0
    %2004 = vmatprep.mubr.bf16.mxu0 0
    %2005 = vmatmul.mubr.bf16.gmra.mrb[0].mxu0 %v1949
    %v2006 = vpop.f32.mrb[0].mxu0
    %v2007 = vadd.f32 0.0, %v2006
    %v2008 = vpop.f32.mrb[0].mxu0
    %v2009 = vpop.f32.mrb[0].mxu0
    %v2010 = vadd.f32 0.0, %v2009
    %v2011 = vpop.f32.mrb[0].mxu0
    %2012 = vmatprep.mubr.bf16.mxu0 0
    %2013 = vmatmul.mubr.bf16.gmra.mrb[0].mxu0 %v1952
    %v2014 = vpop.f32.mrb[0].mxu0
    %v2015 = vadd.f32 0.0, %v2014
    %v2016 = vpop.f32.mrb[0].mxu0
    %v2017 = vpop.f32.mrb[0].mxu0
    %v2018 = vadd.f32 0.0, %v2017
    %v2019 = vpop.f32.mrb[0].mxu0
    %2020 = vmatprep.mubr.bf16.mxu0 0
    %2021 = vmatmul.mubr.bf16.gmra.mrb[0].mxu0 %v1955
    %v2022 = vpop.f32.mrb[0].mxu0
    %v2023 = vadd.f32 0.0, %v2022
    %v2024 = vpop.f32.mrb[0].mxu0
    %v2025 = vpop.f32.mrb[0].mxu0
    %v2026 = vadd.f32 0.0, %v2025
    %v2027 = vpop.f32.mrb[0].mxu0
    %2028 = vmatprep.mubr.bf16.mxu0 0
    %2029 = vmatmul.mubr.bf16.gmra.mrb[0].mxu0 %v1958
    %v2030 = vpop.f32.mrb[0].mxu0
    %v2031 = vadd.f32 0.0, %v2030
    %v2032 = vpop.f32.mrb[0].mxu0
    %v2033 = vpop.f32.mrb[0].mxu0
    %v2034 = vadd.f32 0.0, %v2033
    %v2035 = vpop.f32.mrb[0].mxu0
    %2036 = vmatprep.mubr.bf16.mxu0 0
    %2037 = vmatmul.mubr.bf16.gmra.mrb[0].mxu0 %v1961
    %v2038 = vpop.f32.mrb[0].mxu0
    %v2039 = vadd.f32 0.0, %v2038
    %v2040 = vpop.f32.mrb[0].mxu0
    %v2041 = vpop.f32.mrb[0].mxu0
    %v2042 = vadd.f32 0.0, %v2041
    %v2043 = vpop.f32.mrb[0].mxu0
    %2044 = vmatprep.mubr.bf16.mxu0 0
    %2045 = vmatmul.mubr.bf16.gmra.mrb[0].mxu0 %v1964
    %v2046 = vpop.f32.mrb[0].mxu0
    %v2047 = vadd.f32 0.0, %v2046
    %v2048 = vpop.f32.mrb[0].mxu0
    %v2049 = vpop.f32.mrb[0].mxu0
    %v2050 = vadd.f32 0.0, %v2049
    %v2051 = vpop.f32.mrb[0].mxu0
    %2052 = vmatprep.mubr.bf16.mxu0 0
    %2053 = vmatmul.mubr.bf16.gmra.mrb[0].mxu0 %v1967
    %v2054 = vpop.f32.mrb[0].mxu0
    %v2055 = vadd.f32 0.0, %v2054
    %v2056 = vpop.f32.mrb[0].mxu0
    %v2057 = vpop.f32.mrb[0].mxu0
    %v2058 = vadd.f32 0.0, %v2057
    %v2059 = vpop.f32.mrb[0].mxu0
    %2060 = vmatprep.mubr.bf16.mxu0 0
    %2061 = vmatmul.mubr.bf16.gmra.mrb[0].mxu0 %v1970
    %v2062 = vpop.f32.mrb[0].mxu0
    %v2063 = vadd.f32 0.0, %v2062
    %v2064 = vpop.f32.mrb[0].mxu0
    %v2065 = vpop.f32.mrb[0].mxu0
    %v2066 = vadd.f32 0.0, %v2065
    %v2067 = vpop.f32.mrb[0].mxu0
    %2068 = vdwg.mxu0
    %v2073 = vunpack.c.l.b16 %v1903
    %v2074 = vunpack.c.l.b16 %v1904
    %v2075 = vunpack.c.l.b16 %v1905
    %v2076 = vunpack.c.l.b16 %v1906
    %v2077 = vpack.c.b16 %v2074, %v2073
    %v2078 = vpack.c.b16 %v2076, %v2075
    %v2082 = vsel %vm1820, %v1895, 0
    %v2085 = vsel %vm1820, %v1896, 0
    %v2088 = vsel %vm1820, %v1897, 0
    %v2091 = vsel %vm1820, %v1898, 0
    %v2094 = vsel %vm1820, %v1899, 0
    %v2097 = vsel %vm1820, %v1900, 0
    %v2100 = vsel %vm1820, %v1901, 0
    %v2103 = vsel %vm1820, %v1902, 0
    %2105 = vmatprep.subr.bf16.mxu0 0
    %2106 = vmatpush1.bf16.msra.mxu0 %v2077
    %2107 = vmatprep.subr.bf16.mxu0 0
    %2108 = vmatpush1.bf16.msra.mxu0 %v2078
    %2109 = vmatprep.subr.bf16.mxu0 0
    %2110 = vmatpush1.bf16.msra.mxu0 0
    %2111 = vmatprep.subr.bf16.mxu0 0
    %2112 = vmatpush1.bf16.msra.mxu0 0
    %2113 = vmatprep.subr.bf16.mxu0 0
    %2114 = vmatpush1.bf16.msra.mxu0 0
    %2115 = vmatprep.subr.bf16.mxu0 0
    %2116 = vmatpush1.bf16.msra.mxu0 0
    %2117 = vmatprep.subr.bf16.mxu0 0
    %2118 = vmatpush1.bf16.msra.mxu0 0
    %2119 = vmatprep.subr.bf16.mxu0 0
    %2120 = vmatpush1.bf16.msra.mxu0 0
    %2121 = vmatprep.subr.bf16.mxu0 0
    %2122 = vmatpush1.bf16.msra.mxu0 0
    %2123 = vmatprep.subr.bf16.mxu0 0
    %2124 = vmatpush1.bf16.msra.mxu0 0
    %2125 = vmatprep.subr.bf16.mxu0 0
    %2126 = vmatpush1.bf16.msra.mxu0 0
    %2127 = vmatprep.subr.bf16.mxu0 0
    %2128 = vmatpush1.bf16.msra.mxu0 0
    %2129 = vmatprep.subr.bf16.mxu0 0
    %2130 = vmatpush1.bf16.msra.mxu0 0
    %2131 = vmatprep.subr.bf16.mxu0 0
    %2132 = vmatpush1.bf16.msra.mxu0 0
    %2133 = vmatprep.subr.bf16.mxu0 0
    %2134 = vmatpush1.bf16.msra.mxu0 0
    %2135 = vmatprep.subr.bf16.mxu0 0
    %2136 = vmatpush1.bf16.msra.mxu0 0
    %2137 = vmatprep.mubr.bf16.mxu0 0
    %2138 = vmatmul.mubr.bf16.gmra.mrb[0].mxu0 %v2082
    %v2139 = vpop.f32.mrb[0].mxu0
    %v2140 = vadd.f32 %v2007, %v2139
    %v2141 = vpop.f32.mrb[0].mxu0
    %v2142 = vpop.f32.mrb[0].mxu0
    %v2143 = vadd.f32 %v2010, %v2142
    %v2144 = vpop.f32.mrb[0].mxu0
    %2145 = vmatprep.mubr.bf16.mxu0 0
    %2146 = vmatmul.mubr.bf16.gmra.mrb[0].mxu0 %v2085
    %v2147 = vpop.f32.mrb[0].mxu0
    %v2148 = vadd.f32 %v2015, %v2147
    %v2149 = vpop.f32.mrb[0].mxu0
    %v2150 = vpop.f32.mrb[0].mxu0
    %v2151 = vadd.f32 %v2018, %v2150
    %v2152 = vpop.f32.mrb[0].mxu0
    %2153 = vmatprep.mubr.bf16.mxu0 0
    %2154 = vmatmul.mubr.bf16.gmra.mrb[0].mxu0 %v2088
    %v2155 = vpop.f32.mrb[0].mxu0
    %v2156 = vadd.f32 %v2023, %v2155
    %v2157 = vpop.f32.mrb[0].mxu0
    %v2158 = vpop.f32.mrb[0].mxu0
    %v2159 = vadd.f32 %v2026, %v2158
    %v2160 = vpop.f32.mrb[0].mxu0
    %2161 = vmatprep.mubr.bf16.mxu0 0
    %2162 = vmatmul.mubr.bf16.gmra.mrb[0].mxu0 %v2091
    %v2163 = vpop.f32.mrb[0].mxu0
    %v2164 = vadd.f32 %v2031, %v2163
    %v2165 = vpop.f32.mrb[0].mxu0
    %v2166 = vpop.f32.mrb[0].mxu0
    %v2167 = vadd.f32 %v2034, %v2166
    %v2168 = vpop.f32.mrb[0].mxu0
    %2169 = vmatprep.mubr.bf16.mxu0 0
    %2170 = vmatmul.mubr.bf16.gmra.mrb[0].mxu0 %v2094
    %v2171 = vpop.f32.mrb[0].mxu0
    %v2172 = vadd.f32 %v2039, %v2171
    %v2173 = vpop.f32.mrb[0].mxu0
    %v2174 = vpop.f32.mrb[0].mxu0
    %v2175 = vadd.f32 %v2042, %v2174
    %v2176 = vpop.f32.mrb[0].mxu0
    %2177 = vmatprep.mubr.bf16.mxu0 0
    %2178 = vmatmul.mubr.bf16.gmra.mrb[0].mxu0 %v2097
    %v2179 = vpop.f32.mrb[0].mxu0
    %v2180 = vadd.f32 %v2047, %v2179
    %v2181 = vpop.f32.mrb[0].mxu0
    %v2182 = vpop.f32.mrb[0].mxu0
    %v2183 = vadd.f32 %v2050, %v2182
    %v2184 = vpop.f32.mrb[0].mxu0
    %2185 = vmatprep.mubr.bf16.mxu0 0
    %2186 = vmatmul.mubr.bf16.gmra.mrb[0].mxu0 %v2100
    %v2187 = vpop.f32.mrb[0].mxu0
    %v2188 = vadd.f32 %v2055, %v2187
    %v2189 = vpop.f32.mrb[0].mxu0
    %v2190 = vpop.f32.mrb[0].mxu0
    %v2191 = vadd.f32 %v2058, %v2190
    %v2192 = vpop.f32.mrb[0].mxu0
    %2193 = vmatprep.mubr.bf16.mxu0 0
    %2194 = vmatmul.mubr.bf16.gmra.mrb[0].mxu0 %v2103
    %v2195 = vpop.f32.mrb[0].mxu0
    %v2196 = vadd.f32 %v2063, %v2195
    %v2197 = vpop.f32.mrb[0].mxu0
    %v2198 = vpop.f32.mrb[0].mxu0
    %v2199 = vadd.f32 %v2066, %v2198
    %v2200 = vpop.f32.mrb[0].mxu0
    %2201 = vdwg.mxu0
    %v2202 = vld [vmem:[#allocation3 + $0x2] sm:$0xff]
    %v2203 = vld [vmem:[#allocation3 + $0x12] sm:$0xff]
    %v2204 = vld [vmem:[#allocation3 + $0x22] sm:$0xff]
    %v2205 = vld [vmem:[#allocation3 + $0x32] sm:$0xff]
    %v2206 = vld [vmem:[#allocation3 + $0x42] sm:$0xff]
    %v2207 = vld [vmem:[#allocation3 + $0x52] sm:$0xff]
    %v2208 = vld [vmem:[#allocation3 + $0x62] sm:$0xff]
    %v2209 = vld [vmem:[#allocation3 + $0x72] sm:$0xff]
    %v2210 = vld [vmem:[#allocation3 + $0xa2] sm:$0xff]
    %v2211 = vld [vmem:[#allocation3 + $0xb2] sm:$0xff]
    %v2212 = vld [vmem:[#allocation3 + $0xc2] sm:$0xff]
    %v2213 = vld [vmem:[#allocation3 + $0xd2] sm:$0xff]
    %v2214 = vld [vmem:[#allocation3 + $0xe2] sm:$0xff]
    %v2215 = vld [vmem:[#allocation3 + $0xf2] sm:$0xff]
    %v2216 = vld [vmem:[#allocation3 + $0x102] sm:$0xff]
    %v2217 = vld [vmem:[#allocation3 + $0x112] sm:$0xff]
    %v2218 = vpack.c.bf16 %v2203, %v2202
    %v2219 = vpack.c.bf16 %v2205, %v2204
    %v2220 = vpack.c.bf16 %v2207, %v2206
    %v2221 = vpack.c.bf16 %v2209, %v2208
    %v2222 = vpack.c.bf16 %v2211, %v2210
    %v2223 = vpack.c.bf16 %v2213, %v2212
    %v2224 = vpack.c.bf16 %v2215, %v2214
    %v2225 = vpack.c.bf16 %v2217, %v2216
    %s2226 = scalar_lea.vmem %s4, 32
    %v2227 = vld [vmem:[%s2226] sm:$0xf]
    %v2228 = vld [vmem:[%s2226 + $0x4] sm:$0xf]
    %v2229 = vld [vmem:[%s2226 + $0x8] sm:$0xf]
    %v2230 = vld [vmem:[%s2226 + $0xc] sm:$0xf]
    %v2235 = vunpack.c.l.b16 %v2227
    %v2236 = vunpack.c.l.b16 %v2228
    %v2237 = vunpack.c.l.b16 %v2229
    %v2238 = vunpack.c.l.b16 %v2230
    %v2239 = vpack.c.b16 %v2236, %v2235
    %v2240 = vpack.c.b16 %v2238, %v2237
    %v2244 = vsel %vm1820, %v2218, 0
    %v2247 = vsel %vm1820, %v2219, 0
    %v2250 = vsel %vm1820, %v2220, 0
    %v2253 = vsel %vm1820, %v2221, 0
    %v2256 = vsel %vm1820, %v2222, 0
    %v2259 = vsel %vm1820, %v2223, 0
    %v2262 = vsel %vm1820, %v2224, 0
    %v2265 = vsel %vm1820, %v2225, 0
    %2267 = vmatprep.subr.bf16.mxu0 0
    %2268 = vmatpush1.bf16.msra.mxu0 %v2239
    %2269 = vmatprep.subr.bf16.mxu0 0
    %2270 = vmatpush1.bf16.msra.mxu0 %v2240
    %2271 = vmatprep.subr.bf16.mxu0 0
    %2272 = vmatpush1.bf16.msra.mxu0 0
    %2273 = vmatprep.subr.bf16.mxu0 0
    %2274 = vmatpush1.bf16.msra.mxu0 0
    %2275 = vmatprep.subr.bf16.mxu0 0
    %2276 = vmatpush1.bf16.msra.mxu0 0
    %2277 = vmatprep.subr.bf16.mxu0 0
    %2278 = vmatpush1.bf16.msra.mxu0 0
    %2279 = vmatprep.subr.bf16.mxu0 0
    %2280 = vmatpush1.bf16.msra.mxu0 0
    %2281 = vmatprep.subr.bf16.mxu0 0
    %2282 = vmatpush1.bf16.msra.mxu0 0
    %2283 = vmatprep.subr.bf16.mxu0 0
    %2284 = vmatpush1.bf16.msra.mxu0 0
    %2285 = vmatprep.subr.bf16.mxu0 0
    %2286 = vmatpush1.bf16.msra.mxu0 0
    %2287 = vmatprep.subr.bf16.mxu0 0
    %2288 = vmatpush1.bf16.msra.mxu0 0
    %2289 = vmatprep.subr.bf16.mxu0 0
    %2290 = vmatpush1.bf16.msra.mxu0 0
    %2291 = vmatprep.subr.bf16.mxu0 0
    %2292 = vmatpush1.bf16.msra.mxu0 0
    %2293 = vmatprep.subr.bf16.mxu0 0
    %2294 = vmatpush1.bf16.msra.mxu0 0
    %2295 = vmatprep.subr.bf16.mxu0 0
    %2296 = vmatpush1.bf16.msra.mxu0 0
    %2297 = vmatprep.subr.bf16.mxu0 0
    %2298 = vmatpush1.bf16.msra.mxu0 0
    %2299 = vmatprep.mubr.bf16.mxu0 0
    %2300 = vmatmul.mubr.bf16.gmra.mrb[0].mxu0 %v2244
    %v2301 = vpop.f32.mrb[0].mxu0
    %v2302 = vadd.f32 0.0, %v2301
    %v2303 = vpop.f32.mrb[0].mxu0
    %v2304 = vpop.f32.mrb[0].mxu0
    %v2305 = vadd.f32 0.0, %v2304
    %v2306 = vpop.f32.mrb[0].mxu0
    %2307 = vmatprep.mubr.bf16.mxu0 0
    %2308 = vmatmul.mubr.bf16.gmra.mrb[0].mxu0 %v2247
    %v2309 = vpop.f32.mrb[0].mxu0
    %v2310 = vadd.f32 0.0, %v2309
    %v2311 = vpop.f32.mrb[0].mxu0
    %v2312 = vpop.f32.mrb[0].mxu0
    %v2313 = vadd.f32 0.0, %v2312
    %v2314 = vpop.f32.mrb[0].mxu0
    %2315 = vmatprep.mubr.bf16.mxu0 0
    %2316 = vmatmul.mubr.bf16.gmra.mrb[0].mxu0 %v2250
    %v2317 = vpop.f32.mrb[0].mxu0
    %v2318 = vadd.f32 0.0, %v2317
    %v2319 = vpop.f32.mrb[0].mxu0
    %v2320 = vpop.f32.mrb[0].mxu0
    %v2321 = vadd.f32 0.0, %v2320
    %v2322 = vpop.f32.mrb[0].mxu0
    %2323 = vmatprep.mubr.bf16.mxu0 0
    %2324 = vmatmul.mubr.bf16.gmra.mrb[0].mxu0 %v2253
    %v2325 = vpop.f32.mrb[0].mxu0
    %v2326 = vadd.f32 0.0, %v2325
    %v2327 = vpop.f32.mrb[0].mxu0
    %v2328 = vpop.f32.mrb[0].mxu0
    %v2329 = vadd.f32 0.0, %v2328
    %v2330 = vpop.f32.mrb[0].mxu0
    %2331 = vmatprep.mubr.bf16.mxu0 0
    %2332 = vmatmul.mubr.bf16.gmra.mrb[0].mxu0 %v2256
    %v2333 = vpop.f32.mrb[0].mxu0
    %v2334 = vadd.f32 0.0, %v2333
    %v2335 = vpop.f32.mrb[0].mxu0
    %v2336 = vpop.f32.mrb[0].mxu0
    %v2337 = vadd.f32 0.0, %v2336
    %v2338 = vpop.f32.mrb[0].mxu0
    %2339 = vmatprep.mubr.bf16.mxu0 0
    %2340 = vmatmul.mubr.bf16.gmra.mrb[0].mxu0 %v2259
    %v2341 = vpop.f32.mrb[0].mxu0
    %v2342 = vadd.f32 0.0, %v2341
    %v2343 = vpop.f32.mrb[0].mxu0
    %v2344 = vpop.f32.mrb[0].mxu0
    %v2345 = vadd.f32 0.0, %v2344
    %v2346 = vpop.f32.mrb[0].mxu0
    %2347 = vmatprep.mubr.bf16.mxu0 0
    %2348 = vmatmul.mubr.bf16.gmra.mrb[0].mxu0 %v2262
    %v2349 = vpop.f32.mrb[0].mxu0
    %v2350 = vadd.f32 0.0, %v2349
    %v2351 = vpop.f32.mrb[0].mxu0
    %v2352 = vpop.f32.mrb[0].mxu0
    %v2353 = vadd.f32 0.0, %v2352
    %v2354 = vpop.f32.mrb[0].mxu0
    %2355 = vmatprep.mubr.bf16.mxu0 0
    %2356 = vmatmul.mubr.bf16.gmra.mrb[0].mxu0 %v2265
    %v2357 = vpop.f32.mrb[0].mxu0
    %v2358 = vadd.f32 0.0, %v2357
    %v2359 = vpop.f32.mrb[0].mxu0
    %v2360 = vpop.f32.mrb[0].mxu0
    %v2361 = vadd.f32 0.0, %v2360
    %v2362 = vpop.f32.mrb[0].mxu0
    %2363 = vdwg.mxu0
    %v2364 = vadd.f32 %v2140, %v2302
    %v2365 = vadd.f32 %v2143, %v2305
    %v2366 = vadd.f32 %v2148, %v2310
    %v2367 = vadd.f32 %v2151, %v2313
    %v2368 = vadd.f32 %v2156, %v2318
    %v2369 = vadd.f32 %v2159, %v2321
    %v2370 = vadd.f32 %v2164, %v2326
    %v2371 = vadd.f32 %v2167, %v2329
    %v2372 = vadd.f32 %v2172, %v2334
    %v2373 = vadd.f32 %v2175, %v2337
    %v2374 = vadd.f32 %v2180, %v2342
    %v2375 = vadd.f32 %v2183, %v2345
    %v2376 = vadd.f32 %v2188, %v2350
    %v2377 = vadd.f32 %v2191, %v2353
    %v2378 = vadd.f32 %v2196, %v2358
    %v2379 = vadd.f32 %v2199, %v2361
    %v2380 = vld [vmem:[%s1862] sm:$0xff]
    %v2381 = vld [vmem:[%s1862 + $0x10] sm:$0xff]
    %v2382 = vld [vmem:[%s1862 + $0x20] sm:$0xff]
    %v2383 = vld [vmem:[%s1862 + $0x30] sm:$0xff]
    %v2384 = vld [vmem:[%s1862 + $0x40] sm:$0xff]
    %v2385 = vld [vmem:[%s1862 + $0x50] sm:$0xff]
    %v2386 = vld [vmem:[%s1862 + $0x60] sm:$0xff]
    %v2387 = vld [vmem:[%s1862 + $0x70] sm:$0xff]
    %v2388 = vld [vmem:[%s1862 + $0xa0] sm:$0xff]
    %v2389 = vld [vmem:[%s1862 + $0xb0] sm:$0xff]
    %v2390 = vld [vmem:[%s1862 + $0xc0] sm:$0xff]
    %v2391 = vld [vmem:[%s1862 + $0xd0] sm:$0xff]
    %v2392 = vld [vmem:[%s1862 + $0xe0] sm:$0xff]
    %v2393 = vld [vmem:[%s1862 + $0xf0] sm:$0xff]
    %v2394 = vld [vmem:[%s1862 + $0x100] sm:$0xff]
    %v2395 = vld [vmem:[%s1862 + $0x110] sm:$0xff]
    %v2396 = vpack.c.bf16 %v2381, %v2380
    %v2397 = vpack.c.bf16 %v2383, %v2382
    %v2398 = vpack.c.bf16 %v2385, %v2384
    %v2399 = vpack.c.bf16 %v2387, %v2386
    %v2400 = vpack.c.bf16 %v2389, %v2388
    %v2401 = vpack.c.bf16 %v2391, %v2390
    %v2402 = vpack.c.bf16 %v2393, %v2392
    %v2403 = vpack.c.bf16 %v2395, %v2394
    %s2404 = scalar_lea.vmem %s4, 48
    %v2405 = vld [vmem:[%s2404] sm:$0xf]
    %v2406 = vld [vmem:[%s2404 + $0x4] sm:$0xf]
    %v2407 = vld [vmem:[%s2404 + $0x8] sm:$0xf]
    %v2408 = vld [vmem:[%s2404 + $0xc] sm:$0xf]
    %v2413 = vunpack.c.l.b16 %v2405
    %v2414 = vunpack.c.l.b16 %v2406
    %v2415 = vunpack.c.l.b16 %v2407
    %v2416 = vunpack.c.l.b16 %v2408
    %v2417 = vpack.c.b16 %v2414, %v2413
    %v2418 = vpack.c.b16 %v2416, %v2415
    %v2422 = vsel %vm1820, %v2396, 0
    %v2425 = vsel %vm1820, %v2397, 0
    %v2428 = vsel %vm1820, %v2398, 0
    %v2431 = vsel %vm1820, %v2399, 0
    %v2434 = vsel %vm1820, %v2400, 0
    %v2437 = vsel %vm1820, %v2401, 0
    %v2440 = vsel %vm1820, %v2402, 0
    %v2443 = vsel %vm1820, %v2403, 0
    %2445 = vmatprep.subr.bf16.mxu0 0
    %2446 = vmatpush1.bf16.msra.mxu0 %v2417
    %2447 = vmatprep.subr.bf16.mxu0 0
    %2448 = vmatpush1.bf16.msra.mxu0 %v2418
    %2449 = vmatprep.subr.bf16.mxu0 0
    %2450 = vmatpush1.bf16.msra.mxu0 0
    %2451 = vmatprep.subr.bf16.mxu0 0
    %2452 = vmatpush1.bf16.msra.mxu0 0
    %2453 = vmatprep.subr.bf16.mxu0 0
    %2454 = vmatpush1.bf16.msra.mxu0 0
    %2455 = vmatprep.subr.bf16.mxu0 0
    %2456 = vmatpush1.bf16.msra.mxu0 0
    %2457 = vmatprep.subr.bf16.mxu0 0
    %2458 = vmatpush1.bf16.msra.mxu0 0
    %2459 = vmatprep.subr.bf16.mxu0 0
    %2460 = vmatpush1.bf16.msra.mxu0 0
    %2461 = vmatprep.subr.bf16.mxu0 0
    %2462 = vmatpush1.bf16.msra.mxu0 0
    %2463 = vmatprep.subr.bf16.mxu0 0
    %2464 = vmatpush1.bf16.msra.mxu0 0
    %2465 = vmatprep.subr.bf16.mxu0 0
    %2466 = vmatpush1.bf16.msra.mxu0 0
    %2467 = vmatprep.subr.bf16.mxu0 0
    %2468 = vmatpush1.bf16.msra.mxu0 0
    %2469 = vmatprep.subr.bf16.mxu0 0
    %2470 = vmatpush1.bf16.msra.mxu0 0
    %2471 = vmatprep.subr.bf16.mxu0 0
    %2472 = vmatpush1.bf16.msra.mxu0 0
    %2473 = vmatprep.subr.bf16.mxu0 0
    %2474 = vmatpush1.bf16.msra.mxu0 0
    %2475 = vmatprep.subr.bf16.mxu0 0
    %2476 = vmatpush1.bf16.msra.mxu0 0
    %2477 = vmatprep.mubr.bf16.mxu0 0
    %2478 = vmatmul.mubr.bf16.gmra.mrb[0].mxu0 %v2422
    %v2479 = vpop.f32.mrb[0].mxu0
    %v2480 = vadd.f32 0.0, %v2479
    %v2481 = vpop.f32.mrb[0].mxu0
    %v2482 = vpop.f32.mrb[0].mxu0
    %v2483 = vadd.f32 0.0, %v2482
    %v2484 = vpop.f32.mrb[0].mxu0
    %2485 = vmatprep.mubr.bf16.mxu0 0
    %2486 = vmatmul.mubr.bf16.gmra.mrb[0].mxu0 %v2425
    %v2487 = vpop.f32.mrb[0].mxu0
    %v2488 = vadd.f32 0.0, %v2487
    %v2489 = vpop.f32.mrb[0].mxu0
    %v2490 = vpop.f32.mrb[0].mxu0
    %v2491 = vadd.f32 0.0, %v2490
    %v2492 = vpop.f32.mrb[0].mxu0
    %2493 = vmatprep.mubr.bf16.mxu0 0
    %2494 = vmatmul.mubr.bf16.gmra.mrb[0].mxu0 %v2428
    %v2495 = vpop.f32.mrb[0].mxu0
    %v2496 = vadd.f32 0.0, %v2495
    %v2497 = vpop.f32.mrb[0].mxu0
    %v2498 = vpop.f32.mrb[0].mxu0
    %v2499 = vadd.f32 0.0, %v2498
    %v2500 = vpop.f32.mrb[0].mxu0
    %2501 = vmatprep.mubr.bf16.mxu0 0
    %2502 = vmatmul.mubr.bf16.gmra.mrb[0].mxu0 %v2431
    %v2503 = vpop.f32.mrb[0].mxu0
    %v2504 = vadd.f32 0.0, %v2503
    %v2505 = vpop.f32.mrb[0].mxu0
    %v2506 = vpop.f32.mrb[0].mxu0
    %v2507 = vadd.f32 0.0, %v2506
    %v2508 = vpop.f32.mrb[0].mxu0
    %2509 = vmatprep.mubr.bf16.mxu0 0
    %2510 = vmatmul.mubr.bf16.gmra.mrb[0].mxu0 %v2434
    %v2511 = vpop.f32.mrb[0].mxu0
    %v2512 = vadd.f32 0.0, %v2511
    %v2513 = vpop.f32.mrb[0].mxu0
    %v2514 = vpop.f32.mrb[0].mxu0
    %v2515 = vadd.f32 0.0, %v2514
    %v2516 = vpop.f32.mrb[0].mxu0
    %2517 = vmatprep.mubr.bf16.mxu0 0
    %2518 = vmatmul.mubr.bf16.gmra.mrb[0].mxu0 %v2437
    %v2519 = vpop.f32.mrb[0].mxu0
    %v2520 = vadd.f32 0.0, %v2519
    %v2521 = vpop.f32.mrb[0].mxu0
    %v2522 = vpop.f32.mrb[0].mxu0
    %v2523 = vadd.f32 0.0, %v2522
    %v2524 = vpop.f32.mrb[0].mxu0
    %2525 = vmatprep.mubr.bf16.mxu0 0
    %2526 = vmatmul.mubr.bf16.gmra.mrb[0].mxu0 %v2440
    %v2527 = vpop.f32.mrb[0].mxu0
    %v2528 = vadd.f32 0.0, %v2527
    %v2529 = vpop.f32.mrb[0].mxu0
    %v2530 = vpop.f32.mrb[0].mxu0
    %v2531 = vadd.f32 0.0, %v2530
    %v2532 = vpop.f32.mrb[0].mxu0
    %2533 = vmatprep.mubr.bf16.mxu0 0
    %2534 = vmatmul.mubr.bf16.gmra.mrb[0].mxu0 %v2443
    %v2535 = vpop.f32.mrb[0].mxu0
    %v2536 = vadd.f32 0.0, %v2535
    %v2537 = vpop.f32.mrb[0].mxu0
    %v2538 = vpop.f32.mrb[0].mxu0
    %v2539 = vadd.f32 0.0, %v2538
    %v2540 = vpop.f32.mrb[0].mxu0
    %2541 = vdwg.mxu0
    %v2542 = vadd.f32 %v2364, %v2480
    %v2543 = vadd.f32 %v2365, %v2483
    %v2544 = vadd.f32 %v2366, %v2488
    %v2545 = vadd.f32 %v2367, %v2491
    %v2546 = vadd.f32 %v2368, %v2496
    %v2547 = vadd.f32 %v2369, %v2499
    %v2548 = vadd.f32 %v2370, %v2504
    %v2549 = vadd.f32 %v2371, %v2507
    %v2550 = vadd.f32 %v2372, %v2512
    %v2551 = vadd.f32 %v2373, %v2515
    %v2552 = vadd.f32 %v2374, %v2520
    %v2553 = vadd.f32 %v2375, %v2523
    %v2554 = vadd.f32 %v2376, %v2528
    %v2555 = vadd.f32 %v2377, %v2531
    %v2556 = vadd.f32 %v2378, %v2536
    %v2557 = vadd.f32 %v2379, %v2539
    %v2558 = vld [vmem:[%s1862 + $0x1] sm:$0xff]
    %v2559 = vld [vmem:[%s1862 + $0x11] sm:$0xff]
    %v2560 = vld [vmem:[%s1862 + $0x21] sm:$0xff]
    %v2561 = vld [vmem:[%s1862 + $0x31] sm:$0xff]
    %v2562 = vld [vmem:[%s1862 + $0x41] sm:$0xff]
    %v2563 = vld [vmem:[%s1862 + $0x51] sm:$0xff]
    %v2564 = vld [vmem:[%s1862 + $0x61] sm:$0xff]
    %v2565 = vld [vmem:[%s1862 + $0x71] sm:$0xff]
    %v2566 = vld [vmem:[%s1862 + $0xa1] sm:$0xff]
    %v2567 = vld [vmem:[%s1862 + $0xb1] sm:$0xff]
    %v2568 = vld [vmem:[%s1862 + $0xc1] sm:$0xff]
    %v2569 = vld [vmem:[%s1862 + $0xd1] sm:$0xff]
    %v2570 = vld [vmem:[%s1862 + $0xe1] sm:$0xff]
    %v2571 = vld [vmem:[%s1862 + $0xf1] sm:$0xff]
    %v2572 = vld [vmem:[%s1862 + $0x101] sm:$0xff]
    %v2573 = vld [vmem:[%s1862 + $0x111] sm:$0xff]
    %v2574 = vpack.c.bf16 %v2559, %v2558
    %v2575 = vpack.c.bf16 %v2561, %v2560
    %v2576 = vpack.c.bf16 %v2563, %v2562
    %v2577 = vpack.c.bf16 %v2565, %v2564
    %v2578 = vpack.c.bf16 %v2567, %v2566
    %v2579 = vpack.c.bf16 %v2569, %v2568
    %v2580 = vpack.c.bf16 %v2571, %v2570
    %v2581 = vpack.c.bf16 %v2573, %v2572
    %s2582 = scalar_lea.vmem %s4, 64
    %v2583 = vld [vmem:[%s2582] sm:$0xf]
    %v2584 = vld [vmem:[%s2582 + $0x4] sm:$0xf]
    %v2585 = vld [vmem:[%s2582 + $0x8] sm:$0xf]
    %v2586 = vld [vmem:[%s2582 + $0xc] sm:$0xf]
    %v2591 = vunpack.c.l.b16 %v2583
    %v2592 = vunpack.c.l.b16 %v2584
    %v2593 = vunpack.c.l.b16 %v2585
    %v2594 = vunpack.c.l.b16 %v2586
    %v2595 = vpack.c.b16 %v2592, %v2591
    %v2596 = vpack.c.b16 %v2594, %v2593
    %v2600 = vsel %vm1820, %v2574, 0
    %v2603 = vsel %vm1820, %v2575, 0
    %v2606 = vsel %vm1820, %v2576, 0
    %v2609 = vsel %vm1820, %v2577, 0
    %v2612 = vsel %vm1820, %v2578, 0
    %v2615 = vsel %vm1820, %v2579, 0
    %v2618 = vsel %vm1820, %v2580, 0
    %v2621 = vsel %vm1820, %v2581, 0
    %2623 = vmatprep.subr.bf16.mxu0 0
    %2624 = vmatpush1.bf16.msra.mxu0 %v2595
    %2625 = vmatprep.subr.bf16.mxu0 0
    %2626 = vmatpush1.bf16.msra.mxu0 %v2596
    %2627 = vmatprep.subr.bf16.mxu0 0
    %2628 = vmatpush1.bf16.msra.mxu0 0
    %2629 = vmatprep.subr.bf16.mxu0 0
    %2630 = vmatpush1.bf16.msra.mxu0 0
    %2631 = vmatprep.subr.bf16.mxu0 0
    %2632 = vmatpush1.bf16.msra.mxu0 0
    %2633 = vmatprep.subr.bf16.mxu0 0
    %2634 = vmatpush1.bf16.msra.mxu0 0
    %2635 = vmatprep.subr.bf16.mxu0 0
    %2636 = vmatpush1.bf16.msra.mxu0 0
    %2637 = vmatprep.subr.bf16.mxu0 0
    %2638 = vmatpush1.bf16.msra.mxu0 0
    %2639 = vmatprep.subr.bf16.mxu0 0
    %2640 = vmatpush1.bf16.msra.mxu0 0
    %2641 = vmatprep.subr.bf16.mxu0 0
    %2642 = vmatpush1.bf16.msra.mxu0 0
    %2643 = vmatprep.subr.bf16.mxu0 0
    %2644 = vmatpush1.bf16.msra.mxu0 0
    %2645 = vmatprep.subr.bf16.mxu0 0
    %2646 = vmatpush1.bf16.msra.mxu0 0
    %2647 = vmatprep.subr.bf16.mxu0 0
    %2648 = vmatpush1.bf16.msra.mxu0 0
    %2649 = vmatprep.subr.bf16.mxu0 0
    %2650 = vmatpush1.bf16.msra.mxu0 0
    %2651 = vmatprep.subr.bf16.mxu0 0
    %2652 = vmatpush1.bf16.msra.mxu0 0
    %2653 = vmatprep.subr.bf16.mxu0 0
    %2654 = vmatpush1.bf16.msra.mxu0 0
    %2655 = vmatprep.mubr.bf16.mxu0 0
    %2656 = vmatmul.mubr.bf16.gmra.mrb[0].mxu0 %v2600
    %v2657 = vpop.f32.mrb[0].mxu0
    %v2658 = vadd.f32 0.0, %v2657
    %v2659 = vpop.f32.mrb[0].mxu0
    %v2660 = vpop.f32.mrb[0].mxu0
    %v2661 = vadd.f32 0.0, %v2660
    %v2662 = vpop.f32.mrb[0].mxu0
    %2663 = vmatprep.mubr.bf16.mxu0 0
    %2664 = vmatmul.mubr.bf16.gmra.mrb[0].mxu0 %v2603
    %v2665 = vpop.f32.mrb[0].mxu0
    %v2666 = vadd.f32 0.0, %v2665
    %v2667 = vpop.f32.mrb[0].mxu0
    %v2668 = vpop.f32.mrb[0].mxu0
    %v2669 = vadd.f32 0.0, %v2668
    %v2670 = vpop.f32.mrb[0].mxu0
    %2671 = vmatprep.mubr.bf16.mxu0 0
    %2672 = vmatmul.mubr.bf16.gmra.mrb[0].mxu0 %v2606
    %v2673 = vpop.f32.mrb[0].mxu0
    %v2674 = vadd.f32 0.0, %v2673
    %v2675 = vpop.f32.mrb[0].mxu0
    %v2676 = vpop.f32.mrb[0].mxu0
    %v2677 = vadd.f32 0.0, %v2676
    %v2678 = vpop.f32.mrb[0].mxu0
    %2679 = vmatprep.mubr.bf16.mxu0 0
    %2680 = vmatmul.mubr.bf16.gmra.mrb[0].mxu0 %v2609
    %v2681 = vpop.f32.mrb[0].mxu0
    %v2682 = vadd.f32 0.0, %v2681
    %v2683 = vpop.f32.mrb[0].mxu0
    %v2684 = vpop.f32.mrb[0].mxu0
    %v2685 = vadd.f32 0.0, %v2684
    %v2686 = vpop.f32.mrb[0].mxu0
    %2687 = vmatprep.mubr.bf16.mxu0 0
    %2688 = vmatmul.mubr.bf16.gmra.mrb[0].mxu0 %v2612
    %v2689 = vpop.f32.mrb[0].mxu0
    %v2690 = vadd.f32 0.0, %v2689
    %v2691 = vpop.f32.mrb[0].mxu0
    %v2692 = vpop.f32.mrb[0].mxu0
    %v2693 = vadd.f32 0.0, %v2692
    %v2694 = vpop.f32.mrb[0].mxu0
    %2695 = vmatprep.mubr.bf16.mxu0 0
    %2696 = vmatmul.mubr.bf16.gmra.mrb[0].mxu0 %v2615
    %v2697 = vpop.f32.mrb[0].mxu0
    %v2698 = vadd.f32 0.0, %v2697
    %v2699 = vpop.f32.mrb[0].mxu0
    %v2700 = vpop.f32.mrb[0].mxu0
    %v2701 = vadd.f32 0.0, %v2700
    %v2702 = vpop.f32.mrb[0].mxu0
    %2703 = vmatprep.mubr.bf16.mxu0 0
    %2704 = vmatmul.mubr.bf16.gmra.mrb[0].mxu0 %v2618
    %v2705 = vpop.f32.mrb[0].mxu0
    %v2706 = vadd.f32 0.0, %v2705
    %v2707 = vpop.f32.mrb[0].mxu0
    %v2708 = vpop.f32.mrb[0].mxu0
    %v2709 = vadd.f32 0.0, %v2708
    %v2710 = vpop.f32.mrb[0].mxu0
    %2711 = vmatprep.mubr.bf16.mxu0 0
    %2712 = vmatmul.mubr.bf16.gmra.mrb[0].mxu0 %v2621
    %v2713 = vpop.f32.mrb[0].mxu0
    %v2714 = vadd.f32 0.0, %v2713
    %v2715 = vpop.f32.mrb[0].mxu0
    %v2716 = vpop.f32.mrb[0].mxu0
    %v2717 = vadd.f32 0.0, %v2716
    %v2718 = vpop.f32.mrb[0].mxu0
    %2719 = vdwg.mxu0
    %v2720 = vadd.f32 %v2542, %v2658
    %v2721 = vadd.f32 %v2543, %v2661
    %v2722 = vadd.f32 %v2544, %v2666
    %v2723 = vadd.f32 %v2545, %v2669
    %v2724 = vadd.f32 %v2546, %v2674
    %v2725 = vadd.f32 %v2547, %v2677
    %v2726 = vadd.f32 %v2548, %v2682
    %v2727 = vadd.f32 %v2549, %v2685
    %v2728 = vadd.f32 %v2550, %v2690
    %v2729 = vadd.f32 %v2551, %v2693
    %v2730 = vadd.f32 %v2552, %v2698
    %v2731 = vadd.f32 %v2553, %v2701
    %v2732 = vadd.f32 %v2554, %v2706
    %v2733 = vadd.f32 %v2555, %v2709
    %v2734 = vadd.f32 %v2556, %v2714
    %v2735 = vadd.f32 %v2557, %v2717
    %v2736 = vld [vmem:[%s1862 + $0x2] sm:$0xff]
    %v2737 = vld [vmem:[%s1862 + $0x12] sm:$0xff]
    %v2738 = vld [vmem:[%s1862 + $0x22] sm:$0xff]
    %v2739 = vld [vmem:[%s1862 + $0x32] sm:$0xff]
    %v2740 = vld [vmem:[%s1862 + $0x42] sm:$0xff]
    %v2741 = vld [vmem:[%s1862 + $0x52] sm:$0xff]
    %v2742 = vld [vmem:[%s1862 + $0x62] sm:$0xff]
    %v2743 = vld [vmem:[%s1862 + $0x72] sm:$0xff]
    %v2744 = vld [vmem:[%s1862 + $0xa2] sm:$0xff]
    %v2745 = vld [vmem:[%s1862 + $0xb2] sm:$0xff]
    %v2746 = vld [vmem:[%s1862 + $0xc2] sm:$0xff]
    %v2747 = vld [vmem:[%s1862 + $0xd2] sm:$0xff]
    %v2748 = vld [vmem:[%s1862 + $0xe2] sm:$0xff]
    %v2749 = vld [vmem:[%s1862 + $0xf2] sm:$0xff]
    %v2750 = vld [vmem:[%s1862 + $0x102] sm:$0xff]
    %v2751 = vld [vmem:[%s1862 + $0x112] sm:$0xff]
    %v2752 = vpack.c.bf16 %v2737, %v2736
    %v2753 = vpack.c.bf16 %v2739, %v2738
    %v2754 = vpack.c.bf16 %v2741, %v2740
    %v2755 = vpack.c.bf16 %v2743, %v2742
    %v2756 = vpack.c.bf16 %v2745, %v2744
    %v2757 = vpack.c.bf16 %v2747, %v2746
    %v2758 = vpack.c.bf16 %v2749, %v2748
    %v2759 = vpack.c.bf16 %v2751, %v2750
    %s2760 = scalar_lea.vmem %s4, 80
    %v2761 = vld [vmem:[%s2760] sm:$0xf]
    %v2762 = vld [vmem:[%s2760 + $0x4] sm:$0xf]
    %v2763 = vld [vmem:[%s2760 + $0x8] sm:$0xf]
    %v2764 = vld [vmem:[%s2760 + $0xc] sm:$0xf]
    %v2769 = vunpack.c.l.b16 %v2761
    %v2770 = vunpack.c.l.b16 %v2762
    %v2771 = vunpack.c.l.b16 %v2763
    %v2772 = vunpack.c.l.b16 %v2764
    %v2773 = vpack.c.b16 %v2770, %v2769
    %v2774 = vpack.c.b16 %v2772, %v2771
    %v2778 = vsel %vm1820, %v2752, 0
    %v2781 = vsel %vm1820, %v2753, 0
    %v2784 = vsel %vm1820, %v2754, 0
    %v2787 = vsel %vm1820, %v2755, 0
    %v2790 = vsel %vm1820, %v2756, 0
    %v2793 = vsel %vm1820, %v2757, 0
    %v2796 = vsel %vm1820, %v2758, 0
    %v2799 = vsel %vm1820, %v2759, 0
    %2801 = vmatprep.subr.bf16.mxu0 0
    %2802 = vmatpush1.bf16.msra.mxu0 %v2773
    %2803 = vmatprep.subr.bf16.mxu0 0
    %2804 = vmatpush1.bf16.msra.mxu0 %v2774
    %2805 = vmatprep.subr.bf16.mxu0 0
    %2806 = vmatpush1.bf16.msra.mxu0 0
    %2807 = vmatprep.subr.bf16.mxu0 0
    %2808 = vmatpush1.bf16.msra.mxu0 0
    %2809 = vmatprep.subr.bf16.mxu0 0
    %2810 = vmatpush1.bf16.msra.mxu0 0
    %2811 = vmatprep.subr.bf16.mxu0 0
    %2812 = vmatpush1.bf16.msra.mxu0 0
    %2813 = vmatprep.subr.bf16.mxu0 0
    %2814 = vmatpush1.bf16.msra.mxu0 0
    %2815 = vmatprep.subr.bf16.mxu0 0
    %2816 = vmatpush1.bf16.msra.mxu0 0
    %2817 = vmatprep.subr.bf16.mxu0 0
    %2818 = vmatpush1.bf16.msra.mxu0 0
    %2819 = vmatprep.subr.bf16.mxu0 0
    %2820 = vmatpush1.bf16.msra.mxu0 0
    %2821 = vmatprep.subr.bf16.mxu0 0
    %2822 = vmatpush1.bf16.msra.mxu0 0
    %2823 = vmatprep.subr.bf16.mxu0 0
    %2824 = vmatpush1.bf16.msra.mxu0 0
    %2825 = vmatprep.subr.bf16.mxu0 0
    %2826 = vmatpush1.bf16.msra.mxu0 0
    %2827 = vmatprep.subr.bf16.mxu0 0
    %2828 = vmatpush1.bf16.msra.mxu0 0
    %2829 = vmatprep.subr.bf16.mxu0 0
    %2830 = vmatpush1.bf16.msra.mxu0 0
    %2831 = vmatprep.subr.bf16.mxu0 0
    %2832 = vmatpush1.bf16.msra.mxu0 0
    %2833 = vmatprep.mubr.bf16.mxu0 0
    %2834 = vmatmul.mubr.bf16.gmra.mrb[0].mxu0 %v2778
    %v2835 = vpop.f32.mrb[0].mxu0
    %v2836 = vadd.f32 0.0, %v2835
    %v2837 = vpop.f32.mrb[0].mxu0
    %v2838 = vpop.f32.mrb[0].mxu0
    %v2839 = vadd.f32 0.0, %v2838
    %v2840 = vpop.f32.mrb[0].mxu0
    %2841 = vmatprep.mubr.bf16.mxu0 0
    %2842 = vmatmul.mubr.bf16.gmra.mrb[0].mxu0 %v2781
    %v2843 = vpop.f32.mrb[0].mxu0
    %v2844 = vadd.f32 0.0, %v2843
    %v2845 = vpop.f32.mrb[0].mxu0
    %v2846 = vpop.f32.mrb[0].mxu0
    %v2847 = vadd.f32 0.0, %v2846
    %v2848 = vpop.f32.mrb[0].mxu0
    %2849 = vmatprep.mubr.bf16.mxu0 0
    %2850 = vmatmul.mubr.bf16.gmra.mrb[0].mxu0 %v2784
    %v2851 = vpop.f32.mrb[0].mxu0
    %v2852 = vadd.f32 0.0, %v2851
    %v2853 = vpop.f32.mrb[0].mxu0
    %v2854 = vpop.f32.mrb[0].mxu0
    %v2855 = vadd.f32 0.0, %v2854
    %v2856 = vpop.f32.mrb[0].mxu0
    %2857 = vmatprep.mubr.bf16.mxu0 0
    %2858 = vmatmul.mubr.bf16.gmra.mrb[0].mxu0 %v2787
    %v2859 = vpop.f32.mrb[0].mxu0
    %v2860 = vadd.f32 0.0, %v2859
    %v2861 = vpop.f32.mrb[0].mxu0
    %v2862 = vpop.f32.mrb[0].mxu0
    %v2863 = vadd.f32 0.0, %v2862
    %v2864 = vpop.f32.mrb[0].mxu0
    %2865 = vmatprep.mubr.bf16.mxu0 0
    %2866 = vmatmul.mubr.bf16.gmra.mrb[0].mxu0 %v2790
    %v2867 = vpop.f32.mrb[0].mxu0
    %v2868 = vadd.f32 0.0, %v2867
    %v2869 = vpop.f32.mrb[0].mxu0
    %v2870 = vpop.f32.mrb[0].mxu0
    %v2871 = vadd.f32 0.0, %v2870
    %v2872 = vpop.f32.mrb[0].mxu0
    %2873 = vmatprep.mubr.bf16.mxu0 0
    %2874 = vmatmul.mubr.bf16.gmra.mrb[0].mxu0 %v2793
    %v2875 = vpop.f32.mrb[0].mxu0
    %v2876 = vadd.f32 0.0, %v2875
    %v2877 = vpop.f32.mrb[0].mxu0
    %v2878 = vpop.f32.mrb[0].mxu0
    %v2879 = vadd.f32 0.0, %v2878
    %v2880 = vpop.f32.mrb[0].mxu0
    %2881 = vmatprep.mubr.bf16.mxu0 0
    %2882 = vmatmul.mubr.bf16.gmra.mrb[0].mxu0 %v2796
    %v2883 = vpop.f32.mrb[0].mxu0
    %v2884 = vadd.f32 0.0, %v2883
    %v2885 = vpop.f32.mrb[0].mxu0
    %v2886 = vpop.f32.mrb[0].mxu0
    %v2887 = vadd.f32 0.0, %v2886
    %v2888 = vpop.f32.mrb[0].mxu0
    %2889 = vmatprep.mubr.bf16.mxu0 0
    %2890 = vmatmul.mubr.bf16.gmra.mrb[0].mxu0 %v2799
    %v2891 = vpop.f32.mrb[0].mxu0
    %v2892 = vadd.f32 0.0, %v2891
    %v2893 = vpop.f32.mrb[0].mxu0
    %v2894 = vpop.f32.mrb[0].mxu0
    %v2895 = vadd.f32 0.0, %v2894
    %v2896 = vpop.f32.mrb[0].mxu0
    %2897 = vdwg.mxu0
    %v2898 = vadd.f32 %v2720, %v2836
    %v2899 = vadd.f32 %v2721, %v2839
    %v2900 = vadd.f32 %v2722, %v2844
    %v2901 = vadd.f32 %v2723, %v2847
    %v2902 = vadd.f32 %v2724, %v2852
    %v2903 = vadd.f32 %v2725, %v2855
    %v2904 = vadd.f32 %v2726, %v2860
    %v2905 = vadd.f32 %v2727, %v2863
    %v2906 = vadd.f32 %v2728, %v2868
    %v2907 = vadd.f32 %v2729, %v2871
    %v2908 = vadd.f32 %v2730, %v2876
    %v2909 = vadd.f32 %v2731, %v2879
    %v2910 = vadd.f32 %v2732, %v2884
    %v2911 = vadd.f32 %v2733, %v2887
    %v2912 = vadd.f32 %v2734, %v2892
    %v2913 = vadd.f32 %v2735, %v2895
    %s2914 = scalar_lea.vmem [#allocation3], 32
    %v2915 = vld [vmem:[%s2914] sm:$0xff]
    %v2916 = vld [vmem:[%s2914 + $0x10] sm:$0xff]
    %v2917 = vld [vmem:[%s2914 + $0x20] sm:$0xff]
    %v2918 = vld [vmem:[%s2914 + $0x30] sm:$0xff]
    %v2919 = vld [vmem:[%s2914 + $0x40] sm:$0xff]
    %v2920 = vld [vmem:[%s2914 + $0x50] sm:$0xff]
    %v2921 = vld [vmem:[%s2914 + $0x60] sm:$0xff]
    %v2922 = vld [vmem:[%s2914 + $0x70] sm:$0xff]
    %v2923 = vld [vmem:[%s2914 + $0xa0] sm:$0xff]
    %v2924 = vld [vmem:[%s2914 + $0xb0] sm:$0xff]
    %v2925 = vld [vmem:[%s2914 + $0xc0] sm:$0xff]
    %v2926 = vld [vmem:[%s2914 + $0xd0] sm:$0xff]
    %v2927 = vld [vmem:[%s2914 + $0xe0] sm:$0xff]
    %v2928 = vld [vmem:[%s2914 + $0xf0] sm:$0xff]
    %v2929 = vld [vmem:[%s2914 + $0x100] sm:$0xff]
    %v2930 = vld [vmem:[%s2914 + $0x110] sm:$0xff]
    %v2931 = vpack.c.bf16 %v2916, %v2915
    %v2932 = vpack.c.bf16 %v2918, %v2917
    %v2933 = vpack.c.bf16 %v2920, %v2919
    %v2934 = vpack.c.bf16 %v2922, %v2921
    %v2935 = vpack.c.bf16 %v2924, %v2923
    %v2936 = vpack.c.bf16 %v2926, %v2925
    %v2937 = vpack.c.bf16 %v2928, %v2927
    %v2938 = vpack.c.bf16 %v2930, %v2929
    %s2939 = scalar_lea.vmem %s4, 96
    %v2940 = vld [vmem:[%s2939] sm:$0xf]
    %v2941 = vld [vmem:[%s2939 + $0x4] sm:$0xf]
    %v2942 = vld [vmem:[%s2939 + $0x8] sm:$0xf]
    %v2943 = vld [vmem:[%s2939 + $0xc] sm:$0xf]
    %v2948 = vunpack.c.l.b16 %v2940
    %v2949 = vunpack.c.l.b16 %v2941
    %v2950 = vunpack.c.l.b16 %v2942
    %v2951 = vunpack.c.l.b16 %v2943
    %v2952 = vpack.c.b16 %v2949, %v2948
    %v2953 = vpack.c.b16 %v2951, %v2950
    %v2957 = vsel %vm1820, %v2931, 0
    %v2960 = vsel %vm1820, %v2932, 0
    %v2963 = vsel %vm1820, %v2933, 0
    %v2966 = vsel %vm1820, %v2934, 0
    %v2969 = vsel %vm1820, %v2935, 0
    %v2972 = vsel %vm1820, %v2936, 0
    %v2975 = vsel %vm1820, %v2937, 0
    %v2978 = vsel %vm1820, %v2938, 0
    %2980 = vmatprep.subr.bf16.mxu0 0
    %2981 = vmatpush1.bf16.msra.mxu0 %v2952
    %2982 = vmatprep.subr.bf16.mxu0 0
    %2983 = vmatpush1.bf16.msra.mxu0 %v2953
    %2984 = vmatprep.subr.bf16.mxu0 0
    %2985 = vmatpush1.bf16.msra.mxu0 0
    %2986 = vmatprep.subr.bf16.mxu0 0
    %2987 = vmatpush1.bf16.msra.mxu0 0
    %2988 = vmatprep.subr.bf16.mxu0 0
    %2989 = vmatpush1.bf16.msra.mxu0 0
    %2990 = vmatprep.subr.bf16.mxu0 0
    %2991 = vmatpush1.bf16.msra.mxu0 0
    %2992 = vmatprep.subr.bf16.mxu0 0
    %2993 = vmatpush1.bf16.msra.mxu0 0
    %2994 = vmatprep.subr.bf16.mxu0 0
    %2995 = vmatpush1.bf16.msra.mxu0 0
    %2996 = vmatprep.subr.bf16.mxu0 0
    %2997 = vmatpush1.bf16.msra.mxu0 0
    %2998 = vmatprep.subr.bf16.mxu0 0
    %2999 = vmatpush1.bf16.msra.mxu0 0
    %3000 = vmatprep.subr.bf16.mxu0 0
    %3001 = vmatpush1.bf16.msra.mxu0 0
    %3002 = vmatprep.subr.bf16.mxu0 0
    %3003 = vmatpush1.bf16.msra.mxu0 0
    %3004 = vmatprep.subr.bf16.mxu0 0
    %3005 = vmatpush1.bf16.msra.mxu0 0
    %3006 = vmatprep.subr.bf16.mxu0 0
    %3007 = vmatpush1.bf16.msra.mxu0 0
    %3008 = vmatprep.subr.bf16.mxu0 0
    %3009 = vmatpush1.bf16.msra.mxu0 0
    %3010 = vmatprep.subr.bf16.mxu0 0
    %3011 = vmatpush1.bf16.msra.mxu0 0
    %3012 = vmatprep.mubr.bf16.mxu0 0
    %3013 = vmatmul.mubr.bf16.gmra.mrb[0].mxu0 %v2957
    %v3014 = vpop.f32.mrb[0].mxu0
    %v3015 = vadd.f32 0.0, %v3014
    %v3016 = vpop.f32.mrb[0].mxu0
    %v3017 = vpop.f32.mrb[0].mxu0
    %v3018 = vadd.f32 0.0, %v3017
    %v3019 = vpop.f32.mrb[0].mxu0
    %3020 = vmatprep.mubr.bf16.mxu0 0
    %3021 = vmatmul.mubr.bf16.gmra.mrb[0].mxu0 %v2960
    %v3022 = vpop.f32.mrb[0].mxu0
    %v3023 = vadd.f32 0.0, %v3022
    %v3024 = vpop.f32.mrb[0].mxu0
    %v3025 = vpop.f32.mrb[0].mxu0
    %v3026 = vadd.f32 0.0, %v3025
    %v3027 = vpop.f32.mrb[0].mxu0
    %3028 = vmatprep.mubr.bf16.mxu0 0
    %3029 = vmatmul.mubr.bf16.gmra.mrb[0].mxu0 %v2963
    %v3030 = vpop.f32.mrb[0].mxu0
    %v3031 = vadd.f32 0.0, %v3030
    %v3032 = vpop.f32.mrb[0].mxu0
    %v3033 = vpop.f32.mrb[0].mxu0
    %v3034 = vadd.f32 0.0, %v3033
    %v3035 = vpop.f32.mrb[0].mxu0
    %3036 = vmatprep.mubr.bf16.mxu0 0
    %3037 = vmatmul.mubr.bf16.gmra.mrb[0].mxu0 %v2966
    %v3038 = vpop.f32.mrb[0].mxu0
    %v3039 = vadd.f32 0.0, %v3038
    %v3040 = vpop.f32.mrb[0].mxu0
    %v3041 = vpop.f32.mrb[0].mxu0
    %v3042 = vadd.f32 0.0, %v3041
    %v3043 = vpop.f32.mrb[0].mxu0
    %3044 = vmatprep.mubr.bf16.mxu0 0
    %3045 = vmatmul.mubr.bf16.gmra.mrb[0].mxu0 %v2969
    %v3046 = vpop.f32.mrb[0].mxu0
    %v3047 = vadd.f32 0.0, %v3046
    %v3048 = vpop.f32.mrb[0].mxu0
    %v3049 = vpop.f32.mrb[0].mxu0
    %v3050 = vadd.f32 0.0, %v3049
    %v3051 = vpop.f32.mrb[0].mxu0
    %3052 = vmatprep.mubr.bf16.mxu0 0
    %3053 = vmatmul.mubr.bf16.gmra.mrb[0].mxu0 %v2972
    %v3054 = vpop.f32.mrb[0].mxu0
    %v3055 = vadd.f32 0.0, %v3054
    %v3056 = vpop.f32.mrb[0].mxu0
    %v3057 = vpop.f32.mrb[0].mxu0
    %v3058 = vadd.f32 0.0, %v3057
    %v3059 = vpop.f32.mrb[0].mxu0
    %3060 = vmatprep.mubr.bf16.mxu0 0
    %3061 = vmatmul.mubr.bf16.gmra.mrb[0].mxu0 %v2975
    %v3062 = vpop.f32.mrb[0].mxu0
    %v3063 = vadd.f32 0.0, %v3062
    %v3064 = vpop.f32.mrb[0].mxu0
    %v3065 = vpop.f32.mrb[0].mxu0
    %v3066 = vadd.f32 0.0, %v3065
    %v3067 = vpop.f32.mrb[0].mxu0
    %3068 = vmatprep.mubr.bf16.mxu0 0
    %3069 = vmatmul.mubr.bf16.gmra.mrb[0].mxu0 %v2978
    %v3070 = vpop.f32.mrb[0].mxu0
    %v3071 = vadd.f32 0.0, %v3070
    %v3072 = vpop.f32.mrb[0].mxu0
    %v3073 = vpop.f32.mrb[0].mxu0
    %v3074 = vadd.f32 0.0, %v3073
    %v3075 = vpop.f32.mrb[0].mxu0
    %3076 = vdwg.mxu0
    %v3077 = vadd.f32 %v2898, %v3015
    %v3078 = vadd.f32 %v2899, %v3018
    %v3079 = vadd.f32 %v2900, %v3023
    %v3080 = vadd.f32 %v2901, %v3026
    %v3081 = vadd.f32 %v2902, %v3031
    %v3082 = vadd.f32 %v2903, %v3034
    %v3083 = vadd.f32 %v2904, %v3039
    %v3084 = vadd.f32 %v2905, %v3042
    %v3085 = vadd.f32 %v2906, %v3047
    %v3086 = vadd.f32 %v2907, %v3050
    %v3087 = vadd.f32 %v2908, %v3055
    %v3088 = vadd.f32 %v2909, %v3058
    %v3089 = vadd.f32 %v2910, %v3063
    %v3090 = vadd.f32 %v2911, %v3066
    %v3091 = vadd.f32 %v2912, %v3071
    %v3092 = vadd.f32 %v2913, %v3074
    %v3093 = vld [vmem:[%s2914 + $0x1] sm:$0xff]
    %v3094 = vld [vmem:[%s2914 + $0x11] sm:$0xff]
    %v3095 = vld [vmem:[%s2914 + $0x21] sm:$0xff]
    %v3096 = vld [vmem:[%s2914 + $0x31] sm:$0xff]
    %v3097 = vld [vmem:[%s2914 + $0x41] sm:$0xff]
    %v3098 = vld [vmem:[%s2914 + $0x51] sm:$0xff]
    %v3099 = vld [vmem:[%s2914 + $0x61] sm:$0xff]
    %v3100 = vld [vmem:[%s2914 + $0x71] sm:$0xff]
    %v3101 = vld [vmem:[%s2914 + $0xa1] sm:$0xff]
    %v3102 = vld [vmem:[%s2914 + $0xb1] sm:$0xff]
    %v3103 = vld [vmem:[%s2914 + $0xc1] sm:$0xff]
    %v3104 = vld [vmem:[%s2914 + $0xd1] sm:$0xff]
    %v3105 = vld [vmem:[%s2914 + $0xe1] sm:$0xff]
    %v3106 = vld [vmem:[%s2914 + $0xf1] sm:$0xff]
    %v3107 = vld [vmem:[%s2914 + $0x101] sm:$0xff]
    %v3108 = vld [vmem:[%s2914 + $0x111] sm:$0xff]
    %v3109 = vpack.c.bf16 %v3094, %v3093
    %v3110 = vpack.c.bf16 %v3096, %v3095
    %v3111 = vpack.c.bf16 %v3098, %v3097
    %v3112 = vpack.c.bf16 %v3100, %v3099
    %v3113 = vpack.c.bf16 %v3102, %v3101
    %v3114 = vpack.c.bf16 %v3104, %v3103
    %v3115 = vpack.c.bf16 %v3106, %v3105
    %v3116 = vpack.c.bf16 %v3108, %v3107
    %s3117 = scalar_lea.vmem %s4, 112
    %v3118 = vld [vmem:[%s3117] sm:$0xf]
    %v3119 = vld [vmem:[%s3117 + $0x4] sm:$0xf]
    %v3120 = vld [vmem:[%s3117 + $0x8] sm:$0xf]
    %v3121 = vld [vmem:[%s3117 + $0xc] sm:$0xf]
    %v3126 = vunpack.c.l.b16 %v3118
    %v3127 = vunpack.c.l.b16 %v3119
    %v3128 = vunpack.c.l.b16 %v3120
    %v3129 = vunpack.c.l.b16 %v3121
    %v3130 = vpack.c.b16 %v3127, %v3126
    %v3131 = vpack.c.b16 %v3129, %v3128
    %v3135 = vsel %vm1820, %v3109, 0
    %v3138 = vsel %vm1820, %v3110, 0
    %v3141 = vsel %vm1820, %v3111, 0
    %v3144 = vsel %vm1820, %v3112, 0
    %v3147 = vsel %vm1820, %v3113, 0
    %v3150 = vsel %vm1820, %v3114, 0
    %v3153 = vsel %vm1820, %v3115, 0
    %v3156 = vsel %vm1820, %v3116, 0
    %3158 = vmatprep.subr.bf16.mxu0 0
    %3159 = vmatpush1.bf16.msra.mxu0 %v3130
    %3160 = vmatprep.subr.bf16.mxu0 0
    %3161 = vmatpush1.bf16.msra.mxu0 %v3131
    %3162 = vmatprep.subr.bf16.mxu0 0
    %3163 = vmatpush1.bf16.msra.mxu0 0
    %3164 = vmatprep.subr.bf16.mxu0 0
    %3165 = vmatpush1.bf16.msra.mxu0 0
    %3166 = vmatprep.subr.bf16.mxu0 0
    %3167 = vmatpush1.bf16.msra.mxu0 0
    %3168 = vmatprep.subr.bf16.mxu0 0
    %3169 = vmatpush1.bf16.msra.mxu0 0
    %3170 = vmatprep.subr.bf16.mxu0 0
    %3171 = vmatpush1.bf16.msra.mxu0 0
    %3172 = vmatprep.subr.bf16.mxu0 0
    %3173 = vmatpush1.bf16.msra.mxu0 0
    %3174 = vmatprep.subr.bf16.mxu0 0
    %3175 = vmatpush1.bf16.msra.mxu0 0
    %3176 = vmatprep.subr.bf16.mxu0 0
    %3177 = vmatpush1.bf16.msra.mxu0 0
    %3178 = vmatprep.subr.bf16.mxu0 0
    %3179 = vmatpush1.bf16.msra.mxu0 0
    %3180 = vmatprep.subr.bf16.mxu0 0
    %3181 = vmatpush1.bf16.msra.mxu0 0
    %3182 = vmatprep.subr.bf16.mxu0 0
    %3183 = vmatpush1.bf16.msra.mxu0 0
    %3184 = vmatprep.subr.bf16.mxu0 0
    %3185 = vmatpush1.bf16.msra.mxu0 0
    %3186 = vmatprep.subr.bf16.mxu0 0
    %3187 = vmatpush1.bf16.msra.mxu0 0
    %3188 = vmatprep.subr.bf16.mxu0 0
    %3189 = vmatpush1.bf16.msra.mxu0 0
    %3190 = vmatprep.mubr.bf16.mxu0 0
    %3191 = vmatmul.mubr.bf16.gmra.mrb[0].mxu0 %v3135
    %v3192 = vpop.f32.mrb[0].mxu0
    %v3193 = vadd.f32 0.0, %v3192
    %v3194 = vpop.f32.mrb[0].mxu0
    %v3195 = vpop.f32.mrb[0].mxu0
    %v3196 = vadd.f32 0.0, %v3195
    %v3197 = vpop.f32.mrb[0].mxu0
    %3198 = vmatprep.mubr.bf16.mxu0 0
    %3199 = vmatmul.mubr.bf16.gmra.mrb[0].mxu0 %v3138
    %v3200 = vpop.f32.mrb[0].mxu0
    %v3201 = vadd.f32 0.0, %v3200
    %v3202 = vpop.f32.mrb[0].mxu0
    %v3203 = vpop.f32.mrb[0].mxu0
    %v3204 = vadd.f32 0.0, %v3203
    %v3205 = vpop.f32.mrb[0].mxu0
    %3206 = vmatprep.mubr.bf16.mxu0 0
    %3207 = vmatmul.mubr.bf16.gmra.mrb[0].mxu0 %v3141
    %v3208 = vpop.f32.mrb[0].mxu0
    %v3209 = vadd.f32 0.0, %v3208
    %v3210 = vpop.f32.mrb[0].mxu0
    %v3211 = vpop.f32.mrb[0].mxu0
    %v3212 = vadd.f32 0.0, %v3211
    %v3213 = vpop.f32.mrb[0].mxu0
    %3214 = vmatprep.mubr.bf16.mxu0 0
    %3215 = vmatmul.mubr.bf16.gmra.mrb[0].mxu0 %v3144
    %v3216 = vpop.f32.mrb[0].mxu0
    %v3217 = vadd.f32 0.0, %v3216
    %v3218 = vpop.f32.mrb[0].mxu0
    %v3219 = vpop.f32.mrb[0].mxu0
    %v3220 = vadd.f32 0.0, %v3219
    %v3221 = vpop.f32.mrb[0].mxu0
    %3222 = vmatprep.mubr.bf16.mxu0 0
    %3223 = vmatmul.mubr.bf16.gmra.mrb[0].mxu0 %v3147
    %v3224 = vpop.f32.mrb[0].mxu0
    %v3225 = vadd.f32 0.0, %v3224
    %v3226 = vpop.f32.mrb[0].mxu0
    %v3227 = vpop.f32.mrb[0].mxu0
    %v3228 = vadd.f32 0.0, %v3227
    %v3229 = vpop.f32.mrb[0].mxu0
    %3230 = vmatprep.mubr.bf16.mxu0 0
    %3231 = vmatmul.mubr.bf16.gmra.mrb[0].mxu0 %v3150
    %v3232 = vpop.f32.mrb[0].mxu0
    %v3233 = vadd.f32 0.0, %v3232
    %v3234 = vpop.f32.mrb[0].mxu0
    %v3235 = vpop.f32.mrb[0].mxu0
    %v3236 = vadd.f32 0.0, %v3235
    %v3237 = vpop.f32.mrb[0].mxu0
    %3238 = vmatprep.mubr.bf16.mxu0 0
    %3239 = vmatmul.mubr.bf16.gmra.mrb[0].mxu0 %v3153
    %v3240 = vpop.f32.mrb[0].mxu0
    %v3241 = vadd.f32 0.0, %v3240
    %v3242 = vpop.f32.mrb[0].mxu0
    %v3243 = vpop.f32.mrb[0].mxu0
    %v3244 = vadd.f32 0.0, %v3243
    %v3245 = vpop.f32.mrb[0].mxu0
    %3246 = vmatprep.mubr.bf16.mxu0 0
    %3247 = vmatmul.mubr.bf16.gmra.mrb[0].mxu0 %v3156
    %v3248 = vpop.f32.mrb[0].mxu0
    %v3249 = vadd.f32 0.0, %v3248
    %v3250 = vpop.f32.mrb[0].mxu0
    %v3251 = vpop.f32.mrb[0].mxu0
    %v3252 = vadd.f32 0.0, %v3251
    %v3253 = vpop.f32.mrb[0].mxu0
    %3254 = vdwg.mxu0
    %v3255 = vadd.f32 %v3077, %v3193
    %v3256 = vadd.f32 %v3078, %v3196
    %v3257 = vadd.f32 %v3079, %v3201
    %v3258 = vadd.f32 %v3080, %v3204
    %v3259 = vadd.f32 %v3081, %v3209
    %v3260 = vadd.f32 %v3082, %v3212
    %v3261 = vadd.f32 %v3083, %v3217
    %v3262 = vadd.f32 %v3084, %v3220
    %v3263 = vadd.f32 %v3085, %v3225
    %v3264 = vadd.f32 %v3086, %v3228
    %v3265 = vadd.f32 %v3087, %v3233
    %v3266 = vadd.f32 %v3088, %v3236
    %v3267 = vadd.f32 %v3089, %v3241
    %v3268 = vadd.f32 %v3090, %v3244
    %v3269 = vadd.f32 %v3091, %v3249
    %v3270 = vadd.f32 %v3092, %v3252
    %v3271 = vld [vmem:[%s2914 + $0x2] sm:$0xff]
    %v3272 = vld [vmem:[%s2914 + $0x12] sm:$0xff]
    %v3273 = vld [vmem:[%s2914 + $0x22] sm:$0xff]
    %v3274 = vld [vmem:[%s2914 + $0x32] sm:$0xff]
    %v3275 = vld [vmem:[%s2914 + $0x42] sm:$0xff]
    %v3276 = vld [vmem:[%s2914 + $0x52] sm:$0xff]
    %v3277 = vld [vmem:[%s2914 + $0x62] sm:$0xff]
    %v3278 = vld [vmem:[%s2914 + $0x72] sm:$0xff]
    %v3279 = vld [vmem:[%s2914 + $0xa2] sm:$0xff]
    %v3280 = vld [vmem:[%s2914 + $0xb2] sm:$0xff]
    %v3281 = vld [vmem:[%s2914 + $0xc2] sm:$0xff]
    %v3282 = vld [vmem:[%s2914 + $0xd2] sm:$0xff]
    %v3283 = vld [vmem:[%s2914 + $0xe2] sm:$0xff]
    %v3284 = vld [vmem:[%s2914 + $0xf2] sm:$0xff]
    %v3285 = vld [vmem:[%s2914 + $0x102] sm:$0xff]
    %v3286 = vld [vmem:[%s2914 + $0x112] sm:$0xff]
    %v3287 = vpack.c.bf16 %v3272, %v3271
    %v3288 = vpack.c.bf16 %v3274, %v3273
    %v3289 = vpack.c.bf16 %v3276, %v3275
    %v3290 = vpack.c.bf16 %v3278, %v3277
    %v3291 = vpack.c.bf16 %v3280, %v3279
    %v3292 = vpack.c.bf16 %v3282, %v3281
    %v3293 = vpack.c.bf16 %v3284, %v3283
    %v3294 = vpack.c.bf16 %v3286, %v3285
    %s3295 = scalar_lea.vmem %s4, 128
    %v3296 = vld [vmem:[%s3295] sm:$0xf]
    %v3297 = vld [vmem:[%s3295 + $0x4] sm:$0xf]
    %v3298 = vld [vmem:[%s3295 + $0x8] sm:$0xf]
    %v3299 = vld [vmem:[%s3295 + $0xc] sm:$0xf]
    %v3304 = vunpack.c.l.b16 %v3296
    %v3305 = vunpack.c.l.b16 %v3297
    %v3306 = vunpack.c.l.b16 %v3298
    %v3307 = vunpack.c.l.b16 %v3299
    %v3308 = vpack.c.b16 %v3305, %v3304
    %v3309 = vpack.c.b16 %v3307, %v3306
    %v3313 = vsel %vm1820, %v3287, 0
    %v3316 = vsel %vm1820, %v3288, 0
    %v3319 = vsel %vm1820, %v3289, 0
    %v3322 = vsel %vm1820, %v3290, 0
    %v3325 = vsel %vm1820, %v3291, 0
    %v3328 = vsel %vm1820, %v3292, 0
    %v3331 = vsel %vm1820, %v3293, 0
    %v3334 = vsel %vm1820, %v3294, 0
    %3336 = vmatprep.subr.bf16.mxu0 0
    %3337 = vmatpush1.bf16.msra.mxu0 %v3308
    %3338 = vmatprep.subr.bf16.mxu0 0
    %3339 = vmatpush1.bf16.msra.mxu0 %v3309
    %3340 = vmatprep.subr.bf16.mxu0 0
    %3341 = vmatpush1.bf16.msra.mxu0 0
    %3342 = vmatprep.subr.bf16.mxu0 0
    %3343 = vmatpush1.bf16.msra.mxu0 0
    %3344 = vmatprep.subr.bf16.mxu0 0
    %3345 = vmatpush1.bf16.msra.mxu0 0
    %3346 = vmatprep.subr.bf16.mxu0 0
    %3347 = vmatpush1.bf16.msra.mxu0 0
    %3348 = vmatprep.subr.bf16.mxu0 0
    %3349 = vmatpush1.bf16.msra.mxu0 0
    %3350 = vmatprep.subr.bf16.mxu0 0
    %3351 = vmatpush1.bf16.msra.mxu0 0
    %3352 = vmatprep.subr.bf16.mxu0 0
    %3353 = vmatpush1.bf16.msra.mxu0 0
    %3354 = vmatprep.subr.bf16.mxu0 0
    %3355 = vmatpush1.bf16.msra.mxu0 0
    %3356 = vmatprep.subr.bf16.mxu0 0
    %3357 = vmatpush1.bf16.msra.mxu0 0
    %3358 = vmatprep.subr.bf16.mxu0 0
    %3359 = vmatpush1.bf16.msra.mxu0 0
    %3360 = vmatprep.subr.bf16.mxu0 0
    %3361 = vmatpush1.bf16.msra.mxu0 0
    %3362 = vmatprep.subr.bf16.mxu0 0
    %3363 = vmatpush1.bf16.msra.mxu0 0
    %3364 = vmatprep.subr.bf16.mxu0 0
    %3365 = vmatpush1.bf16.msra.mxu0 0
    %3366 = vmatprep.subr.bf16.mxu0 0
    %3367 = vmatpush1.bf16.msra.mxu0 0
    %3368 = vmatprep.mubr.bf16.mxu0 0
    %3369 = vmatmul.mubr.bf16.gmra.mrb[0].mxu0 %v3313
    %v3370 = vpop.f32.mrb[0].mxu0
    %v3371 = vadd.f32 0.0, %v3370
    %v3372 = vpop.f32.mrb[0].mxu0
    %v3373 = vpop.f32.mrb[0].mxu0
    %v3374 = vadd.f32 0.0, %v3373
    %v3375 = vpop.f32.mrb[0].mxu0
    %3376 = vmatprep.mubr.bf16.mxu0 0
    %3377 = vmatmul.mubr.bf16.gmra.mrb[0].mxu0 %v3316
    %v3378 = vpop.f32.mrb[0].mxu0
    %v3379 = vadd.f32 0.0, %v3378
    %v3380 = vpop.f32.mrb[0].mxu0
    %v3381 = vpop.f32.mrb[0].mxu0
    %v3382 = vadd.f32 0.0, %v3381
    %v3383 = vpop.f32.mrb[0].mxu0
    %3384 = vmatprep.mubr.bf16.mxu0 0
    %3385 = vmatmul.mubr.bf16.gmra.mrb[0].mxu0 %v3319
    %v3386 = vpop.f32.mrb[0].mxu0
    %v3387 = vadd.f32 0.0, %v3386
    %v3388 = vpop.f32.mrb[0].mxu0
    %v3389 = vpop.f32.mrb[0].mxu0
    %v3390 = vadd.f32 0.0, %v3389
    %v3391 = vpop.f32.mrb[0].mxu0
    %3392 = vmatprep.mubr.bf16.mxu0 0
    %3393 = vmatmul.mubr.bf16.gmra.mrb[0].mxu0 %v3322
    %v3394 = vpop.f32.mrb[0].mxu0
    %v3395 = vadd.f32 0.0, %v3394
    %v3396 = vpop.f32.mrb[0].mxu0
    %v3397 = vpop.f32.mrb[0].mxu0
    %v3398 = vadd.f32 0.0, %v3397
    %v3399 = vpop.f32.mrb[0].mxu0
    %3400 = vmatprep.mubr.bf16.mxu0 0
    %3401 = vmatmul.mubr.bf16.gmra.mrb[0].mxu0 %v3325
    %v3402 = vpop.f32.mrb[0].mxu0
    %v3403 = vadd.f32 0.0, %v3402
    %v3404 = vpop.f32.mrb[0].mxu0
    %v3405 = vpop.f32.mrb[0].mxu0
    %v3406 = vadd.f32 0.0, %v3405
    %v3407 = vpop.f32.mrb[0].mxu0
    %3408 = vmatprep.mubr.bf16.mxu0 0
    %3409 = vmatmul.mubr.bf16.gmra.mrb[0].mxu0 %v3328
    %v3410 = vpop.f32.mrb[0].mxu0
    %v3411 = vadd.f32 0.0, %v3410
    %v3412 = vpop.f32.mrb[0].mxu0
    %v3413 = vpop.f32.mrb[0].mxu0
    %v3414 = vadd.f32 0.0, %v3413
    %v3415 = vpop.f32.mrb[0].mxu0
    %3416 = vmatprep.mubr.bf16.mxu0 0
    %3417 = vmatmul.mubr.bf16.gmra.mrb[0].mxu0 %v3331
    %v3418 = vpop.f32.mrb[0].mxu0
    %v3419 = vadd.f32 0.0, %v3418
    %v3420 = vpop.f32.mrb[0].mxu0
    %v3421 = vpop.f32.mrb[0].mxu0
    %v3422 = vadd.f32 0.0, %v3421
    %v3423 = vpop.f32.mrb[0].mxu0
    %3424 = vmatprep.mubr.bf16.mxu0 0
    %3425 = vmatmul.mubr.bf16.gmra.mrb[0].mxu0 %v3334
    %v3426 = vpop.f32.mrb[0].mxu0
    %v3427 = vadd.f32 0.0, %v3426
    %v3428 = vpop.f32.mrb[0].mxu0
    %v3429 = vpop.f32.mrb[0].mxu0
    %v3430 = vadd.f32 0.0, %v3429
    %v3431 = vpop.f32.mrb[0].mxu0
    %3432 = vdwg.mxu0
    %v3433 = vadd.f32 %v3255, %v3371
    %v3434 = vadd.f32 %v3256, %v3374
    %v3435 = vadd.f32 %v3257, %v3379
    %v3436 = vadd.f32 %v3258, %v3382
    %v3437 = vadd.f32 %v3259, %v3387
    %v3438 = vadd.f32 %v3260, %v3390
    %v3439 = vadd.f32 %v3261, %v3395
    %v3440 = vadd.f32 %v3262, %v3398
    %v3441 = vadd.f32 %v3263, %v3403
    %v3442 = vadd.f32 %v3264, %v3406
    %v3443 = vadd.f32 %v3265, %v3411
    %v3444 = vadd.f32 %v3266, %v3414
    %v3445 = vadd.f32 %v3267, %v3419
    %v3446 = vadd.f32 %v3268, %v3422
    %v3447 = vadd.f32 %v3269, %v3427
    %v3448 = vadd.f32 %v3270, %v3430
    %v3449 = vld [vmem:[%s5] sm:$0x1]
    %v3451 = vlaneseq
    %v3452 = vshrl.u32 %v3451, 7
    %v3453 = vsub.s32 0, %v3452
    %v3454 = vrot.slane %v3449, %v3453
    %v3456 = vmul.f32 %v3433, %v3454
    %v3457 = vmul.f32 %v3434, %v3454
    %v3458 = vmul.f32 %v3435, %v3454
    %v3459 = vmul.f32 %v3436, %v3454
    %v3460 = vmul.f32 %v3437, %v3454
    %v3461 = vmul.f32 %v3438, %v3454
    %v3462 = vmul.f32 %v3439, %v3454
    %v3463 = vmul.f32 %v3440, %v3454
    %v3464 = vmul.f32 %v3441, %v3454
    %v3465 = vmul.f32 %v3442, %v3454
    %v3466 = vmul.f32 %v3443, %v3454
    %v3467 = vmul.f32 %v3444, %v3454
    %v3468 = vmul.f32 %v3445, %v3454
    %v3469 = vmul.f32 %v3446, %v3454
    %v3470 = vmul.f32 %v3447, %v3454
    %v3471 = vmul.f32 %v3448, %v3454
    %v3472 = vld [vmem:[%s6] sm:$0x1]
    %v3474 = vlaneseq
    %v3475 = vshrl.u32 %v3474, 7
    %v3476 = vsub.s32 0, %v3475
    %v3477 = vrot.slane %v3472, %v3476
    %v3479 = vadd.f32 %v3456, %v3477
    %v3480 = vadd.f32 %v3457, %v3477
    %v3481 = vadd.f32 %v3458, %v3477
    %v3482 = vadd.f32 %v3459, %v3477
    %v3483 = vadd.f32 %v3460, %v3477
    %v3484 = vadd.f32 %v3461, %v3477
    %v3485 = vadd.f32 %v3462, %v3477
    %v3486 = vadd.f32 %v3463, %v3477
    %v3487 = vadd.f32 %v3464, %v3477
    %v3488 = vadd.f32 %v3465, %v3477
    %v3489 = vadd.f32 %v3466, %v3477
    %v3490 = vadd.f32 %v3467, %v3477
    %v3491 = vadd.f32 %v3468, %v3477
    %v3492 = vadd.f32 %v3469, %v3477
    %v3493 = vadd.f32 %v3470, %v3477
    %v3494 = vadd.f32 %v3471, %v3477
    %v3495 = vmax.f32 %v3479, 0.0
    %v3496 = vmax.f32 %v3480, 0.0
    %v3497 = vmax.f32 %v3481, 0.0
    %v3498 = vmax.f32 %v3482, 0.0
    %v3499 = vmax.f32 %v3483, 0.0
    %v3500 = vmax.f32 %v3484, 0.0
    %v3501 = vmax.f32 %v3485, 0.0
    %v3502 = vmax.f32 %v3486, 0.0
    %v3503 = vmax.f32 %v3487, 0.0
    %v3504 = vmax.f32 %v3488, 0.0
    %v3505 = vmax.f32 %v3489, 0.0
    %v3506 = vmax.f32 %v3490, 0.0
    %v3507 = vmax.f32 %v3491, 0.0
    %v3508 = vmax.f32 %v3492, 0.0
    %v3509 = vmax.f32 %v3493, 0.0
    %v3510 = vmax.f32 %v3494, 0.0
    %3511 = vst.msk [vmem:[#allocation4] sm:$0xff] %vm1820, %v3495
    %3512 = vst.msk [vmem:[#allocation4 + $0x8] sm:$0xff] %vm1820, %v3496
    %3513 = vst.msk [vmem:[#allocation4 + $0x10] sm:$0xff] %vm1820, %v3497
    %3514 = vst.msk [vmem:[#allocation4 + $0x18] sm:$0xff] %vm1820, %v3498
    %3515 = vst.msk [vmem:[#allocation4 + $0x20] sm:$0xff] %vm1820, %v3499
    %3516 = vst.msk [vmem:[#allocation4 + $0x28] sm:$0xff] %vm1820, %v3500
    %3517 = vst.msk [vmem:[#allocation4 + $0x30] sm:$0xff] %vm1820, %v3501
    %3518 = vst.msk [vmem:[#allocation4 + $0x38] sm:$0xff] %vm1820, %v3502
    %3519 = vst.msk [vmem:[#allocation4 + $0x40] sm:$0xff] %vm1820, %v3503
    %3520 = vst.msk [vmem:[#allocation4 + $0x48] sm:$0xff] %vm1820, %v3504
    %3521 = vst.msk [vmem:[#allocation4 + $0x50] sm:$0xff] %vm1820, %v3505
    %3522 = vst.msk [vmem:[#allocation4 + $0x58] sm:$0xff] %vm1820, %v3506
    %3523 = vst.msk [vmem:[#allocation4 + $0x60] sm:$0xff] %vm1820, %v3507
    %3524 = vst.msk [vmem:[#allocation4 + $0x68] sm:$0xff] %vm1820, %v3508
    %3525 = vst.msk [vmem:[#allocation4 + $0x70] sm:$0xff] %vm1820, %v3509
    %3526 = vst.msk [vmem:[#allocation4 + $0x78] sm:$0xff] %vm1820, %v3510
    // Predicated region
    $region30: #{downconv_forward.1} parent=1 // pred_check
      _
    $region31: #{downconv_forward.1} parent=1 // pred_check_branch
      %3528 = sbr.rel (0) target = $region33
    $region32: #{downconv_forward.1} parent=1 // pred_region
      %s3530 = ssub.s32 2048, 2048
      %3531 = vsyncadd [#allocation5], %s3530
      %s3532 = sshll.u32 [#allocation4], 4
      %s3533 = int_to_ptr.vmem [resolvable:$true] %s3532
      %3538 = dma.vmem_to_hbm [thread:$0]  %s3533, 2048, %s7, [#allocation5], 128, 128, 8
    $region33: #{downconv_forward.1} parent=1 // pred_fallthru
      _
    // Predicated region
    $region34: #{downconv_forward.1} parent=1 // pred_check
      _
    $region35: #{downconv_forward.1} parent=1 // pred_check_branch
      %3540 = sbr.rel (0) target = $region37
    $region36: #{downconv_forward.1} parent=1 // pred_region
      %3541 = dma.done [#allocation5], 2048
    $region37: #{downconv_forward.1} parent=1 // pred_fallthru
      _
    %3542 = vsyncpa [#allocation5], 1

</llo_original>
